<compile_context>
chip_gen: v7x
topology: tpu7x:2x2x1
jax: 0.10.0
libtpu: 0.0.40
codegen_flags: <defaults>
</compile_context>

<pallas_src>
import functools

import jax
import jax.numpy as jnp
from jax import lax
from jax.experimental import pallas as pl
from jax.experimental.pallas import tpu as pltpu


CSUB = 8  # channel rows processed per inner step (sublane tile)


def _round_up(x, m):
    return (x + m - 1) // m * m


def _vmem_budget():
    """Per-generation VMEM budget (bytes) for vmem_limit and tile selection."""
    cap = 128 * 1024 * 1024
    try:
        info = pltpu.get_tpu_info()
        cap = int(getattr(info, "vmem_capacity_bytes", cap))
    except Exception:
        pass
    if cap <= 64 * 1024 * 1024:        # v7x-class part: leave headroom
        return 48 * 1024 * 1024
    return 100 * 1024 * 1024           # v5e / v6e: exploit the 128 MiB


def _pick_tile(pv, k, wp_pad, cp, ocp, budget):
    """Largest lane-dense tile whose per-step VMEM estimate fits the budget."""
    k2 = k * k
    cands = (256, 512) if budget <= 48 * 1024 * 1024 else (256, 512, 1024)
    tile = 128
    for t in cands:
        slab_w = _round_up(t + (k - 1) * wp_pad + (k - 1), 128)
        use = 4 * (cp * slab_w                      # activation window buffer
                   + k2 * cp * t                    # wd (matmul LHS) scratch
                   + 2 * ocp * t                    # double-buffered out block
                   + cp * (2 * k2 + k2 * k2)        # w1 / b1 / wfs
                   + ocp * (k2 * cp + 1))           # w2s / b2
        if use <= budget // 2:
            tile = t
    # don't tile far past the problem size
    while tile > 128 and tile // 2 >= _round_up(pv, 128):
        tile //= 2
    return tile


def _chunk_math(taps, w1c, wfc, b1c, wd_ref, c0, cp, k2):
    """Per (channel-chunk, pixel-tile) RFA math; writes K2 bands into wd_ref.

    taps : K2 arrays (CSUB, T); tap t=(di*k+dj) holds xpad[c, i+di, j+dj]
    w1c  : (CSUB, K2)    1x1 grouped conv weight rows (get_weight branch)
    wfc  : (CSUB, K2*K2) grouped kxk conv weight rows (BN1 scale folded),
                         column index = n_out * K2 + tap
    b1c  : (CSUB, K2)    BN1 bias rows
    wd_ref: (K2*cp, T) VMEM scratch; band n of this chunk goes to rows
            [n*cp + c0, n*cp + c0 + CSUB)
    """
    # AvgPool2d(k, pad=k//2): mean over the K2 taps (count_include_pad=True).
    pooled = taps[0]
    for t in range(1, k2):
        pooled = pooled + taps[t]
    pooled = pooled * (1.0 / k2)

    # Streaming softmax stats over the K2 get_weight logits: keep only the
    # running max and exp-sum live; exp terms are recomputed per output tap
    # below (EUP slot, nearly free) to cut vreg pressure / spills.
    m = w1c[:, 0:1] * pooled
    for n in range(1, k2):
        m = jnp.maximum(m, w1c[:, n:n + 1] * pooled)
    denom = jnp.exp(w1c[:, 0:1] * pooled - m)
    for n in range(1, k2):
        denom = denom + jnp.exp(w1c[:, n:n + 1] * pooled - m)
    r = pl.reciprocal(denom, approx=True)
    r = r * (2.0 - denom * r)          # one Newton step -> f32-accurate

    # generate_feature (grouped kxk conv + BN1 + ReLU), weighted by the
    # softmax, written straight into the matmul-LHS scratch (no concatenate).
    for n in range(k2):
        wn = jnp.exp(w1c[:, n:n + 1] * pooled - m) * r
        acc = wfc[:, n * k2:n * k2 + 1] * taps[0]
        for t in range(1, k2):
            acc = acc + wfc[:, n * k2 + t:n * k2 + t + 1] * taps[t]
        feat = jnp.maximum(acc + b1c[:, n:n + 1], 0.0)
        row = pl.multiple_of(n * cp + c0, CSUB)
        wd_ref[pl.ds(row, CSUB), :] = feat * wn


def _rfa_fused_kernel(x_hbm, w1_ref, wfs_ref, b1_ref, w2s_ref, b2_ref,
                      out_ref, buf, sem, wd_ref, *,
                      k, wp_pad, tile, slab_w, cp, bands):
    """stride==1 path: taps are static offsets into a windowed (Cp, slab_w)
    activation slab that is DMA'd from HBM per pixel tile (P4 pattern)."""
    k2 = k * k
    bb = pl.program_id(0)
    base = pl.multiple_of(pl.program_id(1) * tile, tile)

    def window_copy(r0, rows, band):
        return pltpu.make_async_copy(
            x_hbm.at[bb, pl.ds(r0, rows), pl.ds(base, slab_w)],
            buf.at[pl.ds(r0, rows), :],
            sem.at[band])

    # Issue all band DMAs up front: band i's transfer overlaps band i-1's
    # compute; the step is self-contained so the grid stays fully "parallel".
    for band, (r0, rows) in enumerate(bands):
        window_copy(r0, rows, band).start()

    for band, (r0, rows) in enumerate(bands):
        window_copy(r0, rows, band).wait()

        def chunk_body(ci, carry, r0=r0):
            c0 = pl.multiple_of(r0 + ci * CSUB, CSUB)
            slab = buf[pl.ds(c0, CSUB), :]                      # (8, slab_w)
            taps = [slab[:, di * wp_pad + dj: di * wp_pad + dj + tile]
                    for di in range(k) for dj in range(k)]
            _chunk_math(taps,
                        w1_ref[pl.ds(c0, CSUB), :],
                        wfs_ref[pl.ds(c0, CSUB), :],
                        b1_ref[pl.ds(c0, CSUB), :],
                        wd_ref, c0, cp, k2)
            return carry

        nchunks = rows // CSUB
        lax.fori_loop(0, nchunks, chunk_body, 0, unroll=nchunks <= 4)

    # rearrange + Conv(k, stride=k) + BN2 + ReLU == one MXU matmul.
    out = jnp.dot(w2s_ref[...], wd_ref[...], preferred_element_type=jnp.float32)
    out_ref[0] = jnp.maximum(out + b2_ref[...], 0.0).astype(out_ref.dtype)


def _rfa_patches_kernel(xt_ref, w1_ref, wfs_ref, b1_ref, w2s_ref, b2_ref,
                        out_ref, wd_ref, *, k2, cp):
    """general-stride fallback: taps pre-gathered in (K2, Cp, P) layout."""
    def chunk_body(ci, carry):
        c0 = pl.multiple_of(ci * CSUB, CSUB)
        taps = [xt_ref[0, t, pl.ds(c0, CSUB), :] for t in range(k2)]
        _chunk_math(taps,
                    w1_ref[pl.ds(c0, CSUB), :],
                    wfs_ref[pl.ds(c0, CSUB), :],
                    b1_ref[pl.ds(c0, CSUB), :],
                    wd_ref, c0, cp, k2)
        return carry

    nchunks = cp // CSUB
    lax.fori_loop(0, nchunks, chunk_body, 0, unroll=nchunks <= 4)
    out = jnp.dot(w2s_ref[...], wd_ref[...], preferred_element_type=jnp.float32)
    out_ref[0] = jnp.maximum(out + b2_ref[...], 0.0).astype(out_ref.dtype)


def rfaconv_pallas(x, params, kernel_size, stride=1):
    B, C, H, W = x.shape
    k, s = kernel_size, stride
    p = k // 2
    K2 = k * k
    h = (H + 2 * p - k) // s + 1
    w = (W + 2 * p - k) // s + 1
    OC = params["w2conv"].shape[0]

    Cp = _round_up(C, CSUB)
    OCp = _round_up(OC, 8)

    # ---- fold eval-mode BN scales into the conv weights; pad C/OC to x8 ----
    w1 = jnp.zeros((Cp, K2), jnp.float32).at[:C].set(
        params["w1"].astype(jnp.float32))
    wfs_c = (params["s1"][:, :, None] * params["wf"]).reshape(C, K2 * K2)
    wfs = jnp.zeros((Cp, K2 * K2), jnp.float32).at[:C].set(
        wfs_c.astype(jnp.float32))
    b1 = jnp.zeros((Cp, K2), jnp.float32).at[:C].set(
        params["b1"].astype(jnp.float32))
    # final conv: column index = n * Cp + c  (matches wd scratch row order)
    w2t = params["w2conv"].transpose(0, 2, 3, 1)                 # (OC, k, k, C)
    w2t = jnp.pad(w2t, ((0, 0), (0, 0), (0, 0), (0, Cp - C)))
    w2s_c = params["s2"] * w2t.reshape(OC, K2 * Cp)
    w2s = jnp.zeros((OCp, K2 * Cp), jnp.float32).at[:OC].set(
        w2s_c.astype(jnp.float32))
    b2 = jnp.zeros((OCp, 1), jnp.float32).at[:OC].set(
        params["b2"].astype(jnp.float32))

    budget = _vmem_budget()
    cparams = pltpu.CompilerParams(
        dimension_semantics=("parallel", "parallel"),
        vmem_limit_bytes=budget)
    const = lambda bb, tt: (0, 0)
    param_specs = [
        pl.BlockSpec((Cp, K2), const),
        pl.BlockSpec((Cp, K2 * K2), const),
        pl.BlockSpec((Cp, K2), const),
        pl.BlockSpec((OCp, K2 * Cp), const),
        pl.BlockSpec((OCp, 1), const),
    ]

    # zero-pad spatially (k//2) and pad channels to Cp
    xpad = jnp.pad(x.astype(jnp.float32),
                   ((0, 0), (0, Cp - C), (p, p), (p, p)))
    Hp, Wp = H + 2 * p, W + 2 * p

    if s == 1:
        # Fused path: no im2col in HBM.  Virtual output grid of h rows x
        # Wp_pad columns (row stride padded to a lane multiple so the window
        # DMA start and di*Wp_pad tap offsets are lane-aligned); only the
        # first w columns of each row are kept.
        Wp_pad = _round_up(Wp, 128)
        Pv = h * Wp_pad
        tile = _pick_tile(Pv, k, Wp_pad, Cp, OCp, budget)
        slab_w = _round_up(tile + (k - 1) * Wp_pad + (k - 1), 128)
        Pp = _round_up(Pv, tile)
        L = Pp + (slab_w - tile)

        xflat = jnp.pad(xpad, ((0, 0), (0, 0), (0, 0), (0, Wp_pad - Wp)))
        xflat = xflat.reshape(B, Cp, Hp * Wp_pad)
        xflat = jnp.pad(xflat, ((0, 0), (0, 0), (0, L - Hp * Wp_pad)))

        # channel bands for the windowed DMA (second band overlaps compute)
        nc = Cp // CSUB
        if nc >= 2:
            nca = (nc + 1) // 2
            bands = ((0, nca * CSUB), (nca * CSUB, (nc - nca) * CSUB))
        else:
            bands = ((0, Cp),)

        kern = functools.partial(_rfa_fused_kernel, k=k, wp_pad=Wp_pad,
                                 tile=tile, slab_w=slab_w, cp=Cp, bands=bands)
        out = pl.pallas_call(
            kern,
            out_shape=jax.ShapeDtypeStruct((B, OCp, Pp), jnp.float32),
            grid=(B, Pp // tile),
            in_specs=[pl.BlockSpec(memory_space=pl.ANY)] + param_specs,
            out_specs=pl.BlockSpec((1, OCp, tile), lambda bb, tt: (bb, 0, tt)),
            scratch_shapes=[
                pltpu.VMEM((Cp, slab_w), jnp.float32),
                pltpu.SemaphoreType.DMA((len(bands),)),
                pltpu.VMEM((K2 * Cp, tile), jnp.float32),
            ],
            compiler_params=cparams,
        )(xflat, w1, wfs, b1, w2s, b2)
        out = out[:, :OC, :h * Wp_pad].reshape(B, OC, h, Wp_pad)[:, :, :, :w]
        return out

    # ---- general-stride fallback -------------------------------------------
    # TODO(synk): gather the K2 strided taps in-kernel instead of this
    # wrapper-side K2x im2col copy.
    P = h * w
    tile = _pick_tile(P, k, 128, Cp, OCp, budget)
    Pp = _round_up(P, tile)
    cols = [xpad[:, :, di:di + s * (h - 1) + 1:s, dj:dj + s * (w - 1) + 1:s]
            for di in range(k) for dj in range(k)]
    xt = jnp.stack(cols, axis=1).reshape(B, K2, Cp, P)
    xt = jnp.pad(xt, ((0, 0), (0, 0), (0, 0), (0, Pp - P)))

    kern = functools.partial(_rfa_patches_kernel, k2=K2, cp=Cp)
    out = pl.pallas_call(
        kern,
        out_shape=jax.ShapeDtypeStruct((B, OCp, Pp), jnp.float32),
        grid=(B, Pp // tile),
        in_specs=[pl.BlockSpec((1, K2, Cp, tile), lambda bb, tt: (bb, 0, 0, tt))]
                 + param_specs,
        out_specs=pl.BlockSpec((1, OCp, tile), lambda bb, tt: (bb, 0, tt)),
        scratch_shapes=[pltpu.VMEM((K2 * Cp, tile), jnp.float32)],
        compiler_params=cparams,
    )(xt, w1, wfs, b1, w2s, b2)
    return out[:, :OC, :P].reshape(B, OC, h, w)


def make_params(key, C, OC, k):
    """Deterministic synthetic parameters (BatchNorm folded, eval mode)."""
    K2 = k * k
    eps = 1e-5
    ks = jax.random.split(key, 12)
    w1 = 0.2 * jax.random.normal(ks[0], (C, K2), jnp.float32)
    wf = 0.2 * jax.random.normal(ks[1], (C, K2, K2), jnp.float32)

    g1 = 1.0 + 0.1 * jax.random.normal(ks[2], (C * K2,), jnp.float32)
    be1 = 0.1 * jax.random.normal(ks[3], (C * K2,), jnp.float32)
    mu1 = 0.05 * jax.random.normal(ks[4], (C * K2,), jnp.float32)
    var1 = 0.5 + jax.random.uniform(ks[5], (C * K2,), jnp.float32)
    s1 = (g1 / jnp.sqrt(var1 + eps)).reshape(C, K2)
    b1 = (be1 - mu1 * g1 / jnp.sqrt(var1 + eps)).reshape(C, K2)

    w2conv = 0.2 * jax.random.normal(ks[6], (OC, C, k, k), jnp.float32)
    g2 = 1.0 + 0.1 * jax.random.normal(ks[7], (OC,), jnp.float32)
    be2 = 0.1 * jax.random.normal(ks[8], (OC,), jnp.float32)
    mu2 = 0.05 * jax.random.normal(ks[9], (OC,), jnp.float32)
    var2 = 0.5 + jax.random.uniform(ks[10], (OC,), jnp.float32)
    s2 = (g2 / jnp.sqrt(var2 + eps)).reshape(OC, 1)
    b2 = (be2 - mu2 * g2 / jnp.sqrt(var2 + eps)).reshape(OC, 1)

    return {"w1": w1, "wf": wf, "s1": s1, "b1": b1,
            "w2conv": w2conv, "s2": s2, "b2": b2}


def rfaconv_ref(x, params, k, s):
    """Pure-JAX/XLA reference mirroring the PyTorch forward (eval-mode BN)."""
    B, C, H, W = x.shape
    p = k // 2
    K2 = k * k
    dn = ("NCHW", "OIHW", "NCHW")
    pooled = lax.reduce_window(x, 0.0, lax.add, (1, 1, k, k), (1, 1, s, s),
                               [(0, 0), (0, 0), (p, p), (p, p)]) / float(K2)
    w1 = params["w1"].reshape(C * K2, 1, 1, 1)
    wraw = lax.conv_general_dilated(pooled, w1, (1, 1), "VALID",
                                    dimension_numbers=dn, feature_group_count=C)
    h, w = wraw.shape[2:]
    weighted = jax.nn.softmax(wraw.reshape(B, C, K2, h, w), axis=2)
    wf = params["wf"].reshape(C * K2, 1, k, k)
    fraw = lax.conv_general_dilated(x, wf, (s, s), [(p, p), (p, p)],
                                    dimension_numbers=dn, feature_group_count=C)
    feat = jnp.maximum(fraw * params["s1"].reshape(1, -1, 1, 1)
                       + params["b1"].reshape(1, -1, 1, 1), 0.0)
    wd = feat.reshape(B, C, K2, h, w) * weighted
    # rearrange 'b c (n1 n2) h w -> b c (h n1) (w n2)'
    conv_data = wd.reshape(B, C, k, k, h, w).transpose(0, 1, 4, 2, 5, 3)
    conv_data = conv_data.reshape(B, C, h * k, w * k)
    out = lax.conv_general_dilated(conv_data, params["w2conv"], (k, k), "VALID",
                                   dimension_numbers=dn)
    out = jnp.maximum(out * params["s2"].reshape(1, -1, 1, 1)
                      + params["b2"].reshape(1, -1, 1, 1), 0.0)
    return out


if __name__ == "__main__":
    B, C, H, W = 2, 4, 16, 16
    OC, K, S = 8, 3, 1

    key = jax.random.PRNGKey(0)
    kx, kp = jax.random.split(key)
    x = jax.random.normal(kx, (B, C, H, W), jnp.float32)
    params = make_params(kp, C, OC, K)

    fn = jax.jit(functools.partial(rfaconv_pallas, kernel_size=K, stride=S))
    out = jax.block_until_ready(fn(x, params))

    ref = rfaconv_ref(x, params, K, S)
    assert out.shape == ref.shape, (out.shape, ref.shape)
    err = float(jnp.max(jnp.abs(out - ref)))
    assert jnp.allclose(out, ref, rtol=1e-4, atol=1e-4), err

    print("KERNEL_OK")
</pallas_src>

<mosaic_0001>
module attributes {stable_mosaic.version = 11 : i64} {
  func.func @_rfa_fused_kernel(%arg0: i32, %arg1: i32, %arg2: memref<2x8x2432xf32, #tpu.memory_space<any>>, %arg3: memref<8x9xf32, #tpu.memory_space<vmem>>, %arg4: memref<8x81xf32, #tpu.memory_space<vmem>>, %arg5: memref<8x9xf32, #tpu.memory_space<vmem>>, %arg6: memref<8x72xf32, #tpu.memory_space<vmem>>, %arg7: memref<8x1xf32, #tpu.memory_space<vmem>>, %arg8: memref<1x8x1024xf32, #tpu.memory_space<vmem>>, %arg9: memref<8x1408xf32, #tpu.memory_space<vmem>>, %arg10: memref<1x!tpu.dma_semaphore, #tpu.memory_space<semaphore_mem>>, %arg11: memref<72x1024xf32, #tpu.memory_space<vmem>>) attributes {dimension_semantics = [#tpu.dimension_semantics<parallel>, #tpu.dimension_semantics<parallel>], iteration_bounds = array<i64: 2, 2>, scalar_prefetch = 0 : i64, scratch_operands = 3 : i64, tpu.core_type = #tpu.core_type<tc>, window_params = [{}, {pipeline_mode = #tpu.pipeline_mode<synchronous>, transform_indices = @transform_1, window_bounds = array<i64: 8, 9>}, {pipeline_mode = #tpu.pipeline_mode<synchronous>, transform_indices = @transform_2, window_bounds = array<i64: 8, 81>}, {pipeline_mode = #tpu.pipeline_mode<synchronous>, transform_indices = @transform_3, window_bounds = array<i64: 8, 9>}, {pipeline_mode = #tpu.pipeline_mode<synchronous>, transform_indices = @transform_4, window_bounds = array<i64: 8, 72>}, {pipeline_mode = #tpu.pipeline_mode<synchronous>, transform_indices = @transform_5, window_bounds = array<i64: 8, 1>}, {transform_indices = @transform_6, window_bounds = array<i64: 1, 8, 1024>}]} {
    %c1024_i32 = arith.constant 1024 : i32
    %0 = arith.muli %arg1, %c1024_i32 : i32
    %1 = tpu.assume_multiple %0, 1024 : i32
    %c0_i32 = arith.constant 0 : i32
    %c0_i32_0 = arith.constant 0 : i32
    %2 = tpu.memref_slice %arg2[%arg0, %c0_i32_0, %1] : memref<2x8x2432xf32, #tpu.memory_space<any>> -> memref<1x8x1408xf32, #tpu.memory_space<any>>
    %3 = tpu.memref_squeeze %2 : memref<1x8x1408xf32, #tpu.memory_space<any>> -> memref<8x1408xf32, #tpu.memory_space<any>>
    %c0_i32_1 = arith.constant 0 : i32
    %c0_i32_2 = arith.constant 0 : i32
    %4 = tpu.memref_slice %arg9[%c0_i32_1, %c0_i32_2] : memref<8x1408xf32, #tpu.memory_space<vmem>> -> memref<8x1408xf32, #tpu.memory_space<vmem>>
    %5 = tpu.memref_slice %arg10[%c0_i32] : memref<1x!tpu.dma_semaphore, #tpu.memory_space<semaphore_mem>> -> memref<1x!tpu.dma_semaphore, #tpu.memory_space<semaphore_mem>>
    %6 = tpu.memref_squeeze %5 : memref<1x!tpu.dma_semaphore, #tpu.memory_space<semaphore_mem>> -> memref<!tpu.dma_semaphore, #tpu.memory_space<semaphore_mem>>
    tpu.enqueue_dma source(%3 : memref<8x1408xf32, #tpu.memory_space<any>>) target(%4 : memref<8x1408xf32, #tpu.memory_space<vmem>>) target_semaphore(%6 : memref<!tpu.dma_semaphore, #tpu.memory_space<semaphore_mem>>)
    %c0_i32_3 = arith.constant 0 : i32
    %c0_i32_4 = arith.constant 0 : i32
    %7 = tpu.memref_slice %arg2[%arg0, %c0_i32_4, %1] : memref<2x8x2432xf32, #tpu.memory_space<any>> -> memref<1x8x1408xf32, #tpu.memory_space<any>>
    %8 = tpu.memref_squeeze %7 : memref<1x8x1408xf32, #tpu.memory_space<any>> -> memref<8x1408xf32, #tpu.memory_space<any>>
    %c0_i32_5 = arith.constant 0 : i32
    %c0_i32_6 = arith.constant 0 : i32
    %9 = tpu.memref_slice %arg9[%c0_i32_5, %c0_i32_6] : memref<8x1408xf32, #tpu.memory_space<vmem>> -> memref<8x1408xf32, #tpu.memory_space<vmem>>
    %10 = tpu.memref_slice %arg10[%c0_i32_3] : memref<1x!tpu.dma_semaphore, #tpu.memory_space<semaphore_mem>> -> memref<1x!tpu.dma_semaphore, #tpu.memory_space<semaphore_mem>>
    %11 = tpu.memref_squeeze %10 : memref<1x!tpu.dma_semaphore, #tpu.memory_space<semaphore_mem>> -> memref<!tpu.dma_semaphore, #tpu.memory_space<semaphore_mem>>
    tpu.wait_dma2 semaphore(%11 : memref<!tpu.dma_semaphore, #tpu.memory_space<semaphore_mem>>) src(%8 : memref<8x1408xf32, #tpu.memory_space<any>>) dst(%9 : memref<8x1408xf32, #tpu.memory_space<vmem>>)
    %c0_i32_7 = arith.constant 0 : i32
    %c8_i32 = arith.constant 8 : i32
    %12 = arith.muli %c0_i32_7, %c8_i32 : i32
    %c0_i32_8 = arith.constant 0 : i32
    %13 = arith.addi %c0_i32_8, %12 : i32
    %14 = tpu.assume_multiple %13, 8 : i32
    %15 = arith.index_cast %14 : i32 to index
    %c0 = arith.constant 0 : index
    %16 = vector.load %arg9[%15, %c0] : memref<8x1408xf32, #tpu.memory_space<vmem>>, vector<8x1408xf32>
    %17 = vector.extract_strided_slice %16 {offsets = [0, 0], sizes = [8, 1024], strides = [1, 1]} : vector<8x1408xf32> to vector<8x1024xf32>
    %18 = vector.extract_strided_slice %16 {offsets = [0, 1], sizes = [8, 1024], strides = [1, 1]} : vector<8x1408xf32> to vector<8x1024xf32>
    %19 = vector.extract_strided_slice %16 {offsets = [0, 2], sizes = [8, 1024], strides = [1, 1]} : vector<8x1408xf32> to vector<8x1024xf32>
    %20 = vector.extract_strided_slice %16 {offsets = [0, 128], sizes = [8, 1024], strides = [1, 1]} : vector<8x1408xf32> to vector<8x1024xf32>
    %21 = vector.extract_strided_slice %16 {offsets = [0, 129], sizes = [8, 1024], strides = [1, 1]} : vector<8x1408xf32> to vector<8x1024xf32>
    %22 = vector.extract_strided_slice %16 {offsets = [0, 130], sizes = [8, 1024], strides = [1, 1]} : vector<8x1408xf32> to vector<8x1024xf32>
    %23 = vector.extract_strided_slice %16 {offsets = [0, 256], sizes = [8, 1024], strides = [1, 1]} : vector<8x1408xf32> to vector<8x1024xf32>
    %24 = vector.extract_strided_slice %16 {offsets = [0, 257], sizes = [8, 1024], strides = [1, 1]} : vector<8x1408xf32> to vector<8x1024xf32>
    %25 = vector.extract_strided_slice %16 {offsets = [0, 258], sizes = [8, 1024], strides = [1, 1]} : vector<8x1408xf32> to vector<8x1024xf32>
    %26 = arith.index_cast %14 : i32 to index
    %c0_9 = arith.constant 0 : index
    %27 = vector.load %arg3[%26, %c0_9] : memref<8x9xf32, #tpu.memory_space<vmem>>, vector<8x9xf32>
    %28 = arith.index_cast %14 : i32 to index
    %c0_10 = arith.constant 0 : index
    %29 = vector.load %arg4[%28, %c0_10] : memref<8x81xf32, #tpu.memory_space<vmem>>, vector<8x81xf32>
    %30 = arith.index_cast %14 : i32 to index
    %c0_11 = arith.constant 0 : index
    %31 = vector.load %arg5[%30, %c0_11] : memref<8x9xf32, #tpu.memory_space<vmem>>, vector<8x9xf32>
    %32 = arith.addf %17, %18 : vector<8x1024xf32>
    %33 = arith.addf %32, %19 : vector<8x1024xf32>
    %34 = arith.addf %33, %20 : vector<8x1024xf32>
    %35 = arith.addf %34, %21 : vector<8x1024xf32>
    %36 = arith.addf %35, %22 : vector<8x1024xf32>
    %37 = arith.addf %36, %23 : vector<8x1024xf32>
    %38 = arith.addf %37, %24 : vector<8x1024xf32>
    %39 = arith.addf %38, %25 : vector<8x1024xf32>
    %cst = arith.constant 0.111111112 : f32
    %40 = vector.broadcast %cst : f32 to vector<8x1024xf32>
    %41 = arith.mulf %39, %40 : vector<8x1024xf32>
    %42 = vector.extract_strided_slice %27 {offsets = [0, 0], sizes = [8, 1], strides = [1, 1]} : vector<8x9xf32> to vector<8x1xf32>
    %43 = vector.broadcast %42 : vector<8x1xf32> to vector<8x1024xf32>
    %44 = arith.mulf %43, %41 : vector<8x1024xf32>
    %45 = vector.extract_strided_slice %27 {offsets = [0, 1], sizes = [8, 1], strides = [1, 1]} : vector<8x9xf32> to vector<8x1xf32>
    %46 = vector.broadcast %45 : vector<8x1xf32> to vector<8x1024xf32>
    %47 = arith.mulf %46, %41 : vector<8x1024xf32>
    %48 = arith.maximumf %44, %47 : vector<8x1024xf32>
    %49 = vector.extract_strided_slice %27 {offsets = [0, 2], sizes = [8, 1], strides = [1, 1]} : vector<8x9xf32> to vector<8x1xf32>
    %50 = vector.broadcast %49 : vector<8x1xf32> to vector<8x1024xf32>
    %51 = arith.mulf %50, %41 : vector<8x1024xf32>
    %52 = arith.maximumf %48, %51 : vector<8x1024xf32>
    %53 = vector.extract_strided_slice %27 {offsets = [0, 3], sizes = [8, 1], strides = [1, 1]} : vector<8x9xf32> to vector<8x1xf32>
    %54 = vector.broadcast %53 : vector<8x1xf32> to vector<8x1024xf32>
    %55 = arith.mulf %54, %41 : vector<8x1024xf32>
    %56 = arith.maximumf %52, %55 : vector<8x1024xf32>
    %57 = vector.extract_strided_slice %27 {offsets = [0, 4], sizes = [8, 1], strides = [1, 1]} : vector<8x9xf32> to vector<8x1xf32>
    %58 = vector.broadcast %57 : vector<8x1xf32> to vector<8x1024xf32>
    %59 = arith.mulf %58, %41 : vector<8x1024xf32>
    %60 = arith.maximumf %56, %59 : vector<8x1024xf32>
    %61 = vector.extract_strided_slice %27 {offsets = [0, 5], sizes = [8, 1], strides = [1, 1]} : vector<8x9xf32> to vector<8x1xf32>
    %62 = vector.broadcast %61 : vector<8x1xf32> to vector<8x1024xf32>
    %63 = arith.mulf %62, %41 : vector<8x1024xf32>
    %64 = arith.maximumf %60, %63 : vector<8x1024xf32>
    %65 = vector.extract_strided_slice %27 {offsets = [0, 6], sizes = [8, 1], strides = [1, 1]} : vector<8x9xf32> to vector<8x1xf32>
    %66 = vector.broadcast %65 : vector<8x1xf32> to vector<8x1024xf32>
    %67 = arith.mulf %66, %41 : vector<8x1024xf32>
    %68 = arith.maximumf %64, %67 : vector<8x1024xf32>
    %69 = vector.extract_strided_slice %27 {offsets = [0, 7], sizes = [8, 1], strides = [1, 1]} : vector<8x9xf32> to vector<8x1xf32>
    %70 = vector.broadcast %69 : vector<8x1xf32> to vector<8x1024xf32>
    %71 = arith.mulf %70, %41 : vector<8x1024xf32>
    %72 = arith.maximumf %68, %71 : vector<8x1024xf32>
    %73 = vector.extract_strided_slice %27 {offsets = [0, 8], sizes = [8, 1], strides = [1, 1]} : vector<8x9xf32> to vector<8x1xf32>
    %74 = vector.broadcast %73 : vector<8x1xf32> to vector<8x1024xf32>
    %75 = arith.mulf %74, %41 : vector<8x1024xf32>
    %76 = arith.maximumf %72, %75 : vector<8x1024xf32>
    %77 = vector.extract_strided_slice %27 {offsets = [0, 0], sizes = [8, 1], strides = [1, 1]} : vector<8x9xf32> to vector<8x1xf32>
    %78 = vector.broadcast %77 : vector<8x1xf32> to vector<8x1024xf32>
    %79 = arith.mulf %78, %41 : vector<8x1024xf32>
    %80 = arith.subf %79, %76 : vector<8x1024xf32>
    %81 = math.exp %80 : vector<8x1024xf32>
    %82 = vector.extract_strided_slice %27 {offsets = [0, 1], sizes = [8, 1], strides = [1, 1]} : vector<8x9xf32> to vector<8x1xf32>
    %83 = vector.broadcast %82 : vector<8x1xf32> to vector<8x1024xf32>
    %84 = arith.mulf %83, %41 : vector<8x1024xf32>
    %85 = arith.subf %84, %76 : vector<8x1024xf32>
    %86 = math.exp %85 : vector<8x1024xf32>
    %87 = arith.addf %81, %86 : vector<8x1024xf32>
    %88 = vector.extract_strided_slice %27 {offsets = [0, 2], sizes = [8, 1], strides = [1, 1]} : vector<8x9xf32> to vector<8x1xf32>
    %89 = vector.broadcast %88 : vector<8x1xf32> to vector<8x1024xf32>
    %90 = arith.mulf %89, %41 : vector<8x1024xf32>
    %91 = arith.subf %90, %76 : vector<8x1024xf32>
    %92 = math.exp %91 : vector<8x1024xf32>
    %93 = arith.addf %87, %92 : vector<8x1024xf32>
    %94 = vector.extract_strided_slice %27 {offsets = [0, 3], sizes = [8, 1], strides = [1, 1]} : vector<8x9xf32> to vector<8x1xf32>
    %95 = vector.broadcast %94 : vector<8x1xf32> to vector<8x1024xf32>
    %96 = arith.mulf %95, %41 : vector<8x1024xf32>
    %97 = arith.subf %96, %76 : vector<8x1024xf32>
    %98 = math.exp %97 : vector<8x1024xf32>
    %99 = arith.addf %93, %98 : vector<8x1024xf32>
    %100 = vector.extract_strided_slice %27 {offsets = [0, 4], sizes = [8, 1], strides = [1, 1]} : vector<8x9xf32> to vector<8x1xf32>
    %101 = vector.broadcast %100 : vector<8x1xf32> to vector<8x1024xf32>
    %102 = arith.mulf %101, %41 : vector<8x1024xf32>
    %103 = arith.subf %102, %76 : vector<8x1024xf32>
    %104 = math.exp %103 : vector<8x1024xf32>
    %105 = arith.addf %99, %104 : vector<8x1024xf32>
    %106 = vector.extract_strided_slice %27 {offsets = [0, 5], sizes = [8, 1], strides = [1, 1]} : vector<8x9xf32> to vector<8x1xf32>
    %107 = vector.broadcast %106 : vector<8x1xf32> to vector<8x1024xf32>
    %108 = arith.mulf %107, %41 : vector<8x1024xf32>
    %109 = arith.subf %108, %76 : vector<8x1024xf32>
    %110 = math.exp %109 : vector<8x1024xf32>
    %111 = arith.addf %105, %110 : vector<8x1024xf32>
    %112 = vector.extract_strided_slice %27 {offsets = [0, 6], sizes = [8, 1], strides = [1, 1]} : vector<8x9xf32> to vector<8x1xf32>
    %113 = vector.broadcast %112 : vector<8x1xf32> to vector<8x1024xf32>
    %114 = arith.mulf %113, %41 : vector<8x1024xf32>
    %115 = arith.subf %114, %76 : vector<8x1024xf32>
    %116 = math.exp %115 : vector<8x1024xf32>
    %117 = arith.addf %111, %116 : vector<8x1024xf32>
    %118 = vector.extract_strided_slice %27 {offsets = [0, 7], sizes = [8, 1], strides = [1, 1]} : vector<8x9xf32> to vector<8x1xf32>
    %119 = vector.broadcast %118 : vector<8x1xf32> to vector<8x1024xf32>
    %120 = arith.mulf %119, %41 : vector<8x1024xf32>
    %121 = arith.subf %120, %76 : vector<8x1024xf32>
    %122 = math.exp %121 : vector<8x1024xf32>
    %123 = arith.addf %117, %122 : vector<8x1024xf32>
    %124 = vector.extract_strided_slice %27 {offsets = [0, 8], sizes = [8, 1], strides = [1, 1]} : vector<8x9xf32> to vector<8x1xf32>
    %125 = vector.broadcast %124 : vector<8x1xf32> to vector<8x1024xf32>
    %126 = arith.mulf %125, %41 : vector<8x1024xf32>
    %127 = arith.subf %126, %76 : vector<8x1024xf32>
    %128 = math.exp %127 : vector<8x1024xf32>
    %129 = arith.addf %123, %128 : vector<8x1024xf32>
    %130 = tpu.reciprocal %129 {approx = true} : vector<8x1024xf32> -> vector<8x1024xf32>
    %131 = arith.mulf %129, %130 : vector<8x1024xf32>
    %cst_12 = arith.constant 2.000000e+00 : f32
    %132 = vector.broadcast %cst_12 : f32 to vector<8x1024xf32>
    %133 = arith.subf %132, %131 : vector<8x1024xf32>
    %134 = arith.mulf %130, %133 : vector<8x1024xf32>
    %135 = vector.extract_strided_slice %27 {offsets = [0, 0], sizes = [8, 1], strides = [1, 1]} : vector<8x9xf32> to vector<8x1xf32>
    %136 = vector.broadcast %135 : vector<8x1xf32> to vector<8x1024xf32>
    %137 = arith.mulf %136, %41 : vector<8x1024xf32>
    %138 = arith.subf %137, %76 : vector<8x1024xf32>
    %139 = math.exp %138 : vector<8x1024xf32>
    %140 = arith.mulf %139, %134 : vector<8x1024xf32>
    %141 = vector.extract_strided_slice %29 {offsets = [0, 0], sizes = [8, 1], strides = [1, 1]} : vector<8x81xf32> to vector<8x1xf32>
    %142 = vector.broadcast %141 : vector<8x1xf32> to vector<8x1024xf32>
    %143 = arith.mulf %142, %17 : vector<8x1024xf32>
    %144 = vector.extract_strided_slice %29 {offsets = [0, 1], sizes = [8, 1], strides = [1, 1]} : vector<8x81xf32> to vector<8x1xf32>
    %145 = vector.broadcast %144 : vector<8x1xf32> to vector<8x1024xf32>
    %146 = arith.mulf %145, %18 : vector<8x1024xf32>
    %147 = arith.addf %143, %146 : vector<8x1024xf32>
    %148 = vector.extract_strided_slice %29 {offsets = [0, 2], sizes = [8, 1], strides = [1, 1]} : vector<8x81xf32> to vector<8x1xf32>
    %149 = vector.broadcast %148 : vector<8x1xf32> to vector<8x1024xf32>
    %150 = arith.mulf %149, %19 : vector<8x1024xf32>
    %151 = arith.addf %147, %150 : vector<8x1024xf32>
    %152 = vector.extract_strided_slice %29 {offsets = [0, 3], sizes = [8, 1], strides = [1, 1]} : vector<8x81xf32> to vector<8x1xf32>
    %153 = vector.broadcast %152 : vector<8x1xf32> to vector<8x1024xf32>
    %154 = arith.mulf %153, %20 : vector<8x1024xf32>
    %155 = arith.addf %151, %154 : vector<8x1024xf32>
    %156 = vector.extract_strided_slice %29 {offsets = [0, 4], sizes = [8, 1], strides = [1, 1]} : vector<8x81xf32> to vector<8x1xf32>
    %157 = vector.broadcast %156 : vector<8x1xf32> to vector<8x1024xf32>
    %158 = arith.mulf %157, %21 : vector<8x1024xf32>
    %159 = arith.addf %155, %158 : vector<8x1024xf32>
    %160 = vector.extract_strided_slice %29 {offsets = [0, 5], sizes = [8, 1], strides = [1, 1]} : vector<8x81xf32> to vector<8x1xf32>
    %161 = vector.broadcast %160 : vector<8x1xf32> to vector<8x1024xf32>
    %162 = arith.mulf %161, %22 : vector<8x1024xf32>
    %163 = arith.addf %159, %162 : vector<8x1024xf32>
    %164 = vector.extract_strided_slice %29 {offsets = [0, 6], sizes = [8, 1], strides = [1, 1]} : vector<8x81xf32> to vector<8x1xf32>
    %165 = vector.broadcast %164 : vector<8x1xf32> to vector<8x1024xf32>
    %166 = arith.mulf %165, %23 : vector<8x1024xf32>
    %167 = arith.addf %163, %166 : vector<8x1024xf32>
    %168 = vector.extract_strided_slice %29 {offsets = [0, 7], sizes = [8, 1], strides = [1, 1]} : vector<8x81xf32> to vector<8x1xf32>
    %169 = vector.broadcast %168 : vector<8x1xf32> to vector<8x1024xf32>
    %170 = arith.mulf %169, %24 : vector<8x1024xf32>
    %171 = arith.addf %167, %170 : vector<8x1024xf32>
    %172 = vector.extract_strided_slice %29 {offsets = [0, 8], sizes = [8, 1], strides = [1, 1]} : vector<8x81xf32> to vector<8x1xf32>
    %173 = vector.broadcast %172 : vector<8x1xf32> to vector<8x1024xf32>
    %174 = arith.mulf %173, %25 : vector<8x1024xf32>
    %175 = arith.addf %171, %174 : vector<8x1024xf32>
    %176 = vector.extract_strided_slice %31 {offsets = [0, 0], sizes = [8, 1], strides = [1, 1]} : vector<8x9xf32> to vector<8x1xf32>
    %177 = vector.broadcast %176 : vector<8x1xf32> to vector<8x1024xf32>
    %178 = arith.addf %175, %177 : vector<8x1024xf32>
    %cst_13 = arith.constant 0.000000e+00 : f32
    %179 = vector.broadcast %cst_13 : f32 to vector<8x1024xf32>
    %180 = arith.maximumf %178, %179 : vector<8x1024xf32>
    %c0_i32_14 = arith.constant 0 : i32
    %181 = arith.addi %c0_i32_14, %14 : i32
    %182 = tpu.assume_multiple %181, 8 : i32
    %183 = arith.mulf %180, %140 : vector<8x1024xf32>
    %184 = arith.index_cast %182 : i32 to index
    %c0_15 = arith.constant 0 : index
    %185 = vector.load %arg11[%184, %c0_15] : memref<72x1024xf32, #tpu.memory_space<vmem>>, vector<8x1024xf32>
    tpu.vector_store %arg11[%184, %c0_15], %183 {strides = array<i32>} : memref<72x1024xf32, #tpu.memory_space<vmem>>, vector<8x1024xf32>,
    %186 = vector.extract_strided_slice %27 {offsets = [0, 1], sizes = [8, 1], strides = [1, 1]} : vector<8x9xf32> to vector<8x1xf32>
    %187 = vector.broadcast %186 : vector<8x1xf32> to vector<8x1024xf32>
    %188 = arith.mulf %187, %41 : vector<8x1024xf32>
    %189 = arith.subf %188, %76 : vector<8x1024xf32>
    %190 = math.exp %189 : vector<8x1024xf32>
    %191 = arith.mulf %190, %134 : vector<8x1024xf32>
    %192 = vector.extract_strided_slice %29 {offsets = [0, 9], sizes = [8, 1], strides = [1, 1]} : vector<8x81xf32> to vector<8x1xf32>
    %193 = vector.broadcast %192 : vector<8x1xf32> to vector<8x1024xf32>
    %194 = arith.mulf %193, %17 : vector<8x1024xf32>
    %195 = vector.extract_strided_slice %29 {offsets = [0, 10], sizes = [8, 1], strides = [1, 1]} : vector<8x81xf32> to vector<8x1xf32>
    %196 = vector.broadcast %195 : vector<8x1xf32> to vector<8x1024xf32>
    %197 = arith.mulf %196, %18 : vector<8x1024xf32>
    %198 = arith.addf %194, %197 : vector<8x1024xf32>
    %199 = vector.extract_strided_slice %29 {offsets = [0, 11], sizes = [8, 1], strides = [1, 1]} : vector<8x81xf32> to vector<8x1xf32>
    %200 = vector.broadcast %199 : vector<8x1xf32> to vector<8x1024xf32>
    %201 = arith.mulf %200, %19 : vector<8x1024xf32>
    %202 = arith.addf %198, %201 : vector<8x1024xf32>
    %203 = vector.extract_strided_slice %29 {offsets = [0, 12], sizes = [8, 1], strides = [1, 1]} : vector<8x81xf32> to vector<8x1xf32>
    %204 = vector.broadcast %203 : vector<8x1xf32> to vector<8x1024xf32>
    %205 = arith.mulf %204, %20 : vector<8x1024xf32>
    %206 = arith.addf %202, %205 : vector<8x1024xf32>
    %207 = vector.extract_strided_slice %29 {offsets = [0, 13], sizes = [8, 1], strides = [1, 1]} : vector<8x81xf32> to vector<8x1xf32>
    %208 = vector.broadcast %207 : vector<8x1xf32> to vector<8x1024xf32>
    %209 = arith.mulf %208, %21 : vector<8x1024xf32>
    %210 = arith.addf %206, %209 : vector<8x1024xf32>
    %211 = vector.extract_strided_slice %29 {offsets = [0, 14], sizes = [8, 1], strides = [1, 1]} : vector<8x81xf32> to vector<8x1xf32>
    %212 = vector.broadcast %211 : vector<8x1xf32> to vector<8x1024xf32>
    %213 = arith.mulf %212, %22 : vector<8x1024xf32>
    %214 = arith.addf %210, %213 : vector<8x1024xf32>
    %215 = vector.extract_strided_slice %29 {offsets = [0, 15], sizes = [8, 1], strides = [1, 1]} : vector<8x81xf32> to vector<8x1xf32>
    %216 = vector.broadcast %215 : vector<8x1xf32> to vector<8x1024xf32>
    %217 = arith.mulf %216, %23 : vector<8x1024xf32>
    %218 = arith.addf %214, %217 : vector<8x1024xf32>
    %219 = vector.extract_strided_slice %29 {offsets = [0, 16], sizes = [8, 1], strides = [1, 1]} : vector<8x81xf32> to vector<8x1xf32>
    %220 = vector.broadcast %219 : vector<8x1xf32> to vector<8x1024xf32>
    %221 = arith.mulf %220, %24 : vector<8x1024xf32>
    %222 = arith.addf %218, %221 : vector<8x1024xf32>
    %223 = vector.extract_strided_slice %29 {offsets = [0, 17], sizes = [8, 1], strides = [1, 1]} : vector<8x81xf32> to vector<8x1xf32>
    %224 = vector.broadcast %223 : vector<8x1xf32> to vector<8x1024xf32>
    %225 = arith.mulf %224, %25 : vector<8x1024xf32>
    %226 = arith.addf %222, %225 : vector<8x1024xf32>
    %227 = vector.extract_strided_slice %31 {offsets = [0, 1], sizes = [8, 1], strides = [1, 1]} : vector<8x9xf32> to vector<8x1xf32>
    %228 = vector.broadcast %227 : vector<8x1xf32> to vector<8x1024xf32>
    %229 = arith.addf %226, %228 : vector<8x1024xf32>
    %cst_16 = arith.constant 0.000000e+00 : f32
    %230 = vector.broadcast %cst_16 : f32 to vector<8x1024xf32>
    %231 = arith.maximumf %229, %230 : vector<8x1024xf32>
    %c8_i32_17 = arith.constant 8 : i32
    %232 = arith.addi %c8_i32_17, %14 : i32
    %233 = tpu.assume_multiple %232, 8 : i32
    %234 = arith.mulf %231, %191 : vector<8x1024xf32>
    %235 = arith.index_cast %233 : i32 to index
    %c0_18 = arith.constant 0 : index
    %236 = vector.load %arg11[%235, %c0_18] : memref<72x1024xf32, #tpu.memory_space<vmem>>, vector<8x1024xf32>
    tpu.vector_store %arg11[%235, %c0_18], %234 {strides = array<i32>} : memref<72x1024xf32, #tpu.memory_space<vmem>>, vector<8x1024xf32>,
    %237 = vector.extract_strided_slice %27 {offsets = [0, 2], sizes = [8, 1], strides = [1, 1]} : vector<8x9xf32> to vector<8x1xf32>
    %238 = vector.broadcast %237 : vector<8x1xf32> to vector<8x1024xf32>
    %239 = arith.mulf %238, %41 : vector<8x1024xf32>
    %240 = arith.subf %239, %76 : vector<8x1024xf32>
    %241 = math.exp %240 : vector<8x1024xf32>
    %242 = arith.mulf %241, %134 : vector<8x1024xf32>
    %243 = vector.extract_strided_slice %29 {offsets = [0, 18], sizes = [8, 1], strides = [1, 1]} : vector<8x81xf32> to vector<8x1xf32>
    %244 = vector.broadcast %243 : vector<8x1xf32> to vector<8x1024xf32>
    %245 = arith.mulf %244, %17 : vector<8x1024xf32>
    %246 = vector.extract_strided_slice %29 {offsets = [0, 19], sizes = [8, 1], strides = [1, 1]} : vector<8x81xf32> to vector<8x1xf32>
    %247 = vector.broadcast %246 : vector<8x1xf32> to vector<8x1024xf32>
    %248 = arith.mulf %247, %18 : vector<8x1024xf32>
    %249 = arith.addf %245, %248 : vector<8x1024xf32>
    %250 = vector.extract_strided_slice %29 {offsets = [0, 20], sizes = [8, 1], strides = [1, 1]} : vector<8x81xf32> to vector<8x1xf32>
    %251 = vector.broadcast %250 : vector<8x1xf32> to vector<8x1024xf32>
    %252 = arith.mulf %251, %19 : vector<8x1024xf32>
    %253 = arith.addf %249, %252 : vector<8x1024xf32>
    %254 = vector.extract_strided_slice %29 {offsets = [0, 21], sizes = [8, 1], strides = [1, 1]} : vector<8x81xf32> to vector<8x1xf32>
    %255 = vector.broadcast %254 : vector<8x1xf32> to vector<8x1024xf32>
    %256 = arith.mulf %255, %20 : vector<8x1024xf32>
    %257 = arith.addf %253, %256 : vector<8x1024xf32>
    %258 = vector.extract_strided_slice %29 {offsets = [0, 22], sizes = [8, 1], strides = [1, 1]} : vector<8x81xf32> to vector<8x1xf32>
    %259 = vector.broadcast %258 : vector<8x1xf32> to vector<8x1024xf32>
    %260 = arith.mulf %259, %21 : vector<8x1024xf32>
    %261 = arith.addf %257, %260 : vector<8x1024xf32>
    %262 = vector.extract_strided_slice %29 {offsets = [0, 23], sizes = [8, 1], strides = [1, 1]} : vector<8x81xf32> to vector<8x1xf32>
    %263 = vector.broadcast %262 : vector<8x1xf32> to vector<8x1024xf32>
    %264 = arith.mulf %263, %22 : vector<8x1024xf32>
    %265 = arith.addf %261, %264 : vector<8x1024xf32>
    %266 = vector.extract_strided_slice %29 {offsets = [0, 24], sizes = [8, 1], strides = [1, 1]} : vector<8x81xf32> to vector<8x1xf32>
    %267 = vector.broadcast %266 : vector<8x1xf32> to vector<8x1024xf32>
    %268 = arith.mulf %267, %23 : vector<8x1024xf32>
    %269 = arith.addf %265, %268 : vector<8x1024xf32>
    %270 = vector.extract_strided_slice %29 {offsets = [0, 25], sizes = [8, 1], strides = [1, 1]} : vector<8x81xf32> to vector<8x1xf32>
    %271 = vector.broadcast %270 : vector<8x1xf32> to vector<8x1024xf32>
    %272 = arith.mulf %271, %24 : vector<8x1024xf32>
    %273 = arith.addf %269, %272 : vector<8x1024xf32>
    %274 = vector.extract_strided_slice %29 {offsets = [0, 26], sizes = [8, 1], strides = [1, 1]} : vector<8x81xf32> to vector<8x1xf32>
    %275 = vector.broadcast %274 : vector<8x1xf32> to vector<8x1024xf32>
    %276 = arith.mulf %275, %25 : vector<8x1024xf32>
    %277 = arith.addf %273, %276 : vector<8x1024xf32>
    %278 = vector.extract_strided_slice %31 {offsets = [0, 2], sizes = [8, 1], strides = [1, 1]} : vector<8x9xf32> to vector<8x1xf32>
    %279 = vector.broadcast %278 : vector<8x1xf32> to vector<8x1024xf32>
    %280 = arith.addf %277, %279 : vector<8x1024xf32>
    %cst_19 = arith.constant 0.000000e+00 : f32
    %281 = vector.broadcast %cst_19 : f32 to vector<8x1024xf32>
    %282 = arith.maximumf %280, %281 : vector<8x1024xf32>
    %c16_i32 = arith.constant 16 : i32
    %283 = arith.addi %c16_i32, %14 : i32
    %284 = tpu.assume_multiple %283, 8 : i32
    %285 = arith.mulf %282, %242 : vector<8x1024xf32>
    %286 = arith.index_cast %284 : i32 to index
    %c0_20 = arith.constant 0 : index
    %287 = vector.load %arg11[%286, %c0_20] : memref<72x1024xf32, #tpu.memory_space<vmem>>, vector<8x1024xf32>
    tpu.vector_store %arg11[%286, %c0_20], %285 {strides = array<i32>} : memref<72x1024xf32, #tpu.memory_space<vmem>>, vector<8x1024xf32>,
    %288 = vector.extract_strided_slice %27 {offsets = [0, 3], sizes = [8, 1], strides = [1, 1]} : vector<8x9xf32> to vector<8x1xf32>
    %289 = vector.broadcast %288 : vector<8x1xf32> to vector<8x1024xf32>
    %290 = arith.mulf %289, %41 : vector<8x1024xf32>
    %291 = arith.subf %290, %76 : vector<8x1024xf32>
    %292 = math.exp %291 : vector<8x1024xf32>
    %293 = arith.mulf %292, %134 : vector<8x1024xf32>
    %294 = vector.extract_strided_slice %29 {offsets = [0, 27], sizes = [8, 1], strides = [1, 1]} : vector<8x81xf32> to vector<8x1xf32>
    %295 = vector.broadcast %294 : vector<8x1xf32> to vector<8x1024xf32>
    %296 = arith.mulf %295, %17 : vector<8x1024xf32>
    %297 = vector.extract_strided_slice %29 {offsets = [0, 28], sizes = [8, 1], strides = [1, 1]} : vector<8x81xf32> to vector<8x1xf32>
    %298 = vector.broadcast %297 : vector<8x1xf32> to vector<8x1024xf32>
    %299 = arith.mulf %298, %18 : vector<8x1024xf32>
    %300 = arith.addf %296, %299 : vector<8x1024xf32>
    %301 = vector.extract_strided_slice %29 {offsets = [0, 29], sizes = [8, 1], strides = [1, 1]} : vector<8x81xf32> to vector<8x1xf32>
    %302 = vector.broadcast %301 : vector<8x1xf32> to vector<8x1024xf32>
    %303 = arith.mulf %302, %19 : vector<8x1024xf32>
    %304 = arith.addf %300, %303 : vector<8x1024xf32>
    %305 = vector.extract_strided_slice %29 {offsets = [0, 30], sizes = [8, 1], strides = [1, 1]} : vector<8x81xf32> to vector<8x1xf32>
    %306 = vector.broadcast %305 : vector<8x1xf32> to vector<8x1024xf32>
    %307 = arith.mulf %306, %20 : vector<8x1024xf32>
    %308 = arith.addf %304, %307 : vector<8x1024xf32>
    %309 = vector.extract_strided_slice %29 {offsets = [0, 31], sizes = [8, 1], strides = [1, 1]} : vector<8x81xf32> to vector<8x1xf32>
    %310 = vector.broadcast %309 : vector<8x1xf32> to vector<8x1024xf32>
    %311 = arith.mulf %310, %21 : vector<8x1024xf32>
    %312 = arith.addf %308, %311 : vector<8x1024xf32>
    %313 = vector.extract_strided_slice %29 {offsets = [0, 32], sizes = [8, 1], strides = [1, 1]} : vector<8x81xf32> to vector<8x1xf32>
    %314 = vector.broadcast %313 : vector<8x1xf32> to vector<8x1024xf32>
    %315 = arith.mulf %314, %22 : vector<8x1024xf32>
    %316 = arith.addf %312, %315 : vector<8x1024xf32>
    %317 = vector.extract_strided_slice %29 {offsets = [0, 33], sizes = [8, 1], strides = [1, 1]} : vector<8x81xf32> to vector<8x1xf32>
    %318 = vector.broadcast %317 : vector<8x1xf32> to vector<8x1024xf32>
    %319 = arith.mulf %318, %23 : vector<8x1024xf32>
    %320 = arith.addf %316, %319 : vector<8x1024xf32>
    %321 = vector.extract_strided_slice %29 {offsets = [0, 34], sizes = [8, 1], strides = [1, 1]} : vector<8x81xf32> to vector<8x1xf32>
    %322 = vector.broadcast %321 : vector<8x1xf32> to vector<8x1024xf32>
    %323 = arith.mulf %322, %24 : vector<8x1024xf32>
    %324 = arith.addf %320, %323 : vector<8x1024xf32>
    %325 = vector.extract_strided_slice %29 {offsets = [0, 35], sizes = [8, 1], strides = [1, 1]} : vector<8x81xf32> to vector<8x1xf32>
    %326 = vector.broadcast %325 : vector<8x1xf32> to vector<8x1024xf32>
    %327 = arith.mulf %326, %25 : vector<8x1024xf32>
    %328 = arith.addf %324, %327 : vector<8x1024xf32>
    %329 = vector.extract_strided_slice %31 {offsets = [0, 3], sizes = [8, 1], strides = [1, 1]} : vector<8x9xf32> to vector<8x1xf32>
    %330 = vector.broadcast %329 : vector<8x1xf32> to vector<8x1024xf32>
    %331 = arith.addf %328, %330 : vector<8x1024xf32>
    %cst_21 = arith.constant 0.000000e+00 : f32
    %332 = vector.broadcast %cst_21 : f32 to vector<8x1024xf32>
    %333 = arith.maximumf %331, %332 : vector<8x1024xf32>
    %c24_i32 = arith.constant 24 : i32
    %334 = arith.addi %c24_i32, %14 : i32
    %335 = tpu.assume_multiple %334, 8 : i32
    %336 = arith.mulf %333, %293 : vector<8x1024xf32>
    %337 = arith.index_cast %335 : i32 to index
    %c0_22 = arith.constant 0 : index
    %338 = vector.load %arg11[%337, %c0_22] : memref<72x1024xf32, #tpu.memory_space<vmem>>, vector<8x1024xf32>
    tpu.vector_store %arg11[%337, %c0_22], %336 {strides = array<i32>} : memref<72x1024xf32, #tpu.memory_space<vmem>>, vector<8x1024xf32>,
    %339 = vector.extract_strided_slice %27 {offsets = [0, 4], sizes = [8, 1], strides = [1, 1]} : vector<8x9xf32> to vector<8x1xf32>
    %340 = vector.broadcast %339 : vector<8x1xf32> to vector<8x1024xf32>
    %341 = arith.mulf %340, %41 : vector<8x1024xf32>
    %342 = arith.subf %341, %76 : vector<8x1024xf32>
    %343 = math.exp %342 : vector<8x1024xf32>
    %344 = arith.mulf %343, %134 : vector<8x1024xf32>
    %345 = vector.extract_strided_slice %29 {offsets = [0, 36], sizes = [8, 1], strides = [1, 1]} : vector<8x81xf32> to vector<8x1xf32>
    %346 = vector.broadcast %345 : vector<8x1xf32> to vector<8x1024xf32>
    %347 = arith.mulf %346, %17 : vector<8x1024xf32>
    %348 = vector.extract_strided_slice %29 {offsets = [0, 37], sizes = [8, 1], strides = [1, 1]} : vector<8x81xf32> to vector<8x1xf32>
    %349 = vector.broadcast %348 : vector<8x1xf32> to vector<8x1024xf32>
    %350 = arith.mulf %349, %18 : vector<8x1024xf32>
    %351 = arith.addf %347, %350 : vector<8x1024xf32>
    %352 = vector.extract_strided_slice %29 {offsets = [0, 38], sizes = [8, 1], strides = [1, 1]} : vector<8x81xf32> to vector<8x1xf32>
    %353 = vector.broadcast %352 : vector<8x1xf32> to vector<8x1024xf32>
    %354 = arith.mulf %353, %19 : vector<8x1024xf32>
    %355 = arith.addf %351, %354 : vector<8x1024xf32>
    %356 = vector.extract_strided_slice %29 {offsets = [0, 39], sizes = [8, 1], strides = [1, 1]} : vector<8x81xf32> to vector<8x1xf32>
    %357 = vector.broadcast %356 : vector<8x1xf32> to vector<8x1024xf32>
    %358 = arith.mulf %357, %20 : vector<8x1024xf32>
    %359 = arith.addf %355, %358 : vector<8x1024xf32>
    %360 = vector.extract_strided_slice %29 {offsets = [0, 40], sizes = [8, 1], strides = [1, 1]} : vector<8x81xf32> to vector<8x1xf32>
    %361 = vector.broadcast %360 : vector<8x1xf32> to vector<8x1024xf32>
    %362 = arith.mulf %361, %21 : vector<8x1024xf32>
    %363 = arith.addf %359, %362 : vector<8x1024xf32>
    %364 = vector.extract_strided_slice %29 {offsets = [0, 41], sizes = [8, 1], strides = [1, 1]} : vector<8x81xf32> to vector<8x1xf32>
    %365 = vector.broadcast %364 : vector<8x1xf32> to vector<8x1024xf32>
    %366 = arith.mulf %365, %22 : vector<8x1024xf32>
    %367 = arith.addf %363, %366 : vector<8x1024xf32>
    %368 = vector.extract_strided_slice %29 {offsets = [0, 42], sizes = [8, 1], strides = [1, 1]} : vector<8x81xf32> to vector<8x1xf32>
    %369 = vector.broadcast %368 : vector<8x1xf32> to vector<8x1024xf32>
    %370 = arith.mulf %369, %23 : vector<8x1024xf32>
    %371 = arith.addf %367, %370 : vector<8x1024xf32>
    %372 = vector.extract_strided_slice %29 {offsets = [0, 43], sizes = [8, 1], strides = [1, 1]} : vector<8x81xf32> to vector<8x1xf32>
    %373 = vector.broadcast %372 : vector<8x1xf32> to vector<8x1024xf32>
    %374 = arith.mulf %373, %24 : vector<8x1024xf32>
    %375 = arith.addf %371, %374 : vector<8x1024xf32>
    %376 = vector.extract_strided_slice %29 {offsets = [0, 44], sizes = [8, 1], strides = [1, 1]} : vector<8x81xf32> to vector<8x1xf32>
    %377 = vector.broadcast %376 : vector<8x1xf32> to vector<8x1024xf32>
    %378 = arith.mulf %377, %25 : vector<8x1024xf32>
    %379 = arith.addf %375, %378 : vector<8x1024xf32>
    %380 = vector.extract_strided_slice %31 {offsets = [0, 4], sizes = [8, 1], strides = [1, 1]} : vector<8x9xf32> to vector<8x1xf32>
    %381 = vector.broadcast %380 : vector<8x1xf32> to vector<8x1024xf32>
    %382 = arith.addf %379, %381 : vector<8x1024xf32>
    %cst_23 = arith.constant 0.000000e+00 : f32
    %383 = vector.broadcast %cst_23 : f32 to vector<8x1024xf32>
    %384 = arith.maximumf %382, %383 : vector<8x1024xf32>
    %c32_i32 = arith.constant 32 : i32
    %385 = arith.addi %c32_i32, %14 : i32
    %386 = tpu.assume_multiple %385, 8 : i32
    %387 = arith.mulf %384, %344 : vector<8x1024xf32>
    %388 = arith.index_cast %386 : i32 to index
    %c0_24 = arith.constant 0 : index
    %389 = vector.load %arg11[%388, %c0_24] : memref<72x1024xf32, #tpu.memory_space<vmem>>, vector<8x1024xf32>
    tpu.vector_store %arg11[%388, %c0_24], %387 {strides = array<i32>} : memref<72x1024xf32, #tpu.memory_space<vmem>>, vector<8x1024xf32>,
    %390 = vector.extract_strided_slice %27 {offsets = [0, 5], sizes = [8, 1], strides = [1, 1]} : vector<8x9xf32> to vector<8x1xf32>
    %391 = vector.broadcast %390 : vector<8x1xf32> to vector<8x1024xf32>
    %392 = arith.mulf %391, %41 : vector<8x1024xf32>
    %393 = arith.subf %392, %76 : vector<8x1024xf32>
    %394 = math.exp %393 : vector<8x1024xf32>
    %395 = arith.mulf %394, %134 : vector<8x1024xf32>
    %396 = vector.extract_strided_slice %29 {offsets = [0, 45], sizes = [8, 1], strides = [1, 1]} : vector<8x81xf32> to vector<8x1xf32>
    %397 = vector.broadcast %396 : vector<8x1xf32> to vector<8x1024xf32>
    %398 = arith.mulf %397, %17 : vector<8x1024xf32>
    %399 = vector.extract_strided_slice %29 {offsets = [0, 46], sizes = [8, 1], strides = [1, 1]} : vector<8x81xf32> to vector<8x1xf32>
    %400 = vector.broadcast %399 : vector<8x1xf32> to vector<8x1024xf32>
    %401 = arith.mulf %400, %18 : vector<8x1024xf32>
    %402 = arith.addf %398, %401 : vector<8x1024xf32>
    %403 = vector.extract_strided_slice %29 {offsets = [0, 47], sizes = [8, 1], strides = [1, 1]} : vector<8x81xf32> to vector<8x1xf32>
    %404 = vector.broadcast %403 : vector<8x1xf32> to vector<8x1024xf32>
    %405 = arith.mulf %404, %19 : vector<8x1024xf32>
    %406 = arith.addf %402, %405 : vector<8x1024xf32>
    %407 = vector.extract_strided_slice %29 {offsets = [0, 48], sizes = [8, 1], strides = [1, 1]} : vector<8x81xf32> to vector<8x1xf32>
    %408 = vector.broadcast %407 : vector<8x1xf32> to vector<8x1024xf32>
    %409 = arith.mulf %408, %20 : vector<8x1024xf32>
    %410 = arith.addf %406, %409 : vector<8x1024xf32>
    %411 = vector.extract_strided_slice %29 {offsets = [0, 49], sizes = [8, 1], strides = [1, 1]} : vector<8x81xf32> to vector<8x1xf32>
    %412 = vector.broadcast %411 : vector<8x1xf32> to vector<8x1024xf32>
    %413 = arith.mulf %412, %21 : vector<8x1024xf32>
    %414 = arith.addf %410, %413 : vector<8x1024xf32>
    %415 = vector.extract_strided_slice %29 {offsets = [0, 50], sizes = [8, 1], strides = [1, 1]} : vector<8x81xf32> to vector<8x1xf32>
    %416 = vector.broadcast %415 : vector<8x1xf32> to vector<8x1024xf32>
    %417 = arith.mulf %416, %22 : vector<8x1024xf32>
    %418 = arith.addf %414, %417 : vector<8x1024xf32>
    %419 = vector.extract_strided_slice %29 {offsets = [0, 51], sizes = [8, 1], strides = [1, 1]} : vector<8x81xf32> to vector<8x1xf32>
    %420 = vector.broadcast %419 : vector<8x1xf32> to vector<8x1024xf32>
    %421 = arith.mulf %420, %23 : vector<8x1024xf32>
    %422 = arith.addf %418, %421 : vector<8x1024xf32>
    %423 = vector.extract_strided_slice %29 {offsets = [0, 52], sizes = [8, 1], strides = [1, 1]} : vector<8x81xf32> to vector<8x1xf32>
    %424 = vector.broadcast %423 : vector<8x1xf32> to vector<8x1024xf32>
    %425 = arith.mulf %424, %24 : vector<8x1024xf32>
    %426 = arith.addf %422, %425 : vector<8x1024xf32>
    %427 = vector.extract_strided_slice %29 {offsets = [0, 53], sizes = [8, 1], strides = [1, 1]} : vector<8x81xf32> to vector<8x1xf32>
    %428 = vector.broadcast %427 : vector<8x1xf32> to vector<8x1024xf32>
    %429 = arith.mulf %428, %25 : vector<8x1024xf32>
    %430 = arith.addf %426, %429 : vector<8x1024xf32>
    %431 = vector.extract_strided_slice %31 {offsets = [0, 5], sizes = [8, 1], strides = [1, 1]} : vector<8x9xf32> to vector<8x1xf32>
    %432 = vector.broadcast %431 : vector<8x1xf32> to vector<8x1024xf32>
    %433 = arith.addf %430, %432 : vector<8x1024xf32>
    %cst_25 = arith.constant 0.000000e+00 : f32
    %434 = vector.broadcast %cst_25 : f32 to vector<8x1024xf32>
    %435 = arith.maximumf %433, %434 : vector<8x1024xf32>
    %c40_i32 = arith.constant 40 : i32
    %436 = arith.addi %c40_i32, %14 : i32
    %437 = tpu.assume_multiple %436, 8 : i32
    %438 = arith.mulf %435, %395 : vector<8x1024xf32>
    %439 = arith.index_cast %437 : i32 to index
    %c0_26 = arith.constant 0 : index
    %440 = vector.load %arg11[%439, %c0_26] : memref<72x1024xf32, #tpu.memory_space<vmem>>, vector<8x1024xf32>
    tpu.vector_store %arg11[%439, %c0_26], %438 {strides = array<i32>} : memref<72x1024xf32, #tpu.memory_space<vmem>>, vector<8x1024xf32>,
    %441 = vector.extract_strided_slice %27 {offsets = [0, 6], sizes = [8, 1], strides = [1, 1]} : vector<8x9xf32> to vector<8x1xf32>
    %442 = vector.broadcast %441 : vector<8x1xf32> to vector<8x1024xf32>
    %443 = arith.mulf %442, %41 : vector<8x1024xf32>
    %444 = arith.subf %443, %76 : vector<8x1024xf32>
    %445 = math.exp %444 : vector<8x1024xf32>
    %446 = arith.mulf %445, %134 : vector<8x1024xf32>
    %447 = vector.extract_strided_slice %29 {offsets = [0, 54], sizes = [8, 1], strides = [1, 1]} : vector<8x81xf32> to vector<8x1xf32>
    %448 = vector.broadcast %447 : vector<8x1xf32> to vector<8x1024xf32>
    %449 = arith.mulf %448, %17 : vector<8x1024xf32>
    %450 = vector.extract_strided_slice %29 {offsets = [0, 55], sizes = [8, 1], strides = [1, 1]} : vector<8x81xf32> to vector<8x1xf32>
    %451 = vector.broadcast %450 : vector<8x1xf32> to vector<8x1024xf32>
    %452 = arith.mulf %451, %18 : vector<8x1024xf32>
    %453 = arith.addf %449, %452 : vector<8x1024xf32>
    %454 = vector.extract_strided_slice %29 {offsets = [0, 56], sizes = [8, 1], strides = [1, 1]} : vector<8x81xf32> to vector<8x1xf32>
    %455 = vector.broadcast %454 : vector<8x1xf32> to vector<8x1024xf32>
    %456 = arith.mulf %455, %19 : vector<8x1024xf32>
    %457 = arith.addf %453, %456 : vector<8x1024xf32>
    %458 = vector.extract_strided_slice %29 {offsets = [0, 57], sizes = [8, 1], strides = [1, 1]} : vector<8x81xf32> to vector<8x1xf32>
    %459 = vector.broadcast %458 : vector<8x1xf32> to vector<8x1024xf32>
    %460 = arith.mulf %459, %20 : vector<8x1024xf32>
    %461 = arith.addf %457, %460 : vector<8x1024xf32>
    %462 = vector.extract_strided_slice %29 {offsets = [0, 58], sizes = [8, 1], strides = [1, 1]} : vector<8x81xf32> to vector<8x1xf32>
    %463 = vector.broadcast %462 : vector<8x1xf32> to vector<8x1024xf32>
    %464 = arith.mulf %463, %21 : vector<8x1024xf32>
    %465 = arith.addf %461, %464 : vector<8x1024xf32>
    %466 = vector.extract_strided_slice %29 {offsets = [0, 59], sizes = [8, 1], strides = [1, 1]} : vector<8x81xf32> to vector<8x1xf32>
    %467 = vector.broadcast %466 : vector<8x1xf32> to vector<8x1024xf32>
    %468 = arith.mulf %467, %22 : vector<8x1024xf32>
    %469 = arith.addf %465, %468 : vector<8x1024xf32>
    %470 = vector.extract_strided_slice %29 {offsets = [0, 60], sizes = [8, 1], strides = [1, 1]} : vector<8x81xf32> to vector<8x1xf32>
    %471 = vector.broadcast %470 : vector<8x1xf32> to vector<8x1024xf32>
    %472 = arith.mulf %471, %23 : vector<8x1024xf32>
    %473 = arith.addf %469, %472 : vector<8x1024xf32>
    %474 = vector.extract_strided_slice %29 {offsets = [0, 61], sizes = [8, 1], strides = [1, 1]} : vector<8x81xf32> to vector<8x1xf32>
    %475 = vector.broadcast %474 : vector<8x1xf32> to vector<8x1024xf32>
    %476 = arith.mulf %475, %24 : vector<8x1024xf32>
    %477 = arith.addf %473, %476 : vector<8x1024xf32>
    %478 = vector.extract_strided_slice %29 {offsets = [0, 62], sizes = [8, 1], strides = [1, 1]} : vector<8x81xf32> to vector<8x1xf32>
    %479 = vector.broadcast %478 : vector<8x1xf32> to vector<8x1024xf32>
    %480 = arith.mulf %479, %25 : vector<8x1024xf32>
    %481 = arith.addf %477, %480 : vector<8x1024xf32>
    %482 = vector.extract_strided_slice %31 {offsets = [0, 6], sizes = [8, 1], strides = [1, 1]} : vector<8x9xf32> to vector<8x1xf32>
    %483 = vector.broadcast %482 : vector<8x1xf32> to vector<8x1024xf32>
    %484 = arith.addf %481, %483 : vector<8x1024xf32>
    %cst_27 = arith.constant 0.000000e+00 : f32
    %485 = vector.broadcast %cst_27 : f32 to vector<8x1024xf32>
    %486 = arith.maximumf %484, %485 : vector<8x1024xf32>
    %c48_i32 = arith.constant 48 : i32
    %487 = arith.addi %c48_i32, %14 : i32
    %488 = tpu.assume_multiple %487, 8 : i32
    %489 = arith.mulf %486, %446 : vector<8x1024xf32>
    %490 = arith.index_cast %488 : i32 to index
    %c0_28 = arith.constant 0 : index
    %491 = vector.load %arg11[%490, %c0_28] : memref<72x1024xf32, #tpu.memory_space<vmem>>, vector<8x1024xf32>
    tpu.vector_store %arg11[%490, %c0_28], %489 {strides = array<i32>} : memref<72x1024xf32, #tpu.memory_space<vmem>>, vector<8x1024xf32>,
    %492 = vector.extract_strided_slice %27 {offsets = [0, 7], sizes = [8, 1], strides = [1, 1]} : vector<8x9xf32> to vector<8x1xf32>
    %493 = vector.broadcast %492 : vector<8x1xf32> to vector<8x1024xf32>
    %494 = arith.mulf %493, %41 : vector<8x1024xf32>
    %495 = arith.subf %494, %76 : vector<8x1024xf32>
    %496 = math.exp %495 : vector<8x1024xf32>
    %497 = arith.mulf %496, %134 : vector<8x1024xf32>
    %498 = vector.extract_strided_slice %29 {offsets = [0, 63], sizes = [8, 1], strides = [1, 1]} : vector<8x81xf32> to vector<8x1xf32>
    %499 = vector.broadcast %498 : vector<8x1xf32> to vector<8x1024xf32>
    %500 = arith.mulf %499, %17 : vector<8x1024xf32>
    %501 = vector.extract_strided_slice %29 {offsets = [0, 64], sizes = [8, 1], strides = [1, 1]} : vector<8x81xf32> to vector<8x1xf32>
    %502 = vector.broadcast %501 : vector<8x1xf32> to vector<8x1024xf32>
    %503 = arith.mulf %502, %18 : vector<8x1024xf32>
    %504 = arith.addf %500, %503 : vector<8x1024xf32>
    %505 = vector.extract_strided_slice %29 {offsets = [0, 65], sizes = [8, 1], strides = [1, 1]} : vector<8x81xf32> to vector<8x1xf32>
    %506 = vector.broadcast %505 : vector<8x1xf32> to vector<8x1024xf32>
    %507 = arith.mulf %506, %19 : vector<8x1024xf32>
    %508 = arith.addf %504, %507 : vector<8x1024xf32>
    %509 = vector.extract_strided_slice %29 {offsets = [0, 66], sizes = [8, 1], strides = [1, 1]} : vector<8x81xf32> to vector<8x1xf32>
    %510 = vector.broadcast %509 : vector<8x1xf32> to vector<8x1024xf32>
    %511 = arith.mulf %510, %20 : vector<8x1024xf32>
    %512 = arith.addf %508, %511 : vector<8x1024xf32>
    %513 = vector.extract_strided_slice %29 {offsets = [0, 67], sizes = [8, 1], strides = [1, 1]} : vector<8x81xf32> to vector<8x1xf32>
    %514 = vector.broadcast %513 : vector<8x1xf32> to vector<8x1024xf32>
    %515 = arith.mulf %514, %21 : vector<8x1024xf32>
    %516 = arith.addf %512, %515 : vector<8x1024xf32>
    %517 = vector.extract_strided_slice %29 {offsets = [0, 68], sizes = [8, 1], strides = [1, 1]} : vector<8x81xf32> to vector<8x1xf32>
    %518 = vector.broadcast %517 : vector<8x1xf32> to vector<8x1024xf32>
    %519 = arith.mulf %518, %22 : vector<8x1024xf32>
    %520 = arith.addf %516, %519 : vector<8x1024xf32>
    %521 = vector.extract_strided_slice %29 {offsets = [0, 69], sizes = [8, 1], strides = [1, 1]} : vector<8x81xf32> to vector<8x1xf32>
    %522 = vector.broadcast %521 : vector<8x1xf32> to vector<8x1024xf32>
    %523 = arith.mulf %522, %23 : vector<8x1024xf32>
    %524 = arith.addf %520, %523 : vector<8x1024xf32>
    %525 = vector.extract_strided_slice %29 {offsets = [0, 70], sizes = [8, 1], strides = [1, 1]} : vector<8x81xf32> to vector<8x1xf32>
    %526 = vector.broadcast %525 : vector<8x1xf32> to vector<8x1024xf32>
    %527 = arith.mulf %526, %24 : vector<8x1024xf32>
    %528 = arith.addf %524, %527 : vector<8x1024xf32>
    %529 = vector.extract_strided_slice %29 {offsets = [0, 71], sizes = [8, 1], strides = [1, 1]} : vector<8x81xf32> to vector<8x1xf32>
    %530 = vector.broadcast %529 : vector<8x1xf32> to vector<8x1024xf32>
    %531 = arith.mulf %530, %25 : vector<8x1024xf32>
    %532 = arith.addf %528, %531 : vector<8x1024xf32>
    %533 = vector.extract_strided_slice %31 {offsets = [0, 7], sizes = [8, 1], strides = [1, 1]} : vector<8x9xf32> to vector<8x1xf32>
    %534 = vector.broadcast %533 : vector<8x1xf32> to vector<8x1024xf32>
    %535 = arith.addf %532, %534 : vector<8x1024xf32>
    %cst_29 = arith.constant 0.000000e+00 : f32
    %536 = vector.broadcast %cst_29 : f32 to vector<8x1024xf32>
    %537 = arith.maximumf %535, %536 : vector<8x1024xf32>
    %c56_i32 = arith.constant 56 : i32
    %538 = arith.addi %c56_i32, %14 : i32
    %539 = tpu.assume_multiple %538, 8 : i32
    %540 = arith.mulf %537, %497 : vector<8x1024xf32>
    %541 = arith.index_cast %539 : i32 to index
    %c0_30 = arith.constant 0 : index
    %542 = vector.load %arg11[%541, %c0_30] : memref<72x1024xf32, #tpu.memory_space<vmem>>, vector<8x1024xf32>
    tpu.vector_store %arg11[%541, %c0_30], %540 {strides = array<i32>} : memref<72x1024xf32, #tpu.memory_space<vmem>>, vector<8x1024xf32>,
    %543 = vector.extract_strided_slice %27 {offsets = [0, 8], sizes = [8, 1], strides = [1, 1]} : vector<8x9xf32> to vector<8x1xf32>
    %544 = vector.broadcast %543 : vector<8x1xf32> to vector<8x1024xf32>
    %545 = arith.mulf %544, %41 : vector<8x1024xf32>
    %546 = arith.subf %545, %76 : vector<8x1024xf32>
    %547 = math.exp %546 : vector<8x1024xf32>
    %548 = arith.mulf %547, %134 : vector<8x1024xf32>
    %549 = vector.extract_strided_slice %29 {offsets = [0, 72], sizes = [8, 1], strides = [1, 1]} : vector<8x81xf32> to vector<8x1xf32>
    %550 = vector.broadcast %549 : vector<8x1xf32> to vector<8x1024xf32>
    %551 = arith.mulf %550, %17 : vector<8x1024xf32>
    %552 = vector.extract_strided_slice %29 {offsets = [0, 73], sizes = [8, 1], strides = [1, 1]} : vector<8x81xf32> to vector<8x1xf32>
    %553 = vector.broadcast %552 : vector<8x1xf32> to vector<8x1024xf32>
    %554 = arith.mulf %553, %18 : vector<8x1024xf32>
    %555 = arith.addf %551, %554 : vector<8x1024xf32>
    %556 = vector.extract_strided_slice %29 {offsets = [0, 74], sizes = [8, 1], strides = [1, 1]} : vector<8x81xf32> to vector<8x1xf32>
    %557 = vector.broadcast %556 : vector<8x1xf32> to vector<8x1024xf32>
    %558 = arith.mulf %557, %19 : vector<8x1024xf32>
    %559 = arith.addf %555, %558 : vector<8x1024xf32>
    %560 = vector.extract_strided_slice %29 {offsets = [0, 75], sizes = [8, 1], strides = [1, 1]} : vector<8x81xf32> to vector<8x1xf32>
    %561 = vector.broadcast %560 : vector<8x1xf32> to vector<8x1024xf32>
    %562 = arith.mulf %561, %20 : vector<8x1024xf32>
    %563 = arith.addf %559, %562 : vector<8x1024xf32>
    %564 = vector.extract_strided_slice %29 {offsets = [0, 76], sizes = [8, 1], strides = [1, 1]} : vector<8x81xf32> to vector<8x1xf32>
    %565 = vector.broadcast %564 : vector<8x1xf32> to vector<8x1024xf32>
    %566 = arith.mulf %565, %21 : vector<8x1024xf32>
    %567 = arith.addf %563, %566 : vector<8x1024xf32>
    %568 = vector.extract_strided_slice %29 {offsets = [0, 77], sizes = [8, 1], strides = [1, 1]} : vector<8x81xf32> to vector<8x1xf32>
    %569 = vector.broadcast %568 : vector<8x1xf32> to vector<8x1024xf32>
    %570 = arith.mulf %569, %22 : vector<8x1024xf32>
    %571 = arith.addf %567, %570 : vector<8x1024xf32>
    %572 = vector.extract_strided_slice %29 {offsets = [0, 78], sizes = [8, 1], strides = [1, 1]} : vector<8x81xf32> to vector<8x1xf32>
    %573 = vector.broadcast %572 : vector<8x1xf32> to vector<8x1024xf32>
    %574 = arith.mulf %573, %23 : vector<8x1024xf32>
    %575 = arith.addf %571, %574 : vector<8x1024xf32>
    %576 = vector.extract_strided_slice %29 {offsets = [0, 79], sizes = [8, 1], strides = [1, 1]} : vector<8x81xf32> to vector<8x1xf32>
    %577 = vector.broadcast %576 : vector<8x1xf32> to vector<8x1024xf32>
    %578 = arith.mulf %577, %24 : vector<8x1024xf32>
    %579 = arith.addf %575, %578 : vector<8x1024xf32>
    %580 = vector.extract_strided_slice %29 {offsets = [0, 80], sizes = [8, 1], strides = [1, 1]} : vector<8x81xf32> to vector<8x1xf32>
    %581 = vector.broadcast %580 : vector<8x1xf32> to vector<8x1024xf32>
    %582 = arith.mulf %581, %25 : vector<8x1024xf32>
    %583 = arith.addf %579, %582 : vector<8x1024xf32>
    %584 = vector.extract_strided_slice %31 {offsets = [0, 8], sizes = [8, 1], strides = [1, 1]} : vector<8x9xf32> to vector<8x1xf32>
    %585 = vector.broadcast %584 : vector<8x1xf32> to vector<8x1024xf32>
    %586 = arith.addf %583, %585 : vector<8x1024xf32>
    %cst_31 = arith.constant 0.000000e+00 : f32
    %587 = vector.broadcast %cst_31 : f32 to vector<8x1024xf32>
    %588 = arith.maximumf %586, %587 : vector<8x1024xf32>
    %c64_i32 = arith.constant 64 : i32
    %589 = arith.addi %c64_i32, %14 : i32
    %590 = tpu.assume_multiple %589, 8 : i32
    %591 = arith.mulf %588, %548 : vector<8x1024xf32>
    %592 = arith.index_cast %590 : i32 to index
    %c0_32 = arith.constant 0 : index
    %593 = vector.load %arg11[%592, %c0_32] : memref<72x1024xf32, #tpu.memory_space<vmem>>, vector<8x1024xf32>
    tpu.vector_store %arg11[%592, %c0_32], %591 {strides = array<i32>} : memref<72x1024xf32, #tpu.memory_space<vmem>>, vector<8x1024xf32>,
    %c1_i32 = arith.constant 1 : i32
    %c0_33 = arith.constant 0 : index
    %c0_34 = arith.constant 0 : index
    %594 = vector.load %arg6[%c0_33, %c0_34] : memref<8x72xf32, #tpu.memory_space<vmem>>, vector<8x72xf32>
    %c0_35 = arith.constant 0 : index
    %c0_36 = arith.constant 0 : index
    %595 = vector.load %arg11[%c0_35, %c0_36] : memref<72x1024xf32, #tpu.memory_space<vmem>>, vector<72x1024xf32>
    %cst_37 = arith.constant dense<0.000000e+00> : vector<8x1024xf32>
    %596 = tpu.matmul %594, %595, %cst_37 {dimension_numbers = #tpu.dot_dimension_numbers<[1], [0], [0], [1], [0, 0, 1, 1], [], []>} : vector<8x72xf32>, vector<72x1024xf32>, vector<8x1024xf32> -> vector<8x1024xf32>
    %c0_38 = arith.constant 0 : index
    %c0_39 = arith.constant 0 : index
    %597 = vector.load %arg7[%c0_38, %c0_39] : memref<8x1xf32, #tpu.memory_space<vmem>>, vector<8x1xf32>
    %598 = vector.broadcast %597 : vector<8x1xf32> to vector<8x1024xf32>
    %599 = arith.addf %596, %598 : vector<8x1024xf32>
    %cst_40 = arith.constant 0.000000e+00 : f32
    %600 = vector.broadcast %cst_40 : f32 to vector<8x1024xf32>
    %601 = arith.maximumf %599, %600 : vector<8x1024xf32>
    %c0_41 = arith.constant 0 : index
    %c0_42 = arith.constant 0 : index
    %c0_43 = arith.constant 0 : index
    %602 = vector.load %arg8[%c0_41, %c0_42, %c0_43] : memref<1x8x1024xf32, #tpu.memory_space<vmem>>, vector<1x8x1024xf32>
    %603 = vector.shape_cast %602 : vector<1x8x1024xf32> to vector<8x1024xf32>
    %604 = vector.shape_cast %601 : vector<8x1024xf32> to vector<1x8x1024xf32>
    tpu.vector_store %arg8[%c0_41, %c0_42, %c0_43], %604 {strides = array<i32>} : memref<1x8x1024xf32, #tpu.memory_space<vmem>>, vector<1x8x1024xf32>,
    return
  }
  func.func @transform_1(%arg0: i32, %arg1: i32) -> (i32, i32) {
    %c0_i32 = arith.constant 0 : i32
    %c0_i32_0 = arith.constant 0 : i32
    %c0_i32_1 = arith.constant 0 : i32
    return %c0_i32, %c0_i32_0 : i32, i32
  }
  func.func @transform_2(%arg0: i32, %arg1: i32) -> (i32, i32) {
    %c0_i32 = arith.constant 0 : i32
    %c0_i32_0 = arith.constant 0 : i32
    %c0_i32_1 = arith.constant 0 : i32
    return %c0_i32, %c0_i32_0 : i32, i32
  }
  func.func @transform_3(%arg0: i32, %arg1: i32) -> (i32, i32) {
    %c0_i32 = arith.constant 0 : i32
    %c0_i32_0 = arith.constant 0 : i32
    %c0_i32_1 = arith.constant 0 : i32
    return %c0_i32, %c0_i32_0 : i32, i32
  }
  func.func @transform_4(%arg0: i32, %arg1: i32) -> (i32, i32) {
    %c0_i32 = arith.constant 0 : i32
    %c0_i32_0 = arith.constant 0 : i32
    %c0_i32_1 = arith.constant 0 : i32
    return %c0_i32, %c0_i32_0 : i32, i32
  }
  func.func @transform_5(%arg0: i32, %arg1: i32) -> (i32, i32) {
    %c0_i32 = arith.constant 0 : i32
    %c0_i32_0 = arith.constant 0 : i32
    %c0_i32_1 = arith.constant 0 : i32
    return %c0_i32, %c0_i32_0 : i32, i32
  }
  func.func @transform_6(%arg0: i32, %arg1: i32) -> (i32, i32, i32) {
    %c0_i32 = arith.constant 0 : i32
    %c0_i32_0 = arith.constant 0 : i32
    return %arg0, %c0_i32, %arg1 : i32, i32, i32
  }
}

</mosaic_0001>

<llo_original>
// kernel: rfaconv_pallas.1
$region0: #{rfaconv_pallas.1}
  #allocation0 [shape = 'u32[]', space=smem, size = 0x4, offset = 0x4, fixed_abs, tag = 'smem constant byte address 0x4 - core index']
  #allocation1 [shape = 'u32[144,128]{1,0:T(1,128)}', space=vmem, size = 0x12000, scoped, tag = 'internal scratch']
  #allocation2 [shape = 'f32[8,1408]{1,0:T(8,128)}', space=vmem, size = 0xb000, scoped, tag = 'scratch operand']
  #allocation3 [shape = 's32[1]{0}', space=sflag, size = 0x4, scoped, tag = 'scratch operand']
  #allocation4 [shape = 'f32[72,1024]{1,0:T(8,128)}', space=vmem, size = 0x48000, scoped, tag = 'scratch operand']
  #allocation15 [shape = 's32[]', space=sflag, size = 0x4, offset = 0, fixed_abs, tag = 'sflag constant byte address 0x0 - dummy sync flag']
  #allocation16 [shape = 's32[]', space=sflag, size = 0x4, offset = 0, fixed_abs, tag = 'sflag constant byte address 0x0 - dummy sync flag']
  #allocation17 [shape = 'u32[]', space=smem, size = 0x4, offset = 0x44, fixed_abs, tag = 'smem constant byte address 0x44 - assertion arg 0']
  #allocation18 [shape = 'u32[]', space=smem, size = 0x4, offset = 0x48, fixed_abs, tag = 'smem constant byte address 0x48 - assertion arg 1']
  %s0 = inlined_call_operand.hbm [shape: f32[2,8,2432], index: 0, kind: input, shape index: {}]
  %s1 = inlined_call_operand.hbm [shape: f32[8,9], index: 1, kind: input, shape index: {}]
  %s2 = inlined_call_operand.hbm [shape: f32[8,81], index: 2, kind: input, shape index: {}]
  %s3 = inlined_call_operand.hbm [shape: f32[8,9], index: 3, kind: input, shape index: {}]
  %s4 = inlined_call_operand.hbm [shape: f32[8,72], index: 4, kind: input, shape index: {}]
  %s5 = inlined_call_operand.hbm [shape: f32[8,1], index: 5, kind: input, shape index: {}]
  %s6 = inlined_call_operand.hbm [shape: f32[2,8,2048], index: 6, kind: output, shape index: {}]
  %s7 = sld [smem:[#allocation0]]
  $region77: #{rfaconv_pallas.1} parent=0
    _
  %s9 = ssub.s32 1, %s7
  %s10 = scalar_select 0, %s9, %s7
  $region1: #{rfaconv_pallas.1} parent=0
    #allocation5 [shape = 'u8[4096]{0}', space=vmem, size = 0x1000, scoped, tag = 'input window, operand 1, single buffered']
    #allocation6 [shape = 's32[2]{0}', space=sflag, size = 0x8, scoped, tag = 'scoped memory for rfaconv_pallas.1']
    #allocation7 [shape = 's32[2]{0}', space=sflag, size = 0x8, scoped, tag = 'scoped memory for rfaconv_pallas.1']
    #allocation8 [shape = 'u8[4096]{0}', space=vmem, size = 0x1000, scoped, tag = 'input window, operand 2, single buffered']
    #allocation9 [shape = 's32[1]{0}', space=sflag, size = 0x4, scoped, tag = 'scoped memory for rfaconv_pallas.1']
    #allocation10 [shape = 'u8[4096]{0}', space=vmem, size = 0x1000, scoped, tag = 'input window, operand 3, single buffered']
    #allocation11 [shape = 'u8[4096]{0}', space=vmem, size = 0x1000, scoped, tag = 'input window, operand 4, single buffered']
    #allocation12 [shape = 's32[1]{0}', space=sflag, size = 0x4, scoped, tag = 'scoped memory for rfaconv_pallas.1']
    #allocation13 [shape = 'u8[4096]{0}', space=vmem, size = 0x1000, scoped, tag = 'input window, operand 5, single buffered']
    #allocation14 [shape = 'u8[65536]{0}', space=vmem, size = 0x10000, scoped, tag = 'output window, operand 0']
    %11 = vsyncpa [#allocation6], 0
    %12 = vsyncpa [#allocation9], 0
    %13 = vsyncpa [#allocation12], 0
    %14 = vsyncpa [#allocation7], 0
    %s15 = scalar_lea.sflag [#allocation7], 1
    %16 = vsyncpa %s15, 0
    loop: start=0, step=1, limit=6
    $region2: #{rfaconv_pallas.1} parent=1 // loop_pre_header
      _
    $region3: #{rfaconv_pallas.1} parent=1 // loop_header
      %s18 = sphi 0, %s22
      %p19 = scmp.ge.s32.totalorder %s18, 6
      %s25 = sphi 0, %s37
      %s26 = sphi 0, %s33
      %s27 = sphi 0, %s25
      %s28 = sphi 0, %s26
      %s29 = sphi 0, %s27
      %s30 = sphi 0, %s28
      %s38 = sphi 0, %s38
      %s40 = sphi 0, %s38
      %s41 = sphi 0, %s40
      %s55 = sphi 0, %s41
      %s59 = sphi 0, %s59
      %s61 = sphi 0, %s59
      %s62 = sphi 0, %s61
      %s76 = sphi 0, %s62
      %s80 = sphi 0, %s80
      %s82 = sphi 0, %s80
      %s83 = sphi 0, %s82
      %s97 = sphi 0, %s83
      %s101 = sphi 0, %s101
      %s103 = sphi 0, %s101
      %s104 = sphi 0, %s103
      %s118 = sphi 0, %s104
      %s122 = sphi 0, %s122
      %s124 = sphi 0, %s122
      %s125 = sphi 0, %s124
      %s139 = sphi 0, %s125
      %s147 = sphi 0, %s149
      %s150 = sphi 0, %s147
      %s151 = sphi 0, %s150
      %s167 = sphi 0, %s151
    $region4: #{rfaconv_pallas.1} parent=1 // loop_header_branch
      %21 = sbr.rel (%p19) target = $region8
    $region5: #{rfaconv_pallas.1} parent=1 // loop_body
      %s23 = ssub.s32 %s18, 1
      %s24 = ssub.s32 %s18, 2
      %s31 = sadd.s32 1, %s26
      %p32 = scmp.ge.s32.totalorder %s31, 2
      %s33 = scalar_select %p32, 0, %s31
      %s34 = sadd.s32 1, %s25
      %s35 = scalar_select %p32, %s34, %s25
      %p36 = scmp.ge.s32.totalorder %s35, 2
      %s37 = scalar_select %p36, 0, %s35
      %s39 = sadd.s32 %s38, 1
      %p42 = scmp.eq.s32.totalorder %s18, 3
      %p43 = scmp.ne.s32.totalorder %s38, %s40
      %p44 = scmp.eq.s32.totalorder %s18, 0
      %p45 = por %p43, %p44
      %p46 = scmp.ne.s32.totalorder %s38, %s40
      %p47 = scmp.eq.s32.totalorder %s23, 3
      %p48 = por %p46, %p47
      %p49 = scmp.ne.s32.totalorder %s40, %s41
      %p50 = scmp.eq.s32.totalorder %s23, 0
      %p51 = por %p49, %p50
      %p52 = scmp.ne.s32.totalorder %s40, %s41
      %p53 = scmp.eq.s32.totalorder %s24, 3
      %p54 = por %p52, %p53
      %p56 = scmp.ne.s32.totalorder %s41, %s55
      %p57 = scmp.eq.s32.totalorder %s24, 0
      %p58 = por %p56, %p57
      %s60 = sadd.s32 %s59, 1
      %p63 = scmp.eq.s32.totalorder %s18, 3
      %p64 = scmp.ne.s32.totalorder %s59, %s61
      %p65 = scmp.eq.s32.totalorder %s18, 0
      %p66 = por %p64, %p65
      %p67 = scmp.ne.s32.totalorder %s59, %s61
      %p68 = scmp.eq.s32.totalorder %s23, 3
      %p69 = por %p67, %p68
      %p70 = scmp.ne.s32.totalorder %s61, %s62
      %p71 = scmp.eq.s32.totalorder %s23, 0
      %p72 = por %p70, %p71
      %p73 = scmp.ne.s32.totalorder %s61, %s62
      %p74 = scmp.eq.s32.totalorder %s24, 3
      %p75 = por %p73, %p74
      %p77 = scmp.ne.s32.totalorder %s62, %s76
      %p78 = scmp.eq.s32.totalorder %s24, 0
      %p79 = por %p77, %p78
      %s81 = sadd.s32 %s80, 1
      %p84 = scmp.eq.s32.totalorder %s18, 3
      %p85 = scmp.ne.s32.totalorder %s80, %s82
      %p86 = scmp.eq.s32.totalorder %s18, 0
      %p87 = por %p85, %p86
      %p88 = scmp.ne.s32.totalorder %s80, %s82
      %p89 = scmp.eq.s32.totalorder %s23, 3
      %p90 = por %p88, %p89
      %p91 = scmp.ne.s32.totalorder %s82, %s83
      %p92 = scmp.eq.s32.totalorder %s23, 0
      %p93 = por %p91, %p92
      %p94 = scmp.ne.s32.totalorder %s82, %s83
      %p95 = scmp.eq.s32.totalorder %s24, 3
      %p96 = por %p94, %p95
      %p98 = scmp.ne.s32.totalorder %s83, %s97
      %p99 = scmp.eq.s32.totalorder %s24, 0
      %p100 = por %p98, %p99
      %s102 = sadd.s32 %s101, 1
      %p105 = scmp.eq.s32.totalorder %s18, 3
      %p106 = scmp.ne.s32.totalorder %s101, %s103
      %p107 = scmp.eq.s32.totalorder %s18, 0
      %p108 = por %p106, %p107
      %p109 = scmp.ne.s32.totalorder %s101, %s103
      %p110 = scmp.eq.s32.totalorder %s23, 3
      %p111 = por %p109, %p110
      %p112 = scmp.ne.s32.totalorder %s103, %s104
      %p113 = scmp.eq.s32.totalorder %s23, 0
      %p114 = por %p112, %p113
      %p115 = scmp.ne.s32.totalorder %s103, %s104
      %p116 = scmp.eq.s32.totalorder %s24, 3
      %p117 = por %p115, %p116
      %p119 = scmp.ne.s32.totalorder %s104, %s118
      %p120 = scmp.eq.s32.totalorder %s24, 0
      %p121 = por %p119, %p120
      %s123 = sadd.s32 %s122, 1
      %p126 = scmp.eq.s32.totalorder %s18, 3
      %p127 = scmp.ne.s32.totalorder %s122, %s124
      %p128 = scmp.eq.s32.totalorder %s18, 0
      %p129 = por %p127, %p128
      %p130 = scmp.ne.s32.totalorder %s122, %s124
      %p131 = scmp.eq.s32.totalorder %s23, 3
      %p132 = por %p130, %p131
      %p133 = scmp.ne.s32.totalorder %s124, %s125
      %p134 = scmp.eq.s32.totalorder %s23, 0
      %p135 = por %p133, %p134
      %p136 = scmp.ne.s32.totalorder %s124, %s125
      %p137 = scmp.eq.s32.totalorder %s24, 3
      %p138 = por %p136, %p137
      %p140 = scmp.ne.s32.totalorder %s125, %s139
      %p141 = scmp.eq.s32.totalorder %s24, 0
      %p142 = por %p140, %p141
      %s143 = ssub.s32 %s25, %s37
      %s144 = ssub.s32 %s26, %s33
      %s145 = sor.u32 %s143, %s144
      %p146 = scmp.eq.s32.totalorder %s145, 0
      %s148 = sadd.s32 %s147, 1
      %s149 = scalar_select %p146, %s147, %s148
      %p152 = pneg %p146
      %p153 = scmp.eq.s32.totalorder %s18, 3
      %p154 = por %p152, %p153
      %p155 = scmp.ne.s32.totalorder %s147, %s150
      %p156 = scmp.eq.s32.totalorder %s18, 0
      %p157 = por %p155, %p156
      %p158 = scmp.ne.s32.totalorder %s147, %s150
      %p159 = scmp.eq.s32.totalorder %s23, 3
      %p160 = por %p158, %p159
      %p161 = scmp.ne.s32.totalorder %s150, %s151
      %p162 = scmp.eq.s32.totalorder %s23, 0
      %p163 = por %p161, %p162
      %p164 = scmp.ne.s32.totalorder %s150, %s151
      %p165 = scmp.eq.s32.totalorder %s24, 3
      %p166 = por %p164, %p165
      %p168 = scmp.ne.s32.totalorder %s151, %s167
      %p169 = scmp.eq.s32.totalorder %s24, 0
      %p170 = por %p168, %p169
      %p171 = scmp.le.s32.totalorder 1, %s18
      %p172 = scmp.lt.s32.totalorder %s18, 5
      %p173 = pnand %p171, %p172
      %p174 = pneg %p173
      // Predicated region
      $region9: #{rfaconv_pallas.1} parent=5 // pred_check
        _
      $region10: #{rfaconv_pallas.1} parent=5 // pred_check_branch
        %176 = sbr.rel (%p173) target = $region12
      $region11: #{rfaconv_pallas.1} parent=5 // pred_region
        %s177 = ssub.s32 %s18, 1
        // Predicated region
        $region13: #{rfaconv_pallas.1} parent=11 // pred_check
          %p178 = pneg %p51
        $region14: #{rfaconv_pallas.1} parent=11 // pred_check_branch
          %180 = sbr.rel (%p178) target = $region16
        $region15: #{rfaconv_pallas.1} parent=11 // pred_region
          %s182 = ssub.s32 128, 128
          %183 = vsyncadd [#allocation6], %s182
          %s185 = sshll.u32 [#allocation5], 4
          %s186 = int_to_ptr.vmem [resolvable:$true] %s185
          %188 = dma.hbm_to_vmem [thread:$0]  %s1, 128, %s186, [#allocation6]
        $region16: #{rfaconv_pallas.1} parent=11 // pred_fallthru
          _
        // Predicated region
        $region17: #{rfaconv_pallas.1} parent=11 // pred_check
          %p189 = pneg %p72
        $region18: #{rfaconv_pallas.1} parent=11 // pred_check_branch
          %191 = sbr.rel (%p189) target = $region20
        $region19: #{rfaconv_pallas.1} parent=11 // pred_region
          %s193 = ssub.s32 128, 128
          %194 = vsyncadd [#allocation9], %s193
          %s196 = sshll.u32 [#allocation8], 4
          %s197 = int_to_ptr.vmem [resolvable:$true] %s196
          %199 = dma.hbm_to_vmem [thread:$0]  %s2, 128, %s197, [#allocation9]
        $region20: #{rfaconv_pallas.1} parent=11 // pred_fallthru
          _
        // Predicated region
        $region21: #{rfaconv_pallas.1} parent=11 // pred_check
          %p200 = pneg %p93
        $region22: #{rfaconv_pallas.1} parent=11 // pred_check_branch
          %202 = sbr.rel (%p200) target = $region24
        $region23: #{rfaconv_pallas.1} parent=11 // pred_region
          %s204 = ssub.s32 128, 128
          %205 = vsyncadd [#allocation9], %s204
          %s207 = sshll.u32 [#allocation10], 4
          %s208 = int_to_ptr.vmem [resolvable:$true] %s207
          %210 = dma.hbm_to_vmem [thread:$0]  %s3, 128, %s208, [#allocation9]
        $region24: #{rfaconv_pallas.1} parent=11 // pred_fallthru
          _
        // Predicated region
        $region25: #{rfaconv_pallas.1} parent=11 // pred_check
          %p211 = pneg %p114
        $region26: #{rfaconv_pallas.1} parent=11 // pred_check_branch
          %213 = sbr.rel (%p211) target = $region28
        $region27: #{rfaconv_pallas.1} parent=11 // pred_region
          %s215 = ssub.s32 128, 128
          %216 = vsyncadd [#allocation12], %s215
          %s218 = sshll.u32 [#allocation11], 4
          %s219 = int_to_ptr.vmem [resolvable:$true] %s218
          %221 = dma.hbm_to_vmem [thread:$0]  %s4, 128, %s219, [#allocation12]
        $region28: #{rfaconv_pallas.1} parent=11 // pred_fallthru
          _
        // Predicated region
        $region29: #{rfaconv_pallas.1} parent=11 // pred_check
          %p222 = pneg %p135
        $region30: #{rfaconv_pallas.1} parent=11 // pred_check_branch
          %224 = sbr.rel (%p222) target = $region32
        $region31: #{rfaconv_pallas.1} parent=11 // pred_region
          %s226 = ssub.s32 128, 128
          %227 = vsyncadd [#allocation12], %s226
          %s229 = sshll.u32 [#allocation13], 4
          %s230 = int_to_ptr.vmem [resolvable:$true] %s229
          %232 = dma.hbm_to_vmem [thread:$0]  %s5, 128, %s230, [#allocation12]
        $region32: #{rfaconv_pallas.1} parent=11 // pred_fallthru
          _
      $region12: #{rfaconv_pallas.1} parent=5 // pred_fallthru
        _
      %p233 = scmp.lt.s32.totalorder %s18, 4
      // Predicated region
      $region33: #{rfaconv_pallas.1} parent=5 // pred_check
        %p234 = pneg %p233
      $region34: #{rfaconv_pallas.1} parent=5 // pred_check_branch
        %236 = sbr.rel (%p234) target = $region36
      $region35: #{rfaconv_pallas.1} parent=5 // pred_region
        _
      $region36: #{rfaconv_pallas.1} parent=5 // pred_fallthru
        _
      %p237 = scmp.le.s32.totalorder 1, %s18
      %p238 = scmp.lt.s32.totalorder %s18, 5
      %p239 = pnand %p237, %p238
      %p240 = pneg %p239
      // Predicated region
      $region37: #{rfaconv_pallas.1} parent=5 // pred_check
        _
      $region38: #{rfaconv_pallas.1} parent=5 // pred_check_branch
        %242 = sbr.rel (%p239) target = $region40
      $region39: #{rfaconv_pallas.1} parent=5 // pred_region
        %s243 = ssub.s32 %s18, 1
        // Predicated region
        $region41: #{rfaconv_pallas.1} parent=39 // pred_check
          %p244 = pneg %p51
        $region42: #{rfaconv_pallas.1} parent=39 // pred_check_branch
          %246 = sbr.rel (%p244) target = $region44
        $region43: #{rfaconv_pallas.1} parent=39 // pred_region
          %247 = dma.done [#allocation6], 128
        $region44: #{rfaconv_pallas.1} parent=39 // pred_fallthru
          _
        // Predicated region
        $region45: #{rfaconv_pallas.1} parent=39 // pred_check
          %p248 = pneg %p72
        $region46: #{rfaconv_pallas.1} parent=39 // pred_check_branch
          %250 = sbr.rel (%p248) target = $region48
        $region47: #{rfaconv_pallas.1} parent=39 // pred_region
          %251 = dma.done [#allocation9], 128
        $region48: #{rfaconv_pallas.1} parent=39 // pred_fallthru
          _
        // Predicated region
        $region49: #{rfaconv_pallas.1} parent=39 // pred_check
          %p252 = pneg %p93
        $region50: #{rfaconv_pallas.1} parent=39 // pred_check_branch
          %254 = sbr.rel (%p252) target = $region52
        $region51: #{rfaconv_pallas.1} parent=39 // pred_region
          %255 = dma.done [#allocation9], 128
        $region52: #{rfaconv_pallas.1} parent=39 // pred_fallthru
          _
        // Predicated region
        $region53: #{rfaconv_pallas.1} parent=39 // pred_check
          %p256 = pneg %p114
        $region54: #{rfaconv_pallas.1} parent=39 // pred_check_branch
          %258 = sbr.rel (%p256) target = $region56
        $region55: #{rfaconv_pallas.1} parent=39 // pred_region
          %259 = dma.done [#allocation12], 128
        $region56: #{rfaconv_pallas.1} parent=39 // pred_fallthru
          _
        // Predicated region
        $region57: #{rfaconv_pallas.1} parent=39 // pred_check
          %p260 = pneg %p135
        $region58: #{rfaconv_pallas.1} parent=39 // pred_check_branch
          %262 = sbr.rel (%p260) target = $region60
        $region59: #{rfaconv_pallas.1} parent=39 // pred_region
          %263 = dma.done [#allocation12], 128
        $region60: #{rfaconv_pallas.1} parent=39 // pred_fallthru
          _
        %p264 = pneg %p51
        %p265 = pneg %p48
        %p266 = pneg %p72
        %p267 = pneg %p69
        %p268 = pneg %p93
        %p269 = pneg %p90
        %p270 = pneg %p114
        %p271 = pneg %p111
        %p272 = pneg %p135
        %p273 = pneg %p132
        %p274 = pneg %p163
        %p275 = pneg %p160
        %s276 = sand.u32 %s150, 1
        %s277 = scalar_lea.sflag [#allocation7], %s276
        %s278 = sand.u32 %s150, 1
        %s279 = smul.addr %s278, 64
        %s280 = scalar_lea.vmem [#allocation14], %s279
        %s281 = smul.u32 8, %s28
        %s282 = smul.u32 %s28, 1024
        %s283 = sshra.s32 %s282, 7
        %s284 = sand.u32 %s282, 127
        %s285 = smul.u32 %s27, 19
        %s286 = sadd.s32 %s283, %s285
        %s287 = smul.addr %s286, 128
        %s288 = scalar_lea.hbm %s0, %s287
        // Predicated region
        $region61: #{rfaconv_pallas.1} parent=39 // pred_check
          _
        $region62: #{rfaconv_pallas.1} parent=39 // pred_check_branch
          %290 = sbr.rel target = $region64
        $region63: #{rfaconv_pallas.1} parent=39 // pred_region
          %291 = sst [smem:[#allocation17]] [#allocation16]
          %292 = sst [smem:[#allocation18]] [#allocation15]
        $region64: #{rfaconv_pallas.1} parent=39 // pred_fallthru
          _
        %294 = shalt.err (0)
        %s296 = sshll.u32 [#allocation2], 4
        %s297 = int_to_ptr.vmem [resolvable:$true] %s296
        %299 = dma.hbm_to_vmem [thread:$0]  %s288, 1408, %s297, [#allocation3]
        %s300 = smul.u32 8, 1
        %s301 = smul.u32 %s300, 11
        %s302 = sshll.u32 %s301, 4
        %303 = dma.done [#allocation3], %s302
        %s304 = smul.u32 0, 11
        %s305 = smul.addr %s304, 8
        %s306 = scalar_lea.vmem [#allocation2], %s305
        %v307 = vld [vmem:[%s306] sm:$0xff]
        %v308 = vld [vmem:[%s306 + $0x8] sm:$0xff]
        %v309 = vld [vmem:[%s306 + $0x10] sm:$0xff]
        %v310 = vld [vmem:[%s306 + $0x18] sm:$0xff]
        %v311 = vld [vmem:[%s306 + $0x20] sm:$0xff]
        %v312 = vld [vmem:[%s306 + $0x28] sm:$0xff]
        %v313 = vld [vmem:[%s306 + $0x30] sm:$0xff]
        %v314 = vld [vmem:[%s306 + $0x38] sm:$0xff]
        %v315 = vld [vmem:[%s306 + $0x40] sm:$0xff]
        %v316 = vld [vmem:[%s306 + $0x48] sm:$0xff]
        %v317 = vld [vmem:[%s306 + $0x50] sm:$0xff]
        %v318 = vld [vmem:[#allocation5] sm:$0xff]
        %v319 = vld [vmem:[#allocation8] sm:$0xff]
        %v320 = vld [vmem:[#allocation10] sm:$0xff]
        %330 = vrot.lane.b32.xlu0 %v307, 127
        %v331 = vpop.permute.xlu0 %330
        %332 = vrot.lane.b32.xlu0 %v308, 127
        %v333 = vpop.permute.xlu0 %332
        %334 = vrot.lane.b32.xlu0 %v309, 127
        %v335 = vpop.permute.xlu0 %334
        %336 = vrot.lane.b32.xlu0 %v310, 127
        %v337 = vpop.permute.xlu0 %336
        %338 = vrot.lane.b32.xlu0 %v311, 127
        %v339 = vpop.permute.xlu0 %338
        %340 = vrot.lane.b32.xlu0 %v312, 127
        %v341 = vpop.permute.xlu0 %340
        %342 = vrot.lane.b32.xlu0 %v313, 127
        %v343 = vpop.permute.xlu0 %342
        %344 = vrot.lane.b32.xlu0 %v314, 127
        %v345 = vpop.permute.xlu0 %344
        %346 = vrot.lane.b32.xlu0 %v315, 127
        %v347 = vpop.permute.xlu0 %346
        %vm348 = vcmask 1039360
        %v349 = vsel %vm348, %v331, %v333
        %v350 = vsel %vm348, %v333, %v335
        %v351 = vsel %vm348, %v335, %v337
        %v352 = vsel %vm348, %v337, %v339
        %v353 = vsel %vm348, %v339, %v341
        %v354 = vsel %vm348, %v341, %v343
        %v355 = vsel %vm348, %v343, %v345
        %v356 = vsel %vm348, %v345, %v347
        %v365 = vadd.f32 %v307, %v349
        %v366 = vadd.f32 %v308, %v350
        %v367 = vadd.f32 %v309, %v351
        %v368 = vadd.f32 %v310, %v352
        %v369 = vadd.f32 %v311, %v353
        %v370 = vadd.f32 %v312, %v354
        %v371 = vadd.f32 %v313, %v355
        %v372 = vadd.f32 %v314, %v356
        %373 = vrot.lane.b32.xlu0 %v307, 126
        %v374 = vpop.permute.xlu0 %373
        %375 = vrot.lane.b32.xlu0 %v308, 126
        %v376 = vpop.permute.xlu0 %375
        %377 = vrot.lane.b32.xlu0 %v309, 126
        %v378 = vpop.permute.xlu0 %377
        %379 = vrot.lane.b32.xlu0 %v310, 126
        %v380 = vpop.permute.xlu0 %379
        %381 = vrot.lane.b32.xlu0 %v311, 126
        %v382 = vpop.permute.xlu0 %381
        %383 = vrot.lane.b32.xlu0 %v312, 126
        %v384 = vpop.permute.xlu0 %383
        %385 = vrot.lane.b32.xlu0 %v313, 126
        %v386 = vpop.permute.xlu0 %385
        %387 = vrot.lane.b32.xlu0 %v314, 126
        %v388 = vpop.permute.xlu0 %387
        %389 = vrot.lane.b32.xlu0 %v315, 126
        %v390 = vpop.permute.xlu0 %389
        %vm391 = vcmask 1031168
        %v392 = vsel %vm391, %v374, %v376
        %v393 = vsel %vm391, %v376, %v378
        %v394 = vsel %vm391, %v378, %v380
        %v395 = vsel %vm391, %v380, %v382
        %v396 = vsel %vm391, %v382, %v384
        %v397 = vsel %vm391, %v384, %v386
        %v398 = vsel %vm391, %v386, %v388
        %v399 = vsel %vm391, %v388, %v390
        %v408 = vadd.f32 %v365, %v392
        %v409 = vadd.f32 %v366, %v393
        %v410 = vadd.f32 %v367, %v394
        %v411 = vadd.f32 %v368, %v395
        %v412 = vadd.f32 %v369, %v396
        %v413 = vadd.f32 %v370, %v397
        %v414 = vadd.f32 %v371, %v398
        %v415 = vadd.f32 %v372, %v399
        %v416 = vadd.f32 %v408, %v308
        %v417 = vadd.f32 %v409, %v309
        %v418 = vadd.f32 %v410, %v310
        %v419 = vadd.f32 %v411, %v311
        %v420 = vadd.f32 %v412, %v312
        %v421 = vadd.f32 %v413, %v313
        %v422 = vadd.f32 %v414, %v314
        %v423 = vadd.f32 %v415, %v315
        %425 = vrot.lane.b32.xlu0 %v316, 127
        %v426 = vpop.permute.xlu0 %425
        %v427 = vsel %vm348, %v347, %v426
        %v429 = vadd.f32 %v416, %v350
        %v430 = vadd.f32 %v417, %v351
        %v431 = vadd.f32 %v418, %v352
        %v432 = vadd.f32 %v419, %v353
        %v433 = vadd.f32 %v420, %v354
        %v434 = vadd.f32 %v421, %v355
        %v435 = vadd.f32 %v422, %v356
        %v436 = vadd.f32 %v423, %v427
        %437 = vrot.lane.b32.xlu0 %v316, 126
        %v438 = vpop.permute.xlu0 %437
        %v439 = vsel %vm391, %v390, %v438
        %v441 = vadd.f32 %v429, %v393
        %v442 = vadd.f32 %v430, %v394
        %v443 = vadd.f32 %v431, %v395
        %v444 = vadd.f32 %v432, %v396
        %v445 = vadd.f32 %v433, %v397
        %v446 = vadd.f32 %v434, %v398
        %v447 = vadd.f32 %v435, %v399
        %v448 = vadd.f32 %v436, %v439
        %v449 = vadd.f32 %v441, %v309
        %v450 = vadd.f32 %v442, %v310
        %v451 = vadd.f32 %v443, %v311
        %v452 = vadd.f32 %v444, %v312
        %v453 = vadd.f32 %v445, %v313
        %v454 = vadd.f32 %v446, %v314
        %v455 = vadd.f32 %v447, %v315
        %v456 = vadd.f32 %v448, %v316
        %458 = vrot.lane.b32.xlu0 %v317, 127
        %v459 = vpop.permute.xlu0 %458
        %v460 = vsel %vm348, %v426, %v459
        %v462 = vadd.f32 %v449, %v351
        %v463 = vadd.f32 %v450, %v352
        %v464 = vadd.f32 %v451, %v353
        %v465 = vadd.f32 %v452, %v354
        %v466 = vadd.f32 %v453, %v355
        %v467 = vadd.f32 %v454, %v356
        %v468 = vadd.f32 %v455, %v427
        %v469 = vadd.f32 %v456, %v460
        %470 = vrot.lane.b32.xlu0 %v317, 126
        %v471 = vpop.permute.xlu0 %470
        %v472 = vsel %vm391, %v438, %v471
        %v474 = vadd.f32 %v462, %v394
        %v475 = vadd.f32 %v463, %v395
        %v476 = vadd.f32 %v464, %v396
        %v477 = vadd.f32 %v465, %v397
        %v478 = vadd.f32 %v466, %v398
        %v479 = vadd.f32 %v467, %v399
        %v480 = vadd.f32 %v468, %v439
        %v481 = vadd.f32 %v469, %v472
        %v482 = vmul.f32 %v474, 0.11111111
        %v483 = vmul.f32 %v475, 0.11111111
        %v484 = vmul.f32 %v476, 0.11111111
        %v485 = vmul.f32 %v477, 0.11111111
        %v486 = vmul.f32 %v478, 0.11111111
        %v487 = vmul.f32 %v479, 0.11111111
        %v488 = vmul.f32 %v480, 0.11111111
        %v489 = vmul.f32 %v481, 0.11111111
        %491 = vset.pattern.permute.xlu0 0
        %492 = vperm.xlu0 %491, %v318
        %v493 = vpop.permute.xlu0 %492
        %v495 = vmul.f32 %v493, %v482
        %v496 = vmul.f32 %v493, %v483
        %v497 = vmul.f32 %v493, %v484
        %v498 = vmul.f32 %v493, %v485
        %v499 = vmul.f32 %v493, %v486
        %v500 = vmul.f32 %v493, %v487
        %v501 = vmul.f32 %v493, %v488
        %v502 = vmul.f32 %v493, %v489
        %503 = vset.pattern.permute.xlu0 1
        %504 = vperm.xlu0 %503, %v318
        %v505 = vpop.permute.xlu0 %504
        %v507 = vmul.f32 %v505, %v482
        %v508 = vmul.f32 %v505, %v483
        %v509 = vmul.f32 %v505, %v484
        %v510 = vmul.f32 %v505, %v485
        %v511 = vmul.f32 %v505, %v486
        %v512 = vmul.f32 %v505, %v487
        %v513 = vmul.f32 %v505, %v488
        %v514 = vmul.f32 %v505, %v489
        %v515 = vmax.f32 %v495, %v507
        %v516 = vmax.f32 %v496, %v508
        %v517 = vmax.f32 %v497, %v509
        %v518 = vmax.f32 %v498, %v510
        %v519 = vmax.f32 %v499, %v511
        %v520 = vmax.f32 %v500, %v512
        %v521 = vmax.f32 %v501, %v513
        %v522 = vmax.f32 %v502, %v514
        %523 = vset.pattern.permute.xlu0 2
        %524 = vperm.xlu0 %523, %v318
        %v525 = vpop.permute.xlu0 %524
        %v527 = vmul.f32 %v525, %v482
        %v528 = vmul.f32 %v525, %v483
        %v529 = vmul.f32 %v525, %v484
        %v530 = vmul.f32 %v525, %v485
        %v531 = vmul.f32 %v525, %v486
        %v532 = vmul.f32 %v525, %v487
        %v533 = vmul.f32 %v525, %v488
        %v534 = vmul.f32 %v525, %v489
        %v535 = vmax.f32 %v515, %v527
        %v536 = vmax.f32 %v516, %v528
        %v537 = vmax.f32 %v517, %v529
        %v538 = vmax.f32 %v518, %v530
        %v539 = vmax.f32 %v519, %v531
        %v540 = vmax.f32 %v520, %v532
        %v541 = vmax.f32 %v521, %v533
        %v542 = vmax.f32 %v522, %v534
        %543 = vset.pattern.permute.xlu0 3
        %544 = vperm.xlu0 %543, %v318
        %v545 = vpop.permute.xlu0 %544
        %v547 = vmul.f32 %v545, %v482
        %v548 = vmul.f32 %v545, %v483
        %v549 = vmul.f32 %v545, %v484
        %v550 = vmul.f32 %v545, %v485
        %v551 = vmul.f32 %v545, %v486
        %v552 = vmul.f32 %v545, %v487
        %v553 = vmul.f32 %v545, %v488
        %v554 = vmul.f32 %v545, %v489
        %v555 = vmax.f32 %v535, %v547
        %v556 = vmax.f32 %v536, %v548
        %v557 = vmax.f32 %v537, %v549
        %v558 = vmax.f32 %v538, %v550
        %v559 = vmax.f32 %v539, %v551
        %v560 = vmax.f32 %v540, %v552
        %v561 = vmax.f32 %v541, %v553
        %v562 = vmax.f32 %v542, %v554
        %563 = vset.pattern.permute.xlu0 4
        %564 = vperm.xlu0 %563, %v318
        %v565 = vpop.permute.xlu0 %564
        %v567 = vmul.f32 %v565, %v482
        %v568 = vmul.f32 %v565, %v483
        %v569 = vmul.f32 %v565, %v484
        %v570 = vmul.f32 %v565, %v485
        %v571 = vmul.f32 %v565, %v486
        %v572 = vmul.f32 %v565, %v487
        %v573 = vmul.f32 %v565, %v488
        %v574 = vmul.f32 %v565, %v489
        %v575 = vmax.f32 %v555, %v567
        %v576 = vmax.f32 %v556, %v568
        %v577 = vmax.f32 %v557, %v569
        %v578 = vmax.f32 %v558, %v570
        %v579 = vmax.f32 %v559, %v571
        %v580 = vmax.f32 %v560, %v572
        %v581 = vmax.f32 %v561, %v573
        %v582 = vmax.f32 %v562, %v574
        %583 = vset.pattern.permute.xlu0 5
        %584 = vperm.xlu0 %583, %v318
        %v585 = vpop.permute.xlu0 %584
        %v587 = vmul.f32 %v585, %v482
        %v588 = vmul.f32 %v585, %v483
        %v589 = vmul.f32 %v585, %v484
        %v590 = vmul.f32 %v585, %v485
        %v591 = vmul.f32 %v585, %v486
        %v592 = vmul.f32 %v585, %v487
        %v593 = vmul.f32 %v585, %v488
        %v594 = vmul.f32 %v585, %v489
        %v595 = vmax.f32 %v575, %v587
        %v596 = vmax.f32 %v576, %v588
        %v597 = vmax.f32 %v577, %v589
        %v598 = vmax.f32 %v578, %v590
        %v599 = vmax.f32 %v579, %v591
        %v600 = vmax.f32 %v580, %v592
        %v601 = vmax.f32 %v581, %v593
        %v602 = vmax.f32 %v582, %v594
        %603 = vset.pattern.permute.xlu0 6
        %604 = vperm.xlu0 %603, %v318
        %v605 = vpop.permute.xlu0 %604
        %v607 = vmul.f32 %v605, %v482
        %v608 = vmul.f32 %v605, %v483
        %v609 = vmul.f32 %v605, %v484
        %v610 = vmul.f32 %v605, %v485
        %v611 = vmul.f32 %v605, %v486
        %v612 = vmul.f32 %v605, %v487
        %v613 = vmul.f32 %v605, %v488
        %v614 = vmul.f32 %v605, %v489
        %v615 = vmax.f32 %v595, %v607
        %v616 = vmax.f32 %v596, %v608
        %v617 = vmax.f32 %v597, %v609
        %v618 = vmax.f32 %v598, %v610
        %v619 = vmax.f32 %v599, %v611
        %v620 = vmax.f32 %v600, %v612
        %v621 = vmax.f32 %v601, %v613
        %v622 = vmax.f32 %v602, %v614
        %623 = vset.pattern.permute.xlu0 7
        %624 = vperm.xlu0 %623, %v318
        %v625 = vpop.permute.xlu0 %624
        %v627 = vmul.f32 %v625, %v482
        %v628 = vmul.f32 %v625, %v483
        %v629 = vmul.f32 %v625, %v484
        %v630 = vmul.f32 %v625, %v485
        %v631 = vmul.f32 %v625, %v486
        %v632 = vmul.f32 %v625, %v487
        %v633 = vmul.f32 %v625, %v488
        %v634 = vmul.f32 %v625, %v489
        %v635 = vmax.f32 %v615, %v627
        %v636 = vmax.f32 %v616, %v628
        %v637 = vmax.f32 %v617, %v629
        %v638 = vmax.f32 %v618, %v630
        %v639 = vmax.f32 %v619, %v631
        %v640 = vmax.f32 %v620, %v632
        %v641 = vmax.f32 %v621, %v633
        %v642 = vmax.f32 %v622, %v634
        %643 = vset.pattern.permute.xlu0 8
        %644 = vperm.xlu0 %643, %v318
        %v645 = vpop.permute.xlu0 %644
        %v647 = vmul.f32 %v645, %v482
        %v648 = vmul.f32 %v645, %v483
        %v649 = vmul.f32 %v645, %v484
        %v650 = vmul.f32 %v645, %v485
        %v651 = vmul.f32 %v645, %v486
        %v652 = vmul.f32 %v645, %v487
        %v653 = vmul.f32 %v645, %v488
        %v654 = vmul.f32 %v645, %v489
        %v655 = vmax.f32 %v635, %v647
        %v656 = vmax.f32 %v636, %v648
        %v657 = vmax.f32 %v637, %v649
        %v658 = vmax.f32 %v638, %v650
        %v659 = vmax.f32 %v639, %v651
        %v660 = vmax.f32 %v640, %v652
        %v661 = vmax.f32 %v641, %v653
        %v662 = vmax.f32 %v642, %v654
        %v663 = vsub.f32 %v495, %v655
        %v664 = vsub.f32 %v496, %v656
        %v665 = vsub.f32 %v497, %v657
        %v666 = vsub.f32 %v498, %v658
        %v667 = vsub.f32 %v499, %v659
        %v668 = vsub.f32 %v500, %v660
        %v669 = vsub.f32 %v501, %v661
        %v670 = vsub.f32 %v502, %v662
        %v671 = vmul.f32 %v663, 1.442695
        %v672 = vpow.pop %v671
        %v673 = vmul.f32 %v664, 1.442695
        %v674 = vpow.pop %v673
        %v675 = vmul.f32 %v665, 1.442695
        %v676 = vpow.pop %v675
        %v677 = vmul.f32 %v666, 1.442695
        %v678 = vpow.pop %v677
        %v679 = vmul.f32 %v667, 1.442695
        %v680 = vpow.pop %v679
        %v681 = vmul.f32 %v668, 1.442695
        %v682 = vpow.pop %v681
        %v683 = vmul.f32 %v669, 1.442695
        %v684 = vpow.pop %v683
        %v685 = vmul.f32 %v670, 1.442695
        %v686 = vpow.pop %v685
        %v687 = vsub.f32 %v507, %v655
        %v688 = vsub.f32 %v508, %v656
        %v689 = vsub.f32 %v509, %v657
        %v690 = vsub.f32 %v510, %v658
        %v691 = vsub.f32 %v511, %v659
        %v692 = vsub.f32 %v512, %v660
        %v693 = vsub.f32 %v513, %v661
        %v694 = vsub.f32 %v514, %v662
        %v695 = vmul.f32 %v687, 1.442695
        %v696 = vpow.pop %v695
        %v697 = vmul.f32 %v688, 1.442695
        %v698 = vpow.pop %v697
        %v699 = vmul.f32 %v689, 1.442695
        %v700 = vpow.pop %v699
        %v701 = vmul.f32 %v690, 1.442695
        %v702 = vpow.pop %v701
        %v703 = vmul.f32 %v691, 1.442695
        %v704 = vpow.pop %v703
        %v705 = vmul.f32 %v692, 1.442695
        %v706 = vpow.pop %v705
        %v707 = vmul.f32 %v693, 1.442695
        %v708 = vpow.pop %v707
        %v709 = vmul.f32 %v694, 1.442695
        %v710 = vpow.pop %v709
        %v711 = vadd.f32 %v672, %v696
        %v712 = vadd.f32 %v674, %v698
        %v713 = vadd.f32 %v676, %v700
        %v714 = vadd.f32 %v678, %v702
        %v715 = vadd.f32 %v680, %v704
        %v716 = vadd.f32 %v682, %v706
        %v717 = vadd.f32 %v684, %v708
        %v718 = vadd.f32 %v686, %v710
        %v719 = vsub.f32 %v527, %v655
        %v720 = vsub.f32 %v528, %v656
        %v721 = vsub.f32 %v529, %v657
        %v722 = vsub.f32 %v530, %v658
        %v723 = vsub.f32 %v531, %v659
        %v724 = vsub.f32 %v532, %v660
        %v725 = vsub.f32 %v533, %v661
        %v726 = vsub.f32 %v534, %v662
        %v727 = vmul.f32 %v719, 1.442695
        %v728 = vpow.pop %v727
        %v729 = vmul.f32 %v720, 1.442695
        %v730 = vpow.pop %v729
        %v731 = vmul.f32 %v721, 1.442695
        %v732 = vpow.pop %v731
        %v733 = vmul.f32 %v722, 1.442695
        %v734 = vpow.pop %v733
        %v735 = vmul.f32 %v723, 1.442695
        %v736 = vpow.pop %v735
        %v737 = vmul.f32 %v724, 1.442695
        %v738 = vpow.pop %v737
        %v739 = vmul.f32 %v725, 1.442695
        %v740 = vpow.pop %v739
        %v741 = vmul.f32 %v726, 1.442695
        %v742 = vpow.pop %v741
        %v743 = vadd.f32 %v711, %v728
        %v744 = vadd.f32 %v712, %v730
        %v745 = vadd.f32 %v713, %v732
        %v746 = vadd.f32 %v714, %v734
        %v747 = vadd.f32 %v715, %v736
        %v748 = vadd.f32 %v716, %v738
        %v749 = vadd.f32 %v717, %v740
        %v750 = vadd.f32 %v718, %v742
        %v751 = vsub.f32 %v547, %v655
        %v752 = vsub.f32 %v548, %v656
        %v753 = vsub.f32 %v549, %v657
        %v754 = vsub.f32 %v550, %v658
        %v755 = vsub.f32 %v551, %v659
        %v756 = vsub.f32 %v552, %v660
        %v757 = vsub.f32 %v553, %v661
        %v758 = vsub.f32 %v554, %v662
        %v759 = vmul.f32 %v751, 1.442695
        %v760 = vpow.pop %v759
        %v761 = vmul.f32 %v752, 1.442695
        %v762 = vpow.pop %v761
        %v763 = vmul.f32 %v753, 1.442695
        %v764 = vpow.pop %v763
        %v765 = vmul.f32 %v754, 1.442695
        %v766 = vpow.pop %v765
        %v767 = vmul.f32 %v755, 1.442695
        %v768 = vpow.pop %v767
        %v769 = vmul.f32 %v756, 1.442695
        %v770 = vpow.pop %v769
        %v771 = vmul.f32 %v757, 1.442695
        %v772 = vpow.pop %v771
        %v773 = vmul.f32 %v758, 1.442695
        %v774 = vpow.pop %v773
        %v775 = vadd.f32 %v743, %v760
        %v776 = vadd.f32 %v744, %v762
        %v777 = vadd.f32 %v745, %v764
        %v778 = vadd.f32 %v746, %v766
        %v779 = vadd.f32 %v747, %v768
        %v780 = vadd.f32 %v748, %v770
        %v781 = vadd.f32 %v749, %v772
        %v782 = vadd.f32 %v750, %v774
        %v783 = vsub.f32 %v567, %v655
        %v784 = vsub.f32 %v568, %v656
        %v785 = vsub.f32 %v569, %v657
        %v786 = vsub.f32 %v570, %v658
        %v787 = vsub.f32 %v571, %v659
        %v788 = vsub.f32 %v572, %v660
        %v789 = vsub.f32 %v573, %v661
        %v790 = vsub.f32 %v574, %v662
        %v791 = vmul.f32 %v783, 1.442695
        %v792 = vpow.pop %v791
        %v793 = vmul.f32 %v784, 1.442695
        %v794 = vpow.pop %v793
        %v795 = vmul.f32 %v785, 1.442695
        %v796 = vpow.pop %v795
        %v797 = vmul.f32 %v786, 1.442695
        %v798 = vpow.pop %v797
        %v799 = vmul.f32 %v787, 1.442695
        %v800 = vpow.pop %v799
        %v801 = vmul.f32 %v788, 1.442695
        %v802 = vpow.pop %v801
        %v803 = vmul.f32 %v789, 1.442695
        %v804 = vpow.pop %v803
        %v805 = vmul.f32 %v790, 1.442695
        %v806 = vpow.pop %v805
        %v807 = vadd.f32 %v775, %v792
        %v808 = vadd.f32 %v776, %v794
        %v809 = vadd.f32 %v777, %v796
        %v810 = vadd.f32 %v778, %v798
        %v811 = vadd.f32 %v779, %v800
        %v812 = vadd.f32 %v780, %v802
        %v813 = vadd.f32 %v781, %v804
        %v814 = vadd.f32 %v782, %v806
        %v815 = vsub.f32 %v587, %v655
        %v816 = vsub.f32 %v588, %v656
        %v817 = vsub.f32 %v589, %v657
        %v818 = vsub.f32 %v590, %v658
        %v819 = vsub.f32 %v591, %v659
        %v820 = vsub.f32 %v592, %v660
        %v821 = vsub.f32 %v593, %v661
        %v822 = vsub.f32 %v594, %v662
        %v823 = vmul.f32 %v815, 1.442695
        %v824 = vpow.pop %v823
        %v825 = vmul.f32 %v816, 1.442695
        %v826 = vpow.pop %v825
        %v827 = vmul.f32 %v817, 1.442695
        %v828 = vpow.pop %v827
        %v829 = vmul.f32 %v818, 1.442695
        %v830 = vpow.pop %v829
        %v831 = vmul.f32 %v819, 1.442695
        %v832 = vpow.pop %v831
        %v833 = vmul.f32 %v820, 1.442695
        %v834 = vpow.pop %v833
        %v835 = vmul.f32 %v821, 1.442695
        %v836 = vpow.pop %v835
        %v837 = vmul.f32 %v822, 1.442695
        %v838 = vpow.pop %v837
        %v839 = vadd.f32 %v807, %v824
        %v840 = vadd.f32 %v808, %v826
        %v841 = vadd.f32 %v809, %v828
        %v842 = vadd.f32 %v810, %v830
        %v843 = vadd.f32 %v811, %v832
        %v844 = vadd.f32 %v812, %v834
        %v845 = vadd.f32 %v813, %v836
        %v846 = vadd.f32 %v814, %v838
        %v847 = vsub.f32 %v607, %v655
        %v848 = vsub.f32 %v608, %v656
        %v849 = vsub.f32 %v609, %v657
        %v850 = vsub.f32 %v610, %v658
        %v851 = vsub.f32 %v611, %v659
        %v852 = vsub.f32 %v612, %v660
        %v853 = vsub.f32 %v613, %v661
        %v854 = vsub.f32 %v614, %v662
        %v855 = vmul.f32 %v847, 1.442695
        %v856 = vpow.pop %v855
        %v857 = vmul.f32 %v848, 1.442695
        %v858 = vpow.pop %v857
        %v859 = vmul.f32 %v849, 1.442695
        %v860 = vpow.pop %v859
        %v861 = vmul.f32 %v850, 1.442695
        %v862 = vpow.pop %v861
        %v863 = vmul.f32 %v851, 1.442695
        %v864 = vpow.pop %v863
        %v865 = vmul.f32 %v852, 1.442695
        %v866 = vpow.pop %v865
        %v867 = vmul.f32 %v853, 1.442695
        %v868 = vpow.pop %v867
        %v869 = vmul.f32 %v854, 1.442695
        %v870 = vpow.pop %v869
        %v871 = vadd.f32 %v839, %v856
        %v872 = vadd.f32 %v840, %v858
        %v873 = vadd.f32 %v841, %v860
        %v874 = vadd.f32 %v842, %v862
        %v875 = vadd.f32 %v843, %v864
        %v876 = vadd.f32 %v844, %v866
        %v877 = vadd.f32 %v845, %v868
        %v878 = vadd.f32 %v846, %v870
        %v879 = vsub.f32 %v627, %v655
        %v880 = vsub.f32 %v628, %v656
        %v881 = vsub.f32 %v629, %v657
        %v882 = vsub.f32 %v630, %v658
        %v883 = vsub.f32 %v631, %v659
        %v884 = vsub.f32 %v632, %v660
        %v885 = vsub.f32 %v633, %v661
        %v886 = vsub.f32 %v634, %v662
        %v887 = vmul.f32 %v879, 1.442695
        %v888 = vpow.pop %v887
        %v889 = vmul.f32 %v880, 1.442695
        %v890 = vpow.pop %v889
        %v891 = vmul.f32 %v881, 1.442695
        %v892 = vpow.pop %v891
        %v893 = vmul.f32 %v882, 1.442695
        %v894 = vpow.pop %v893
        %v895 = vmul.f32 %v883, 1.442695
        %v896 = vpow.pop %v895
        %v897 = vmul.f32 %v884, 1.442695
        %v898 = vpow.pop %v897
        %v899 = vmul.f32 %v885, 1.442695
        %v900 = vpow.pop %v899
        %v901 = vmul.f32 %v886, 1.442695
        %v902 = vpow.pop %v901
        %v903 = vadd.f32 %v871, %v888
        %v904 = vadd.f32 %v872, %v890
        %v905 = vadd.f32 %v873, %v892
        %v906 = vadd.f32 %v874, %v894
        %v907 = vadd.f32 %v875, %v896
        %v908 = vadd.f32 %v876, %v898
        %v909 = vadd.f32 %v877, %v900
        %v910 = vadd.f32 %v878, %v902
        %v911 = vsub.f32 %v647, %v655
        %v912 = vsub.f32 %v648, %v656
        %v913 = vsub.f32 %v649, %v657
        %v914 = vsub.f32 %v650, %v658
        %v915 = vsub.f32 %v651, %v659
        %v916 = vsub.f32 %v652, %v660
        %v917 = vsub.f32 %v653, %v661
        %v918 = vsub.f32 %v654, %v662
        %v919 = vmul.f32 %v911, 1.442695
        %v920 = vpow.pop %v919
        %v921 = vmul.f32 %v912, 1.442695
        %v922 = vpow.pop %v921
        %v923 = vmul.f32 %v913, 1.442695
        %v924 = vpow.pop %v923
        %v925 = vmul.f32 %v914, 1.442695
        %v926 = vpow.pop %v925
        %v927 = vmul.f32 %v915, 1.442695
        %v928 = vpow.pop %v927
        %v929 = vmul.f32 %v916, 1.442695
        %v930 = vpow.pop %v929
        %v931 = vmul.f32 %v917, 1.442695
        %v932 = vpow.pop %v931
        %v933 = vmul.f32 %v918, 1.442695
        %v934 = vpow.pop %v933
        %v935 = vadd.f32 %v903, %v920
        %v936 = vadd.f32 %v904, %v922
        %v937 = vadd.f32 %v905, %v924
        %v938 = vadd.f32 %v906, %v926
        %v939 = vadd.f32 %v907, %v928
        %v940 = vadd.f32 %v908, %v930
        %v941 = vadd.f32 %v909, %v932
        %v942 = vadd.f32 %v910, %v934
        %v943 = vrcp.pop %v935
        %v944 = vrcp.pop %v936
        %v945 = vrcp.pop %v937
        %v946 = vrcp.pop %v938
        %v947 = vrcp.pop %v939
        %v948 = vrcp.pop %v940
        %v949 = vrcp.pop %v941
        %v950 = vrcp.pop %v942
        %v951 = vmul.f32 %v935, %v943
        %v952 = vmul.f32 %v936, %v944
        %v953 = vmul.f32 %v937, %v945
        %v954 = vmul.f32 %v938, %v946
        %v955 = vmul.f32 %v939, %v947
        %v956 = vmul.f32 %v940, %v948
        %v957 = vmul.f32 %v941, %v949
        %v958 = vmul.f32 %v942, %v950
        %v959 = vsub.f32 2.0, %v951
        %v960 = vsub.f32 2.0, %v952
        %v961 = vsub.f32 2.0, %v953
        %v962 = vsub.f32 2.0, %v954
        %v963 = vsub.f32 2.0, %v955
        %v964 = vsub.f32 2.0, %v956
        %v965 = vsub.f32 2.0, %v957
        %v966 = vsub.f32 2.0, %v958
        %v967 = vmul.f32 %v943, %v959
        %v968 = vmul.f32 %v944, %v960
        %v969 = vmul.f32 %v945, %v961
        %v970 = vmul.f32 %v946, %v962
        %v971 = vmul.f32 %v947, %v963
        %v972 = vmul.f32 %v948, %v964
        %v973 = vmul.f32 %v949, %v965
        %v974 = vmul.f32 %v950, %v966
        %v975 = vmul.f32 %v672, %v967
        %v976 = vmul.f32 %v674, %v968
        %v977 = vmul.f32 %v676, %v969
        %v978 = vmul.f32 %v678, %v970
        %v979 = vmul.f32 %v680, %v971
        %v980 = vmul.f32 %v682, %v972
        %v981 = vmul.f32 %v684, %v973
        %v982 = vmul.f32 %v686, %v974
        %984 = vset.pattern.permute.xlu0 0
        %985 = vperm.xlu0 %984, %v319
        %v986 = vpop.permute.xlu0 %985
        %v988 = vmul.f32 %v986, %v307
        %v989 = vmul.f32 %v986, %v308
        %v990 = vmul.f32 %v986, %v309
        %v991 = vmul.f32 %v986, %v310
        %v992 = vmul.f32 %v986, %v311
        %v993 = vmul.f32 %v986, %v312
        %v994 = vmul.f32 %v986, %v313
        %v995 = vmul.f32 %v986, %v314
        %996 = vset.pattern.permute.xlu0 1
        %997 = vperm.xlu0 %996, %v319
        %v998 = vpop.permute.xlu0 %997
        %v1000 = vmul.f32 %v998, %v307
        %v1001 = vmul.f32 %v998, %v308
        %v1002 = vmul.f32 %v998, %v309
        %v1003 = vmul.f32 %v998, %v310
        %v1004 = vmul.f32 %v998, %v311
        %v1005 = vmul.f32 %v998, %v312
        %v1006 = vmul.f32 %v998, %v313
        %v1007 = vmul.f32 %v998, %v314
        %v1008 = vmul.f32 %v998, %v315
        %1018 = vrot.lane.b32.xlu0 %v1000, 127
        %v1019 = vpop.permute.xlu0 %1018
        %1020 = vrot.lane.b32.xlu0 %v1001, 127
        %v1021 = vpop.permute.xlu0 %1020
        %1022 = vrot.lane.b32.xlu0 %v1002, 127
        %v1023 = vpop.permute.xlu0 %1022
        %1024 = vrot.lane.b32.xlu0 %v1003, 127
        %v1025 = vpop.permute.xlu0 %1024
        %1026 = vrot.lane.b32.xlu0 %v1004, 127
        %v1027 = vpop.permute.xlu0 %1026
        %1028 = vrot.lane.b32.xlu0 %v1005, 127
        %v1029 = vpop.permute.xlu0 %1028
        %1030 = vrot.lane.b32.xlu0 %v1006, 127
        %v1031 = vpop.permute.xlu0 %1030
        %1032 = vrot.lane.b32.xlu0 %v1007, 127
        %v1033 = vpop.permute.xlu0 %1032
        %1034 = vrot.lane.b32.xlu0 %v1008, 127
        %v1035 = vpop.permute.xlu0 %1034
        %v1036 = vsel %vm348, %v1019, %v1021
        %v1037 = vsel %vm348, %v1021, %v1023
        %v1038 = vsel %vm348, %v1023, %v1025
        %v1039 = vsel %vm348, %v1025, %v1027
        %v1040 = vsel %vm348, %v1027, %v1029
        %v1041 = vsel %vm348, %v1029, %v1031
        %v1042 = vsel %vm348, %v1031, %v1033
        %v1043 = vsel %vm348, %v1033, %v1035
        %v1052 = vadd.f32 %v988, %v1036
        %v1053 = vadd.f32 %v989, %v1037
        %v1054 = vadd.f32 %v990, %v1038
        %v1055 = vadd.f32 %v991, %v1039
        %v1056 = vadd.f32 %v992, %v1040
        %v1057 = vadd.f32 %v993, %v1041
        %v1058 = vadd.f32 %v994, %v1042
        %v1059 = vadd.f32 %v995, %v1043
        %1060 = vset.pattern.permute.xlu0 2
        %1061 = vperm.xlu0 %1060, %v319
        %v1062 = vpop.permute.xlu0 %1061
        %v1064 = vmul.f32 %v1062, %v307
        %v1065 = vmul.f32 %v1062, %v308
        %v1066 = vmul.f32 %v1062, %v309
        %v1067 = vmul.f32 %v1062, %v310
        %v1068 = vmul.f32 %v1062, %v311
        %v1069 = vmul.f32 %v1062, %v312
        %v1070 = vmul.f32 %v1062, %v313
        %v1071 = vmul.f32 %v1062, %v314
        %v1072 = vmul.f32 %v1062, %v315
        %1082 = vrot.lane.b32.xlu0 %v1064, 126
        %v1083 = vpop.permute.xlu0 %1082
        %1084 = vrot.lane.b32.xlu0 %v1065, 126
        %v1085 = vpop.permute.xlu0 %1084
        %1086 = vrot.lane.b32.xlu0 %v1066, 126
        %v1087 = vpop.permute.xlu0 %1086
        %1088 = vrot.lane.b32.xlu0 %v1067, 126
        %v1089 = vpop.permute.xlu0 %1088
        %1090 = vrot.lane.b32.xlu0 %v1068, 126
        %v1091 = vpop.permute.xlu0 %1090
        %1092 = vrot.lane.b32.xlu0 %v1069, 126
        %v1093 = vpop.permute.xlu0 %1092
        %1094 = vrot.lane.b32.xlu0 %v1070, 126
        %v1095 = vpop.permute.xlu0 %1094
        %1096 = vrot.lane.b32.xlu0 %v1071, 126
        %v1097 = vpop.permute.xlu0 %1096
        %1098 = vrot.lane.b32.xlu0 %v1072, 126
        %v1099 = vpop.permute.xlu0 %1098
        %v1100 = vsel %vm391, %v1083, %v1085
        %v1101 = vsel %vm391, %v1085, %v1087
        %v1102 = vsel %vm391, %v1087, %v1089
        %v1103 = vsel %vm391, %v1089, %v1091
        %v1104 = vsel %vm391, %v1091, %v1093
        %v1105 = vsel %vm391, %v1093, %v1095
        %v1106 = vsel %vm391, %v1095, %v1097
        %v1107 = vsel %vm391, %v1097, %v1099
        %v1116 = vadd.f32 %v1052, %v1100
        %v1117 = vadd.f32 %v1053, %v1101
        %v1118 = vadd.f32 %v1054, %v1102
        %v1119 = vadd.f32 %v1055, %v1103
        %v1120 = vadd.f32 %v1056, %v1104
        %v1121 = vadd.f32 %v1057, %v1105
        %v1122 = vadd.f32 %v1058, %v1106
        %v1123 = vadd.f32 %v1059, %v1107
        %1124 = vset.pattern.permute.xlu0 3
        %1125 = vperm.xlu0 %1124, %v319
        %v1126 = vpop.permute.xlu0 %1125
        %v1128 = vmul.f32 %v1126, %v308
        %v1129 = vmul.f32 %v1126, %v309
        %v1130 = vmul.f32 %v1126, %v310
        %v1131 = vmul.f32 %v1126, %v311
        %v1132 = vmul.f32 %v1126, %v312
        %v1133 = vmul.f32 %v1126, %v313
        %v1134 = vmul.f32 %v1126, %v314
        %v1135 = vmul.f32 %v1126, %v315
        %v1136 = vadd.f32 %v1116, %v1128
        %v1137 = vadd.f32 %v1117, %v1129
        %v1138 = vadd.f32 %v1118, %v1130
        %v1139 = vadd.f32 %v1119, %v1131
        %v1140 = vadd.f32 %v1120, %v1132
        %v1141 = vadd.f32 %v1121, %v1133
        %v1142 = vadd.f32 %v1122, %v1134
        %v1143 = vadd.f32 %v1123, %v1135
        %1144 = vset.pattern.permute.xlu0 4
        %1145 = vperm.xlu0 %1144, %v319
        %v1146 = vpop.permute.xlu0 %1145
        %v1148 = vmul.f32 %v1146, %v308
        %v1149 = vmul.f32 %v1146, %v309
        %v1150 = vmul.f32 %v1146, %v310
        %v1151 = vmul.f32 %v1146, %v311
        %v1152 = vmul.f32 %v1146, %v312
        %v1153 = vmul.f32 %v1146, %v313
        %v1154 = vmul.f32 %v1146, %v314
        %v1155 = vmul.f32 %v1146, %v315
        %v1156 = vmul.f32 %v1146, %v316
        %1166 = vrot.lane.b32.xlu0 %v1148, 127
        %v1167 = vpop.permute.xlu0 %1166
        %1168 = vrot.lane.b32.xlu0 %v1149, 127
        %v1169 = vpop.permute.xlu0 %1168
        %1170 = vrot.lane.b32.xlu0 %v1150, 127
        %v1171 = vpop.permute.xlu0 %1170
        %1172 = vrot.lane.b32.xlu0 %v1151, 127
        %v1173 = vpop.permute.xlu0 %1172
        %1174 = vrot.lane.b32.xlu0 %v1152, 127
        %v1175 = vpop.permute.xlu0 %1174
        %1176 = vrot.lane.b32.xlu0 %v1153, 127
        %v1177 = vpop.permute.xlu0 %1176
        %1178 = vrot.lane.b32.xlu0 %v1154, 127
        %v1179 = vpop.permute.xlu0 %1178
        %1180 = vrot.lane.b32.xlu0 %v1155, 127
        %v1181 = vpop.permute.xlu0 %1180
        %1182 = vrot.lane.b32.xlu0 %v1156, 127
        %v1183 = vpop.permute.xlu0 %1182
        %v1184 = vsel %vm348, %v1167, %v1169
        %v1185 = vsel %vm348, %v1169, %v1171
        %v1186 = vsel %vm348, %v1171, %v1173
        %v1187 = vsel %vm348, %v1173, %v1175
        %v1188 = vsel %vm348, %v1175, %v1177
        %v1189 = vsel %vm348, %v1177, %v1179
        %v1190 = vsel %vm348, %v1179, %v1181
        %v1191 = vsel %vm348, %v1181, %v1183
        %v1200 = vadd.f32 %v1136, %v1184
        %v1201 = vadd.f32 %v1137, %v1185
        %v1202 = vadd.f32 %v1138, %v1186
        %v1203 = vadd.f32 %v1139, %v1187
        %v1204 = vadd.f32 %v1140, %v1188
        %v1205 = vadd.f32 %v1141, %v1189
        %v1206 = vadd.f32 %v1142, %v1190
        %v1207 = vadd.f32 %v1143, %v1191
        %1208 = vset.pattern.permute.xlu0 5
        %1209 = vperm.xlu0 %1208, %v319
        %v1210 = vpop.permute.xlu0 %1209
        %v1212 = vmul.f32 %v1210, %v308
        %v1213 = vmul.f32 %v1210, %v309
        %v1214 = vmul.f32 %v1210, %v310
        %v1215 = vmul.f32 %v1210, %v311
        %v1216 = vmul.f32 %v1210, %v312
        %v1217 = vmul.f32 %v1210, %v313
        %v1218 = vmul.f32 %v1210, %v314
        %v1219 = vmul.f32 %v1210, %v315
        %v1220 = vmul.f32 %v1210, %v316
        %1230 = vrot.lane.b32.xlu0 %v1212, 126
        %v1231 = vpop.permute.xlu0 %1230
        %1232 = vrot.lane.b32.xlu0 %v1213, 126
        %v1233 = vpop.permute.xlu0 %1232
        %1234 = vrot.lane.b32.xlu0 %v1214, 126
        %v1235 = vpop.permute.xlu0 %1234
        %1236 = vrot.lane.b32.xlu0 %v1215, 126
        %v1237 = vpop.permute.xlu0 %1236
        %1238 = vrot.lane.b32.xlu0 %v1216, 126
        %v1239 = vpop.permute.xlu0 %1238
        %1240 = vrot.lane.b32.xlu0 %v1217, 126
        %v1241 = vpop.permute.xlu0 %1240
        %1242 = vrot.lane.b32.xlu0 %v1218, 126
        %v1243 = vpop.permute.xlu0 %1242
        %1244 = vrot.lane.b32.xlu0 %v1219, 126
        %v1245 = vpop.permute.xlu0 %1244
        %1246 = vrot.lane.b32.xlu0 %v1220, 126
        %v1247 = vpop.permute.xlu0 %1246
        %v1248 = vsel %vm391, %v1231, %v1233
        %v1249 = vsel %vm391, %v1233, %v1235
        %v1250 = vsel %vm391, %v1235, %v1237
        %v1251 = vsel %vm391, %v1237, %v1239
        %v1252 = vsel %vm391, %v1239, %v1241
        %v1253 = vsel %vm391, %v1241, %v1243
        %v1254 = vsel %vm391, %v1243, %v1245
        %v1255 = vsel %vm391, %v1245, %v1247
        %v1264 = vadd.f32 %v1200, %v1248
        %v1265 = vadd.f32 %v1201, %v1249
        %v1266 = vadd.f32 %v1202, %v1250
        %v1267 = vadd.f32 %v1203, %v1251
        %v1268 = vadd.f32 %v1204, %v1252
        %v1269 = vadd.f32 %v1205, %v1253
        %v1270 = vadd.f32 %v1206, %v1254
        %v1271 = vadd.f32 %v1207, %v1255
        %1272 = vset.pattern.permute.xlu0 6
        %1273 = vperm.xlu0 %1272, %v319
        %v1274 = vpop.permute.xlu0 %1273
        %v1276 = vmul.f32 %v1274, %v309
        %v1277 = vmul.f32 %v1274, %v310
        %v1278 = vmul.f32 %v1274, %v311
        %v1279 = vmul.f32 %v1274, %v312
        %v1280 = vmul.f32 %v1274, %v313
        %v1281 = vmul.f32 %v1274, %v314
        %v1282 = vmul.f32 %v1274, %v315
        %v1283 = vmul.f32 %v1274, %v316
        %v1284 = vadd.f32 %v1264, %v1276
        %v1285 = vadd.f32 %v1265, %v1277
        %v1286 = vadd.f32 %v1266, %v1278
        %v1287 = vadd.f32 %v1267, %v1279
        %v1288 = vadd.f32 %v1268, %v1280
        %v1289 = vadd.f32 %v1269, %v1281
        %v1290 = vadd.f32 %v1270, %v1282
        %v1291 = vadd.f32 %v1271, %v1283
        %1292 = vset.pattern.permute.xlu0 7
        %1293 = vperm.xlu0 %1292, %v319
        %v1294 = vpop.permute.xlu0 %1293
        %v1296 = vmul.f32 %v1294, %v309
        %v1297 = vmul.f32 %v1294, %v310
        %v1298 = vmul.f32 %v1294, %v311
        %v1299 = vmul.f32 %v1294, %v312
        %v1300 = vmul.f32 %v1294, %v313
        %v1301 = vmul.f32 %v1294, %v314
        %v1302 = vmul.f32 %v1294, %v315
        %v1303 = vmul.f32 %v1294, %v316
        %v1304 = vmul.f32 %v1294, %v317
        %1314 = vrot.lane.b32.xlu0 %v1296, 127
        %v1315 = vpop.permute.xlu0 %1314
        %1316 = vrot.lane.b32.xlu0 %v1297, 127
        %v1317 = vpop.permute.xlu0 %1316
        %1318 = vrot.lane.b32.xlu0 %v1298, 127
        %v1319 = vpop.permute.xlu0 %1318
        %1320 = vrot.lane.b32.xlu0 %v1299, 127
        %v1321 = vpop.permute.xlu0 %1320
        %1322 = vrot.lane.b32.xlu0 %v1300, 127
        %v1323 = vpop.permute.xlu0 %1322
        %1324 = vrot.lane.b32.xlu0 %v1301, 127
        %v1325 = vpop.permute.xlu0 %1324
        %1326 = vrot.lane.b32.xlu0 %v1302, 127
        %v1327 = vpop.permute.xlu0 %1326
        %1328 = vrot.lane.b32.xlu0 %v1303, 127
        %v1329 = vpop.permute.xlu0 %1328
        %1330 = vrot.lane.b32.xlu0 %v1304, 127
        %v1331 = vpop.permute.xlu0 %1330
        %v1332 = vsel %vm348, %v1315, %v1317
        %v1333 = vsel %vm348, %v1317, %v1319
        %v1334 = vsel %vm348, %v1319, %v1321
        %v1335 = vsel %vm348, %v1321, %v1323
        %v1336 = vsel %vm348, %v1323, %v1325
        %v1337 = vsel %vm348, %v1325, %v1327
        %v1338 = vsel %vm348, %v1327, %v1329
        %v1339 = vsel %vm348, %v1329, %v1331
        %v1348 = vadd.f32 %v1284, %v1332
        %v1349 = vadd.f32 %v1285, %v1333
        %v1350 = vadd.f32 %v1286, %v1334
        %v1351 = vadd.f32 %v1287, %v1335
        %v1352 = vadd.f32 %v1288, %v1336
        %v1353 = vadd.f32 %v1289, %v1337
        %v1354 = vadd.f32 %v1290, %v1338
        %v1355 = vadd.f32 %v1291, %v1339
        %1356 = vset.pattern.permute.xlu0 8
        %1357 = vperm.xlu0 %1356, %v319
        %v1358 = vpop.permute.xlu0 %1357
        %v1360 = vmul.f32 %v1358, %v309
        %v1361 = vmul.f32 %v1358, %v310
        %v1362 = vmul.f32 %v1358, %v311
        %v1363 = vmul.f32 %v1358, %v312
        %v1364 = vmul.f32 %v1358, %v313
        %v1365 = vmul.f32 %v1358, %v314
        %v1366 = vmul.f32 %v1358, %v315
        %v1367 = vmul.f32 %v1358, %v316
        %v1368 = vmul.f32 %v1358, %v317
        %1378 = vrot.lane.b32.xlu0 %v1360, 126
        %v1379 = vpop.permute.xlu0 %1378
        %1380 = vrot.lane.b32.xlu0 %v1361, 126
        %v1381 = vpop.permute.xlu0 %1380
        %1382 = vrot.lane.b32.xlu0 %v1362, 126
        %v1383 = vpop.permute.xlu0 %1382
        %1384 = vrot.lane.b32.xlu0 %v1363, 126
        %v1385 = vpop.permute.xlu0 %1384
        %1386 = vrot.lane.b32.xlu0 %v1364, 126
        %v1387 = vpop.permute.xlu0 %1386
        %1388 = vrot.lane.b32.xlu0 %v1365, 126
        %v1389 = vpop.permute.xlu0 %1388
        %1390 = vrot.lane.b32.xlu0 %v1366, 126
        %v1391 = vpop.permute.xlu0 %1390
        %1392 = vrot.lane.b32.xlu0 %v1367, 126
        %v1393 = vpop.permute.xlu0 %1392
        %1394 = vrot.lane.b32.xlu0 %v1368, 126
        %v1395 = vpop.permute.xlu0 %1394
        %v1396 = vsel %vm391, %v1379, %v1381
        %v1397 = vsel %vm391, %v1381, %v1383
        %v1398 = vsel %vm391, %v1383, %v1385
        %v1399 = vsel %vm391, %v1385, %v1387
        %v1400 = vsel %vm391, %v1387, %v1389
        %v1401 = vsel %vm391, %v1389, %v1391
        %v1402 = vsel %vm391, %v1391, %v1393
        %v1403 = vsel %vm391, %v1393, %v1395
        %v1412 = vadd.f32 %v1348, %v1396
        %v1413 = vadd.f32 %v1349, %v1397
        %v1414 = vadd.f32 %v1350, %v1398
        %v1415 = vadd.f32 %v1351, %v1399
        %v1416 = vadd.f32 %v1352, %v1400
        %v1417 = vadd.f32 %v1353, %v1401
        %v1418 = vadd.f32 %v1354, %v1402
        %v1419 = vadd.f32 %v1355, %v1403
        %1421 = vset.pattern.permute.xlu0 0
        %1422 = vperm.xlu0 %1421, %v320
        %v1423 = vpop.permute.xlu0 %1422
        %v1425 = vadd.f32 %v1412, %v1423
        %v1426 = vadd.f32 %v1413, %v1423
        %v1427 = vadd.f32 %v1414, %v1423
        %v1428 = vadd.f32 %v1415, %v1423
        %v1429 = vadd.f32 %v1416, %v1423
        %v1430 = vadd.f32 %v1417, %v1423
        %v1431 = vadd.f32 %v1418, %v1423
        %v1432 = vadd.f32 %v1419, %v1423
        %v1433 = vmax.f32 %v1425, 0.0
        %v1434 = vmax.f32 %v1426, 0.0
        %v1435 = vmax.f32 %v1427, 0.0
        %v1436 = vmax.f32 %v1428, 0.0
        %v1437 = vmax.f32 %v1429, 0.0
        %v1438 = vmax.f32 %v1430, 0.0
        %v1439 = vmax.f32 %v1431, 0.0
        %v1440 = vmax.f32 %v1432, 0.0
        %v1441 = vmul.f32 %v1433, %v975
        %v1442 = vmul.f32 %v1434, %v976
        %v1443 = vmul.f32 %v1435, %v977
        %v1444 = vmul.f32 %v1436, %v978
        %v1445 = vmul.f32 %v1437, %v979
        %v1446 = vmul.f32 %v1438, %v980
        %v1447 = vmul.f32 %v1439, %v981
        %v1448 = vmul.f32 %v1440, %v982
        %s1449 = smul.u32 0, 8
        %s1450 = smul.addr %s1449, 8
        %s1451 = scalar_lea.vmem [#allocation4], %s1450
        %1452 = vst [vmem:[%s1451] sm:$0xff] %v1441
        %1453 = vst [vmem:[%s1451 + $0x8] sm:$0xff] %v1442
        %1454 = vst [vmem:[%s1451 + $0x10] sm:$0xff] %v1443
        %1455 = vst [vmem:[%s1451 + $0x18] sm:$0xff] %v1444
        %1456 = vst [vmem:[%s1451 + $0x20] sm:$0xff] %v1445
        %1457 = vst [vmem:[%s1451 + $0x28] sm:$0xff] %v1446
        %1458 = vst [vmem:[%s1451 + $0x30] sm:$0xff] %v1447
        %1459 = vst [vmem:[%s1451 + $0x38] sm:$0xff] %v1448
        %v1460 = vmul.f32 %v696, %v967
        %v1461 = vmul.f32 %v698, %v968
        %v1462 = vmul.f32 %v700, %v969
        %v1463 = vmul.f32 %v702, %v970
        %v1464 = vmul.f32 %v704, %v971
        %v1465 = vmul.f32 %v706, %v972
        %v1466 = vmul.f32 %v708, %v973
        %v1467 = vmul.f32 %v710, %v974
        %1468 = vset.pattern.permute.xlu0 9
        %1469 = vperm.xlu0 %1468, %v319
        %v1470 = vpop.permute.xlu0 %1469
        %v1472 = vmul.f32 %v1470, %v307
        %v1473 = vmul.f32 %v1470, %v308
        %v1474 = vmul.f32 %v1470, %v309
        %v1475 = vmul.f32 %v1470, %v310
        %v1476 = vmul.f32 %v1470, %v311
        %v1477 = vmul.f32 %v1470, %v312
        %v1478 = vmul.f32 %v1470, %v313
        %v1479 = vmul.f32 %v1470, %v314
        %1480 = vset.pattern.permute.xlu0 10
        %1481 = vperm.xlu0 %1480, %v319
        %v1482 = vpop.permute.xlu0 %1481
        %v1484 = vmul.f32 %v1482, %v307
        %v1485 = vmul.f32 %v1482, %v308
        %v1486 = vmul.f32 %v1482, %v309
        %v1487 = vmul.f32 %v1482, %v310
        %v1488 = vmul.f32 %v1482, %v311
        %v1489 = vmul.f32 %v1482, %v312
        %v1490 = vmul.f32 %v1482, %v313
        %v1491 = vmul.f32 %v1482, %v314
        %v1492 = vmul.f32 %v1482, %v315
        %1502 = vrot.lane.b32.xlu0 %v1484, 127
        %v1503 = vpop.permute.xlu0 %1502
        %1504 = vrot.lane.b32.xlu0 %v1485, 127
        %v1505 = vpop.permute.xlu0 %1504
        %1506 = vrot.lane.b32.xlu0 %v1486, 127
        %v1507 = vpop.permute.xlu0 %1506
        %1508 = vrot.lane.b32.xlu0 %v1487, 127
        %v1509 = vpop.permute.xlu0 %1508
        %1510 = vrot.lane.b32.xlu0 %v1488, 127
        %v1511 = vpop.permute.xlu0 %1510
        %1512 = vrot.lane.b32.xlu0 %v1489, 127
        %v1513 = vpop.permute.xlu0 %1512
        %1514 = vrot.lane.b32.xlu0 %v1490, 127
        %v1515 = vpop.permute.xlu0 %1514
        %1516 = vrot.lane.b32.xlu0 %v1491, 127
        %v1517 = vpop.permute.xlu0 %1516
        %1518 = vrot.lane.b32.xlu0 %v1492, 127
        %v1519 = vpop.permute.xlu0 %1518
        %v1520 = vsel %vm348, %v1503, %v1505
        %v1521 = vsel %vm348, %v1505, %v1507
        %v1522 = vsel %vm348, %v1507, %v1509
        %v1523 = vsel %vm348, %v1509, %v1511
        %v1524 = vsel %vm348, %v1511, %v1513
        %v1525 = vsel %vm348, %v1513, %v1515
        %v1526 = vsel %vm348, %v1515, %v1517
        %v1527 = vsel %vm348, %v1517, %v1519
        %v1536 = vadd.f32 %v1472, %v1520
        %v1537 = vadd.f32 %v1473, %v1521
        %v1538 = vadd.f32 %v1474, %v1522
        %v1539 = vadd.f32 %v1475, %v1523
        %v1540 = vadd.f32 %v1476, %v1524
        %v1541 = vadd.f32 %v1477, %v1525
        %v1542 = vadd.f32 %v1478, %v1526
        %v1543 = vadd.f32 %v1479, %v1527
        %1544 = vset.pattern.permute.xlu0 11
        %1545 = vperm.xlu0 %1544, %v319
        %v1546 = vpop.permute.xlu0 %1545
        %v1548 = vmul.f32 %v1546, %v307
        %v1549 = vmul.f32 %v1546, %v308
        %v1550 = vmul.f32 %v1546, %v309
        %v1551 = vmul.f32 %v1546, %v310
        %v1552 = vmul.f32 %v1546, %v311
        %v1553 = vmul.f32 %v1546, %v312
        %v1554 = vmul.f32 %v1546, %v313
        %v1555 = vmul.f32 %v1546, %v314
        %v1556 = vmul.f32 %v1546, %v315
        %1566 = vrot.lane.b32.xlu0 %v1548, 126
        %v1567 = vpop.permute.xlu0 %1566
        %1568 = vrot.lane.b32.xlu0 %v1549, 126
        %v1569 = vpop.permute.xlu0 %1568
        %1570 = vrot.lane.b32.xlu0 %v1550, 126
        %v1571 = vpop.permute.xlu0 %1570
        %1572 = vrot.lane.b32.xlu0 %v1551, 126
        %v1573 = vpop.permute.xlu0 %1572
        %1574 = vrot.lane.b32.xlu0 %v1552, 126
        %v1575 = vpop.permute.xlu0 %1574
        %1576 = vrot.lane.b32.xlu0 %v1553, 126
        %v1577 = vpop.permute.xlu0 %1576
        %1578 = vrot.lane.b32.xlu0 %v1554, 126
        %v1579 = vpop.permute.xlu0 %1578
        %1580 = vrot.lane.b32.xlu0 %v1555, 126
        %v1581 = vpop.permute.xlu0 %1580
        %1582 = vrot.lane.b32.xlu0 %v1556, 126
        %v1583 = vpop.permute.xlu0 %1582
        %v1584 = vsel %vm391, %v1567, %v1569
        %v1585 = vsel %vm391, %v1569, %v1571
        %v1586 = vsel %vm391, %v1571, %v1573
        %v1587 = vsel %vm391, %v1573, %v1575
        %v1588 = vsel %vm391, %v1575, %v1577
        %v1589 = vsel %vm391, %v1577, %v1579
        %v1590 = vsel %vm391, %v1579, %v1581
        %v1591 = vsel %vm391, %v1581, %v1583
        %v1600 = vadd.f32 %v1536, %v1584
        %v1601 = vadd.f32 %v1537, %v1585
        %v1602 = vadd.f32 %v1538, %v1586
        %v1603 = vadd.f32 %v1539, %v1587
        %v1604 = vadd.f32 %v1540, %v1588
        %v1605 = vadd.f32 %v1541, %v1589
        %v1606 = vadd.f32 %v1542, %v1590
        %v1607 = vadd.f32 %v1543, %v1591
        %1608 = vset.pattern.permute.xlu0 12
        %1609 = vperm.xlu0 %1608, %v319
        %v1610 = vpop.permute.xlu0 %1609
        %v1612 = vmul.f32 %v1610, %v308
        %v1613 = vmul.f32 %v1610, %v309
        %v1614 = vmul.f32 %v1610, %v310
        %v1615 = vmul.f32 %v1610, %v311
        %v1616 = vmul.f32 %v1610, %v312
        %v1617 = vmul.f32 %v1610, %v313
        %v1618 = vmul.f32 %v1610, %v314
        %v1619 = vmul.f32 %v1610, %v315
        %v1620 = vadd.f32 %v1600, %v1612
        %v1621 = vadd.f32 %v1601, %v1613
        %v1622 = vadd.f32 %v1602, %v1614
        %v1623 = vadd.f32 %v1603, %v1615
        %v1624 = vadd.f32 %v1604, %v1616
        %v1625 = vadd.f32 %v1605, %v1617
        %v1626 = vadd.f32 %v1606, %v1618
        %v1627 = vadd.f32 %v1607, %v1619
        %1628 = vset.pattern.permute.xlu0 13
        %1629 = vperm.xlu0 %1628, %v319
        %v1630 = vpop.permute.xlu0 %1629
        %v1632 = vmul.f32 %v1630, %v308
        %v1633 = vmul.f32 %v1630, %v309
        %v1634 = vmul.f32 %v1630, %v310
        %v1635 = vmul.f32 %v1630, %v311
        %v1636 = vmul.f32 %v1630, %v312
        %v1637 = vmul.f32 %v1630, %v313
        %v1638 = vmul.f32 %v1630, %v314
        %v1639 = vmul.f32 %v1630, %v315
        %v1640 = vmul.f32 %v1630, %v316
        %1650 = vrot.lane.b32.xlu0 %v1632, 127
        %v1651 = vpop.permute.xlu0 %1650
        %1652 = vrot.lane.b32.xlu0 %v1633, 127
        %v1653 = vpop.permute.xlu0 %1652
        %1654 = vrot.lane.b32.xlu0 %v1634, 127
        %v1655 = vpop.permute.xlu0 %1654
        %1656 = vrot.lane.b32.xlu0 %v1635, 127
        %v1657 = vpop.permute.xlu0 %1656
        %1658 = vrot.lane.b32.xlu0 %v1636, 127
        %v1659 = vpop.permute.xlu0 %1658
        %1660 = vrot.lane.b32.xlu0 %v1637, 127
        %v1661 = vpop.permute.xlu0 %1660
        %1662 = vrot.lane.b32.xlu0 %v1638, 127
        %v1663 = vpop.permute.xlu0 %1662
        %1664 = vrot.lane.b32.xlu0 %v1639, 127
        %v1665 = vpop.permute.xlu0 %1664
        %1666 = vrot.lane.b32.xlu0 %v1640, 127
        %v1667 = vpop.permute.xlu0 %1666
        %v1668 = vsel %vm348, %v1651, %v1653
        %v1669 = vsel %vm348, %v1653, %v1655
        %v1670 = vsel %vm348, %v1655, %v1657
        %v1671 = vsel %vm348, %v1657, %v1659
        %v1672 = vsel %vm348, %v1659, %v1661
        %v1673 = vsel %vm348, %v1661, %v1663
        %v1674 = vsel %vm348, %v1663, %v1665
        %v1675 = vsel %vm348, %v1665, %v1667
        %v1684 = vadd.f32 %v1620, %v1668
        %v1685 = vadd.f32 %v1621, %v1669
        %v1686 = vadd.f32 %v1622, %v1670
        %v1687 = vadd.f32 %v1623, %v1671
        %v1688 = vadd.f32 %v1624, %v1672
        %v1689 = vadd.f32 %v1625, %v1673
        %v1690 = vadd.f32 %v1626, %v1674
        %v1691 = vadd.f32 %v1627, %v1675
        %1692 = vset.pattern.permute.xlu0 14
        %1693 = vperm.xlu0 %1692, %v319
        %v1694 = vpop.permute.xlu0 %1693
        %v1696 = vmul.f32 %v1694, %v308
        %v1697 = vmul.f32 %v1694, %v309
        %v1698 = vmul.f32 %v1694, %v310
        %v1699 = vmul.f32 %v1694, %v311
        %v1700 = vmul.f32 %v1694, %v312
        %v1701 = vmul.f32 %v1694, %v313
        %v1702 = vmul.f32 %v1694, %v314
        %v1703 = vmul.f32 %v1694, %v315
        %v1704 = vmul.f32 %v1694, %v316
        %1714 = vrot.lane.b32.xlu0 %v1696, 126
        %v1715 = vpop.permute.xlu0 %1714
        %1716 = vrot.lane.b32.xlu0 %v1697, 126
        %v1717 = vpop.permute.xlu0 %1716
        %1718 = vrot.lane.b32.xlu0 %v1698, 126
        %v1719 = vpop.permute.xlu0 %1718
        %1720 = vrot.lane.b32.xlu0 %v1699, 126
        %v1721 = vpop.permute.xlu0 %1720
        %1722 = vrot.lane.b32.xlu0 %v1700, 126
        %v1723 = vpop.permute.xlu0 %1722
        %1724 = vrot.lane.b32.xlu0 %v1701, 126
        %v1725 = vpop.permute.xlu0 %1724
        %1726 = vrot.lane.b32.xlu0 %v1702, 126
        %v1727 = vpop.permute.xlu0 %1726
        %1728 = vrot.lane.b32.xlu0 %v1703, 126
        %v1729 = vpop.permute.xlu0 %1728
        %1730 = vrot.lane.b32.xlu0 %v1704, 126
        %v1731 = vpop.permute.xlu0 %1730
        %v1732 = vsel %vm391, %v1715, %v1717
        %v1733 = vsel %vm391, %v1717, %v1719
        %v1734 = vsel %vm391, %v1719, %v1721
        %v1735 = vsel %vm391, %v1721, %v1723
        %v1736 = vsel %vm391, %v1723, %v1725
        %v1737 = vsel %vm391, %v1725, %v1727
        %v1738 = vsel %vm391, %v1727, %v1729
        %v1739 = vsel %vm391, %v1729, %v1731
        %v1748 = vadd.f32 %v1684, %v1732
        %v1749 = vadd.f32 %v1685, %v1733
        %v1750 = vadd.f32 %v1686, %v1734
        %v1751 = vadd.f32 %v1687, %v1735
        %v1752 = vadd.f32 %v1688, %v1736
        %v1753 = vadd.f32 %v1689, %v1737
        %v1754 = vadd.f32 %v1690, %v1738
        %v1755 = vadd.f32 %v1691, %v1739
        %1756 = vset.pattern.permute.xlu0 15
        %1757 = vperm.xlu0 %1756, %v319
        %v1758 = vpop.permute.xlu0 %1757
        %v1760 = vmul.f32 %v1758, %v309
        %v1761 = vmul.f32 %v1758, %v310
        %v1762 = vmul.f32 %v1758, %v311
        %v1763 = vmul.f32 %v1758, %v312
        %v1764 = vmul.f32 %v1758, %v313
        %v1765 = vmul.f32 %v1758, %v314
        %v1766 = vmul.f32 %v1758, %v315
        %v1767 = vmul.f32 %v1758, %v316
        %v1768 = vadd.f32 %v1748, %v1760
        %v1769 = vadd.f32 %v1749, %v1761
        %v1770 = vadd.f32 %v1750, %v1762
        %v1771 = vadd.f32 %v1751, %v1763
        %v1772 = vadd.f32 %v1752, %v1764
        %v1773 = vadd.f32 %v1753, %v1765
        %v1774 = vadd.f32 %v1754, %v1766
        %v1775 = vadd.f32 %v1755, %v1767
        %1776 = vset.pattern.permute.xlu0 16
        %1777 = vperm.xlu0 %1776, %v319
        %v1778 = vpop.permute.xlu0 %1777
        %v1780 = vmul.f32 %v1778, %v309
        %v1781 = vmul.f32 %v1778, %v310
        %v1782 = vmul.f32 %v1778, %v311
        %v1783 = vmul.f32 %v1778, %v312
        %v1784 = vmul.f32 %v1778, %v313
        %v1785 = vmul.f32 %v1778, %v314
        %v1786 = vmul.f32 %v1778, %v315
        %v1787 = vmul.f32 %v1778, %v316
        %v1788 = vmul.f32 %v1778, %v317
        %1798 = vrot.lane.b32.xlu0 %v1780, 127
        %v1799 = vpop.permute.xlu0 %1798
        %1800 = vrot.lane.b32.xlu0 %v1781, 127
        %v1801 = vpop.permute.xlu0 %1800
        %1802 = vrot.lane.b32.xlu0 %v1782, 127
        %v1803 = vpop.permute.xlu0 %1802
        %1804 = vrot.lane.b32.xlu0 %v1783, 127
        %v1805 = vpop.permute.xlu0 %1804
        %1806 = vrot.lane.b32.xlu0 %v1784, 127
        %v1807 = vpop.permute.xlu0 %1806
        %1808 = vrot.lane.b32.xlu0 %v1785, 127
        %v1809 = vpop.permute.xlu0 %1808
        %1810 = vrot.lane.b32.xlu0 %v1786, 127
        %v1811 = vpop.permute.xlu0 %1810
        %1812 = vrot.lane.b32.xlu0 %v1787, 127
        %v1813 = vpop.permute.xlu0 %1812
        %1814 = vrot.lane.b32.xlu0 %v1788, 127
        %v1815 = vpop.permute.xlu0 %1814
        %v1816 = vsel %vm348, %v1799, %v1801
        %v1817 = vsel %vm348, %v1801, %v1803
        %v1818 = vsel %vm348, %v1803, %v1805
        %v1819 = vsel %vm348, %v1805, %v1807
        %v1820 = vsel %vm348, %v1807, %v1809
        %v1821 = vsel %vm348, %v1809, %v1811
        %v1822 = vsel %vm348, %v1811, %v1813
        %v1823 = vsel %vm348, %v1813, %v1815
        %v1832 = vadd.f32 %v1768, %v1816
        %v1833 = vadd.f32 %v1769, %v1817
        %v1834 = vadd.f32 %v1770, %v1818
        %v1835 = vadd.f32 %v1771, %v1819
        %v1836 = vadd.f32 %v1772, %v1820
        %v1837 = vadd.f32 %v1773, %v1821
        %v1838 = vadd.f32 %v1774, %v1822
        %v1839 = vadd.f32 %v1775, %v1823
        %1840 = vset.pattern.permute.xlu0 17
        %1841 = vperm.xlu0 %1840, %v319
        %v1842 = vpop.permute.xlu0 %1841
        %v1844 = vmul.f32 %v1842, %v309
        %v1845 = vmul.f32 %v1842, %v310
        %v1846 = vmul.f32 %v1842, %v311
        %v1847 = vmul.f32 %v1842, %v312
        %v1848 = vmul.f32 %v1842, %v313
        %v1849 = vmul.f32 %v1842, %v314
        %v1850 = vmul.f32 %v1842, %v315
        %v1851 = vmul.f32 %v1842, %v316
        %v1852 = vmul.f32 %v1842, %v317
        %1862 = vrot.lane.b32.xlu0 %v1844, 126
        %v1863 = vpop.permute.xlu0 %1862
        %1864 = vrot.lane.b32.xlu0 %v1845, 126
        %v1865 = vpop.permute.xlu0 %1864
        %1866 = vrot.lane.b32.xlu0 %v1846, 126
        %v1867 = vpop.permute.xlu0 %1866
        %1868 = vrot.lane.b32.xlu0 %v1847, 126
        %v1869 = vpop.permute.xlu0 %1868
        %1870 = vrot.lane.b32.xlu0 %v1848, 126
        %v1871 = vpop.permute.xlu0 %1870
        %1872 = vrot.lane.b32.xlu0 %v1849, 126
        %v1873 = vpop.permute.xlu0 %1872
        %1874 = vrot.lane.b32.xlu0 %v1850, 126
        %v1875 = vpop.permute.xlu0 %1874
        %1876 = vrot.lane.b32.xlu0 %v1851, 126
        %v1877 = vpop.permute.xlu0 %1876
        %1878 = vrot.lane.b32.xlu0 %v1852, 126
        %v1879 = vpop.permute.xlu0 %1878
        %v1880 = vsel %vm391, %v1863, %v1865
        %v1881 = vsel %vm391, %v1865, %v1867
        %v1882 = vsel %vm391, %v1867, %v1869
        %v1883 = vsel %vm391, %v1869, %v1871
        %v1884 = vsel %vm391, %v1871, %v1873
        %v1885 = vsel %vm391, %v1873, %v1875
        %v1886 = vsel %vm391, %v1875, %v1877
        %v1887 = vsel %vm391, %v1877, %v1879
        %v1896 = vadd.f32 %v1832, %v1880
        %v1897 = vadd.f32 %v1833, %v1881
        %v1898 = vadd.f32 %v1834, %v1882
        %v1899 = vadd.f32 %v1835, %v1883
        %v1900 = vadd.f32 %v1836, %v1884
        %v1901 = vadd.f32 %v1837, %v1885
        %v1902 = vadd.f32 %v1838, %v1886
        %v1903 = vadd.f32 %v1839, %v1887
        %1904 = vset.pattern.permute.xlu0 1
        %1905 = vperm.xlu0 %1904, %v320
        %v1906 = vpop.permute.xlu0 %1905
        %v1908 = vadd.f32 %v1896, %v1906
        %v1909 = vadd.f32 %v1897, %v1906
        %v1910 = vadd.f32 %v1898, %v1906
        %v1911 = vadd.f32 %v1899, %v1906
        %v1912 = vadd.f32 %v1900, %v1906
        %v1913 = vadd.f32 %v1901, %v1906
        %v1914 = vadd.f32 %v1902, %v1906
        %v1915 = vadd.f32 %v1903, %v1906
        %v1916 = vmax.f32 %v1908, 0.0
        %v1917 = vmax.f32 %v1909, 0.0
        %v1918 = vmax.f32 %v1910, 0.0
        %v1919 = vmax.f32 %v1911, 0.0
        %v1920 = vmax.f32 %v1912, 0.0
        %v1921 = vmax.f32 %v1913, 0.0
        %v1922 = vmax.f32 %v1914, 0.0
        %v1923 = vmax.f32 %v1915, 0.0
        %s1924 = sadd.s32 0, 8
        %v1925 = vmul.f32 %v1916, %v1460
        %v1926 = vmul.f32 %v1917, %v1461
        %v1927 = vmul.f32 %v1918, %v1462
        %v1928 = vmul.f32 %v1919, %v1463
        %v1929 = vmul.f32 %v1920, %v1464
        %v1930 = vmul.f32 %v1921, %v1465
        %v1931 = vmul.f32 %v1922, %v1466
        %v1932 = vmul.f32 %v1923, %v1467
        %s1933 = sshra.s32 %s1924, 3
        %s1934 = sand.u32 %s1924, 7
        %s1935 = smul.u32 %s1933, 8
        %s1936 = smul.addr %s1935, 8
        %s1937 = scalar_lea.vmem [#allocation4], %s1936
        %1938 = vst [vmem:[%s1937] sm:$0xff] %v1925
        %1939 = vst [vmem:[%s1937 + $0x8] sm:$0xff] %v1926
        %1940 = vst [vmem:[%s1937 + $0x10] sm:$0xff] %v1927
        %1941 = vst [vmem:[%s1937 + $0x18] sm:$0xff] %v1928
        %1942 = vst [vmem:[%s1937 + $0x20] sm:$0xff] %v1929
        %1943 = vst [vmem:[%s1937 + $0x28] sm:$0xff] %v1930
        %1944 = vst [vmem:[%s1937 + $0x30] sm:$0xff] %v1931
        %1945 = vst [vmem:[%s1937 + $0x38] sm:$0xff] %v1932
        %v1946 = vmul.f32 %v728, %v967
        %v1947 = vmul.f32 %v730, %v968
        %v1948 = vmul.f32 %v732, %v969
        %v1949 = vmul.f32 %v734, %v970
        %v1950 = vmul.f32 %v736, %v971
        %v1951 = vmul.f32 %v738, %v972
        %v1952 = vmul.f32 %v740, %v973
        %v1953 = vmul.f32 %v742, %v974
        %1954 = vset.pattern.permute.xlu0 18
        %1955 = vperm.xlu0 %1954, %v319
        %v1956 = vpop.permute.xlu0 %1955
        %v1958 = vmul.f32 %v1956, %v307
        %v1959 = vmul.f32 %v1956, %v308
        %v1960 = vmul.f32 %v1956, %v309
        %v1961 = vmul.f32 %v1956, %v310
        %v1962 = vmul.f32 %v1956, %v311
        %v1963 = vmul.f32 %v1956, %v312
        %v1964 = vmul.f32 %v1956, %v313
        %v1965 = vmul.f32 %v1956, %v314
        %1966 = vset.pattern.permute.xlu0 19
        %1967 = vperm.xlu0 %1966, %v319
        %v1968 = vpop.permute.xlu0 %1967
        %v1970 = vmul.f32 %v1968, %v307
        %v1971 = vmul.f32 %v1968, %v308
        %v1972 = vmul.f32 %v1968, %v309
        %v1973 = vmul.f32 %v1968, %v310
        %v1974 = vmul.f32 %v1968, %v311
        %v1975 = vmul.f32 %v1968, %v312
        %v1976 = vmul.f32 %v1968, %v313
        %v1977 = vmul.f32 %v1968, %v314
        %v1978 = vmul.f32 %v1968, %v315
        %1988 = vrot.lane.b32.xlu0 %v1970, 127
        %v1989 = vpop.permute.xlu0 %1988
        %1990 = vrot.lane.b32.xlu0 %v1971, 127
        %v1991 = vpop.permute.xlu0 %1990
        %1992 = vrot.lane.b32.xlu0 %v1972, 127
        %v1993 = vpop.permute.xlu0 %1992
        %1994 = vrot.lane.b32.xlu0 %v1973, 127
        %v1995 = vpop.permute.xlu0 %1994
        %1996 = vrot.lane.b32.xlu0 %v1974, 127
        %v1997 = vpop.permute.xlu0 %1996
        %1998 = vrot.lane.b32.xlu0 %v1975, 127
        %v1999 = vpop.permute.xlu0 %1998
        %2000 = vrot.lane.b32.xlu0 %v1976, 127
        %v2001 = vpop.permute.xlu0 %2000
        %2002 = vrot.lane.b32.xlu0 %v1977, 127
        %v2003 = vpop.permute.xlu0 %2002
        %2004 = vrot.lane.b32.xlu0 %v1978, 127
        %v2005 = vpop.permute.xlu0 %2004
        %v2006 = vsel %vm348, %v1989, %v1991
        %v2007 = vsel %vm348, %v1991, %v1993
        %v2008 = vsel %vm348, %v1993, %v1995
        %v2009 = vsel %vm348, %v1995, %v1997
        %v2010 = vsel %vm348, %v1997, %v1999
        %v2011 = vsel %vm348, %v1999, %v2001
        %v2012 = vsel %vm348, %v2001, %v2003
        %v2013 = vsel %vm348, %v2003, %v2005
        %v2022 = vadd.f32 %v1958, %v2006
        %v2023 = vadd.f32 %v1959, %v2007
        %v2024 = vadd.f32 %v1960, %v2008
        %v2025 = vadd.f32 %v1961, %v2009
        %v2026 = vadd.f32 %v1962, %v2010
        %v2027 = vadd.f32 %v1963, %v2011
        %v2028 = vadd.f32 %v1964, %v2012
        %v2029 = vadd.f32 %v1965, %v2013
        %2030 = vset.pattern.permute.xlu0 20
        %2031 = vperm.xlu0 %2030, %v319
        %v2032 = vpop.permute.xlu0 %2031
        %v2034 = vmul.f32 %v2032, %v307
        %v2035 = vmul.f32 %v2032, %v308
        %v2036 = vmul.f32 %v2032, %v309
        %v2037 = vmul.f32 %v2032, %v310
        %v2038 = vmul.f32 %v2032, %v311
        %v2039 = vmul.f32 %v2032, %v312
        %v2040 = vmul.f32 %v2032, %v313
        %v2041 = vmul.f32 %v2032, %v314
        %v2042 = vmul.f32 %v2032, %v315
        %2052 = vrot.lane.b32.xlu0 %v2034, 126
        %v2053 = vpop.permute.xlu0 %2052
        %2054 = vrot.lane.b32.xlu0 %v2035, 126
        %v2055 = vpop.permute.xlu0 %2054
        %2056 = vrot.lane.b32.xlu0 %v2036, 126
        %v2057 = vpop.permute.xlu0 %2056
        %2058 = vrot.lane.b32.xlu0 %v2037, 126
        %v2059 = vpop.permute.xlu0 %2058
        %2060 = vrot.lane.b32.xlu0 %v2038, 126
        %v2061 = vpop.permute.xlu0 %2060
        %2062 = vrot.lane.b32.xlu0 %v2039, 126
        %v2063 = vpop.permute.xlu0 %2062
        %2064 = vrot.lane.b32.xlu0 %v2040, 126
        %v2065 = vpop.permute.xlu0 %2064
        %2066 = vrot.lane.b32.xlu0 %v2041, 126
        %v2067 = vpop.permute.xlu0 %2066
        %2068 = vrot.lane.b32.xlu0 %v2042, 126
        %v2069 = vpop.permute.xlu0 %2068
        %v2070 = vsel %vm391, %v2053, %v2055
        %v2071 = vsel %vm391, %v2055, %v2057
        %v2072 = vsel %vm391, %v2057, %v2059
        %v2073 = vsel %vm391, %v2059, %v2061
        %v2074 = vsel %vm391, %v2061, %v2063
        %v2075 = vsel %vm391, %v2063, %v2065
        %v2076 = vsel %vm391, %v2065, %v2067
        %v2077 = vsel %vm391, %v2067, %v2069
        %v2086 = vadd.f32 %v2022, %v2070
        %v2087 = vadd.f32 %v2023, %v2071
        %v2088 = vadd.f32 %v2024, %v2072
        %v2089 = vadd.f32 %v2025, %v2073
        %v2090 = vadd.f32 %v2026, %v2074
        %v2091 = vadd.f32 %v2027, %v2075
        %v2092 = vadd.f32 %v2028, %v2076
        %v2093 = vadd.f32 %v2029, %v2077
        %2094 = vset.pattern.permute.xlu0 21
        %2095 = vperm.xlu0 %2094, %v319
        %v2096 = vpop.permute.xlu0 %2095
        %v2098 = vmul.f32 %v2096, %v308
        %v2099 = vmul.f32 %v2096, %v309
        %v2100 = vmul.f32 %v2096, %v310
        %v2101 = vmul.f32 %v2096, %v311
        %v2102 = vmul.f32 %v2096, %v312
        %v2103 = vmul.f32 %v2096, %v313
        %v2104 = vmul.f32 %v2096, %v314
        %v2105 = vmul.f32 %v2096, %v315
        %v2106 = vadd.f32 %v2086, %v2098
        %v2107 = vadd.f32 %v2087, %v2099
        %v2108 = vadd.f32 %v2088, %v2100
        %v2109 = vadd.f32 %v2089, %v2101
        %v2110 = vadd.f32 %v2090, %v2102
        %v2111 = vadd.f32 %v2091, %v2103
        %v2112 = vadd.f32 %v2092, %v2104
        %v2113 = vadd.f32 %v2093, %v2105
        %2114 = vset.pattern.permute.xlu0 22
        %2115 = vperm.xlu0 %2114, %v319
        %v2116 = vpop.permute.xlu0 %2115
        %v2118 = vmul.f32 %v2116, %v308
        %v2119 = vmul.f32 %v2116, %v309
        %v2120 = vmul.f32 %v2116, %v310
        %v2121 = vmul.f32 %v2116, %v311
        %v2122 = vmul.f32 %v2116, %v312
        %v2123 = vmul.f32 %v2116, %v313
        %v2124 = vmul.f32 %v2116, %v314
        %v2125 = vmul.f32 %v2116, %v315
        %v2126 = vmul.f32 %v2116, %v316
        %2136 = vrot.lane.b32.xlu0 %v2118, 127
        %v2137 = vpop.permute.xlu0 %2136
        %2138 = vrot.lane.b32.xlu0 %v2119, 127
        %v2139 = vpop.permute.xlu0 %2138
        %2140 = vrot.lane.b32.xlu0 %v2120, 127
        %v2141 = vpop.permute.xlu0 %2140
        %2142 = vrot.lane.b32.xlu0 %v2121, 127
        %v2143 = vpop.permute.xlu0 %2142
        %2144 = vrot.lane.b32.xlu0 %v2122, 127
        %v2145 = vpop.permute.xlu0 %2144
        %2146 = vrot.lane.b32.xlu0 %v2123, 127
        %v2147 = vpop.permute.xlu0 %2146
        %2148 = vrot.lane.b32.xlu0 %v2124, 127
        %v2149 = vpop.permute.xlu0 %2148
        %2150 = vrot.lane.b32.xlu0 %v2125, 127
        %v2151 = vpop.permute.xlu0 %2150
        %2152 = vrot.lane.b32.xlu0 %v2126, 127
        %v2153 = vpop.permute.xlu0 %2152
        %v2154 = vsel %vm348, %v2137, %v2139
        %v2155 = vsel %vm348, %v2139, %v2141
        %v2156 = vsel %vm348, %v2141, %v2143
        %v2157 = vsel %vm348, %v2143, %v2145
        %v2158 = vsel %vm348, %v2145, %v2147
        %v2159 = vsel %vm348, %v2147, %v2149
        %v2160 = vsel %vm348, %v2149, %v2151
        %v2161 = vsel %vm348, %v2151, %v2153
        %v2170 = vadd.f32 %v2106, %v2154
        %v2171 = vadd.f32 %v2107, %v2155
        %v2172 = vadd.f32 %v2108, %v2156
        %v2173 = vadd.f32 %v2109, %v2157
        %v2174 = vadd.f32 %v2110, %v2158
        %v2175 = vadd.f32 %v2111, %v2159
        %v2176 = vadd.f32 %v2112, %v2160
        %v2177 = vadd.f32 %v2113, %v2161
        %2178 = vset.pattern.permute.xlu0 23
        %2179 = vperm.xlu0 %2178, %v319
        %v2180 = vpop.permute.xlu0 %2179
        %v2182 = vmul.f32 %v2180, %v308
        %v2183 = vmul.f32 %v2180, %v309
        %v2184 = vmul.f32 %v2180, %v310
        %v2185 = vmul.f32 %v2180, %v311
        %v2186 = vmul.f32 %v2180, %v312
        %v2187 = vmul.f32 %v2180, %v313
        %v2188 = vmul.f32 %v2180, %v314
        %v2189 = vmul.f32 %v2180, %v315
        %v2190 = vmul.f32 %v2180, %v316
        %2200 = vrot.lane.b32.xlu0 %v2182, 126
        %v2201 = vpop.permute.xlu0 %2200
        %2202 = vrot.lane.b32.xlu0 %v2183, 126
        %v2203 = vpop.permute.xlu0 %2202
        %2204 = vrot.lane.b32.xlu0 %v2184, 126
        %v2205 = vpop.permute.xlu0 %2204
        %2206 = vrot.lane.b32.xlu0 %v2185, 126
        %v2207 = vpop.permute.xlu0 %2206
        %2208 = vrot.lane.b32.xlu0 %v2186, 126
        %v2209 = vpop.permute.xlu0 %2208
        %2210 = vrot.lane.b32.xlu0 %v2187, 126
        %v2211 = vpop.permute.xlu0 %2210
        %2212 = vrot.lane.b32.xlu0 %v2188, 126
        %v2213 = vpop.permute.xlu0 %2212
        %2214 = vrot.lane.b32.xlu0 %v2189, 126
        %v2215 = vpop.permute.xlu0 %2214
        %2216 = vrot.lane.b32.xlu0 %v2190, 126
        %v2217 = vpop.permute.xlu0 %2216
        %v2218 = vsel %vm391, %v2201, %v2203
        %v2219 = vsel %vm391, %v2203, %v2205
        %v2220 = vsel %vm391, %v2205, %v2207
        %v2221 = vsel %vm391, %v2207, %v2209
        %v2222 = vsel %vm391, %v2209, %v2211
        %v2223 = vsel %vm391, %v2211, %v2213
        %v2224 = vsel %vm391, %v2213, %v2215
        %v2225 = vsel %vm391, %v2215, %v2217
        %v2234 = vadd.f32 %v2170, %v2218
        %v2235 = vadd.f32 %v2171, %v2219
        %v2236 = vadd.f32 %v2172, %v2220
        %v2237 = vadd.f32 %v2173, %v2221
        %v2238 = vadd.f32 %v2174, %v2222
        %v2239 = vadd.f32 %v2175, %v2223
        %v2240 = vadd.f32 %v2176, %v2224
        %v2241 = vadd.f32 %v2177, %v2225
        %2242 = vset.pattern.permute.xlu0 24
        %2243 = vperm.xlu0 %2242, %v319
        %v2244 = vpop.permute.xlu0 %2243
        %v2246 = vmul.f32 %v2244, %v309
        %v2247 = vmul.f32 %v2244, %v310
        %v2248 = vmul.f32 %v2244, %v311
        %v2249 = vmul.f32 %v2244, %v312
        %v2250 = vmul.f32 %v2244, %v313
        %v2251 = vmul.f32 %v2244, %v314
        %v2252 = vmul.f32 %v2244, %v315
        %v2253 = vmul.f32 %v2244, %v316
        %v2254 = vadd.f32 %v2234, %v2246
        %v2255 = vadd.f32 %v2235, %v2247
        %v2256 = vadd.f32 %v2236, %v2248
        %v2257 = vadd.f32 %v2237, %v2249
        %v2258 = vadd.f32 %v2238, %v2250
        %v2259 = vadd.f32 %v2239, %v2251
        %v2260 = vadd.f32 %v2240, %v2252
        %v2261 = vadd.f32 %v2241, %v2253
        %2262 = vset.pattern.permute.xlu0 25
        %2263 = vperm.xlu0 %2262, %v319
        %v2264 = vpop.permute.xlu0 %2263
        %v2266 = vmul.f32 %v2264, %v309
        %v2267 = vmul.f32 %v2264, %v310
        %v2268 = vmul.f32 %v2264, %v311
        %v2269 = vmul.f32 %v2264, %v312
        %v2270 = vmul.f32 %v2264, %v313
        %v2271 = vmul.f32 %v2264, %v314
        %v2272 = vmul.f32 %v2264, %v315
        %v2273 = vmul.f32 %v2264, %v316
        %v2274 = vmul.f32 %v2264, %v317
        %2284 = vrot.lane.b32.xlu0 %v2266, 127
        %v2285 = vpop.permute.xlu0 %2284
        %2286 = vrot.lane.b32.xlu0 %v2267, 127
        %v2287 = vpop.permute.xlu0 %2286
        %2288 = vrot.lane.b32.xlu0 %v2268, 127
        %v2289 = vpop.permute.xlu0 %2288
        %2290 = vrot.lane.b32.xlu0 %v2269, 127
        %v2291 = vpop.permute.xlu0 %2290
        %2292 = vrot.lane.b32.xlu0 %v2270, 127
        %v2293 = vpop.permute.xlu0 %2292
        %2294 = vrot.lane.b32.xlu0 %v2271, 127
        %v2295 = vpop.permute.xlu0 %2294
        %2296 = vrot.lane.b32.xlu0 %v2272, 127
        %v2297 = vpop.permute.xlu0 %2296
        %2298 = vrot.lane.b32.xlu0 %v2273, 127
        %v2299 = vpop.permute.xlu0 %2298
        %2300 = vrot.lane.b32.xlu0 %v2274, 127
        %v2301 = vpop.permute.xlu0 %2300
        %v2302 = vsel %vm348, %v2285, %v2287
        %v2303 = vsel %vm348, %v2287, %v2289
        %v2304 = vsel %vm348, %v2289, %v2291
        %v2305 = vsel %vm348, %v2291, %v2293
        %v2306 = vsel %vm348, %v2293, %v2295
        %v2307 = vsel %vm348, %v2295, %v2297
        %v2308 = vsel %vm348, %v2297, %v2299
        %v2309 = vsel %vm348, %v2299, %v2301
        %v2318 = vadd.f32 %v2254, %v2302
        %v2319 = vadd.f32 %v2255, %v2303
        %v2320 = vadd.f32 %v2256, %v2304
        %v2321 = vadd.f32 %v2257, %v2305
        %v2322 = vadd.f32 %v2258, %v2306
        %v2323 = vadd.f32 %v2259, %v2307
        %v2324 = vadd.f32 %v2260, %v2308
        %v2325 = vadd.f32 %v2261, %v2309
        %2326 = vset.pattern.permute.xlu0 26
        %2327 = vperm.xlu0 %2326, %v319
        %v2328 = vpop.permute.xlu0 %2327
        %v2330 = vmul.f32 %v2328, %v309
        %v2331 = vmul.f32 %v2328, %v310
        %v2332 = vmul.f32 %v2328, %v311
        %v2333 = vmul.f32 %v2328, %v312
        %v2334 = vmul.f32 %v2328, %v313
        %v2335 = vmul.f32 %v2328, %v314
        %v2336 = vmul.f32 %v2328, %v315
        %v2337 = vmul.f32 %v2328, %v316
        %v2338 = vmul.f32 %v2328, %v317
        %2348 = vrot.lane.b32.xlu0 %v2330, 126
        %v2349 = vpop.permute.xlu0 %2348
        %2350 = vrot.lane.b32.xlu0 %v2331, 126
        %v2351 = vpop.permute.xlu0 %2350
        %2352 = vrot.lane.b32.xlu0 %v2332, 126
        %v2353 = vpop.permute.xlu0 %2352
        %2354 = vrot.lane.b32.xlu0 %v2333, 126
        %v2355 = vpop.permute.xlu0 %2354
        %2356 = vrot.lane.b32.xlu0 %v2334, 126
        %v2357 = vpop.permute.xlu0 %2356
        %2358 = vrot.lane.b32.xlu0 %v2335, 126
        %v2359 = vpop.permute.xlu0 %2358
        %2360 = vrot.lane.b32.xlu0 %v2336, 126
        %v2361 = vpop.permute.xlu0 %2360
        %2362 = vrot.lane.b32.xlu0 %v2337, 126
        %v2363 = vpop.permute.xlu0 %2362
        %2364 = vrot.lane.b32.xlu0 %v2338, 126
        %v2365 = vpop.permute.xlu0 %2364
        %v2366 = vsel %vm391, %v2349, %v2351
        %v2367 = vsel %vm391, %v2351, %v2353
        %v2368 = vsel %vm391, %v2353, %v2355
        %v2369 = vsel %vm391, %v2355, %v2357
        %v2370 = vsel %vm391, %v2357, %v2359
        %v2371 = vsel %vm391, %v2359, %v2361
        %v2372 = vsel %vm391, %v2361, %v2363
        %v2373 = vsel %vm391, %v2363, %v2365
        %v2382 = vadd.f32 %v2318, %v2366
        %v2383 = vadd.f32 %v2319, %v2367
        %v2384 = vadd.f32 %v2320, %v2368
        %v2385 = vadd.f32 %v2321, %v2369
        %v2386 = vadd.f32 %v2322, %v2370
        %v2387 = vadd.f32 %v2323, %v2371
        %v2388 = vadd.f32 %v2324, %v2372
        %v2389 = vadd.f32 %v2325, %v2373
        %2390 = vset.pattern.permute.xlu0 2
        %2391 = vperm.xlu0 %2390, %v320
        %v2392 = vpop.permute.xlu0 %2391
        %v2394 = vadd.f32 %v2382, %v2392
        %v2395 = vadd.f32 %v2383, %v2392
        %v2396 = vadd.f32 %v2384, %v2392
        %v2397 = vadd.f32 %v2385, %v2392
        %v2398 = vadd.f32 %v2386, %v2392
        %v2399 = vadd.f32 %v2387, %v2392
        %v2400 = vadd.f32 %v2388, %v2392
        %v2401 = vadd.f32 %v2389, %v2392
        %v2402 = vmax.f32 %v2394, 0.0
        %v2403 = vmax.f32 %v2395, 0.0
        %v2404 = vmax.f32 %v2396, 0.0
        %v2405 = vmax.f32 %v2397, 0.0
        %v2406 = vmax.f32 %v2398, 0.0
        %v2407 = vmax.f32 %v2399, 0.0
        %v2408 = vmax.f32 %v2400, 0.0
        %v2409 = vmax.f32 %v2401, 0.0
        %s2410 = sadd.s32 0, 16
        %v2411 = vmul.f32 %v2402, %v1946
        %v2412 = vmul.f32 %v2403, %v1947
        %v2413 = vmul.f32 %v2404, %v1948
        %v2414 = vmul.f32 %v2405, %v1949
        %v2415 = vmul.f32 %v2406, %v1950
        %v2416 = vmul.f32 %v2407, %v1951
        %v2417 = vmul.f32 %v2408, %v1952
        %v2418 = vmul.f32 %v2409, %v1953
        %s2419 = sshra.s32 %s2410, 3
        %s2420 = sand.u32 %s2410, 7
        %s2421 = smul.u32 %s2419, 8
        %s2422 = smul.addr %s2421, 8
        %s2423 = scalar_lea.vmem [#allocation4], %s2422
        %2424 = vst [vmem:[%s2423] sm:$0xff] %v2411
        %2425 = vst [vmem:[%s2423 + $0x8] sm:$0xff] %v2412
        %2426 = vst [vmem:[%s2423 + $0x10] sm:$0xff] %v2413
        %2427 = vst [vmem:[%s2423 + $0x18] sm:$0xff] %v2414
        %2428 = vst [vmem:[%s2423 + $0x20] sm:$0xff] %v2415
        %2429 = vst [vmem:[%s2423 + $0x28] sm:$0xff] %v2416
        %2430 = vst [vmem:[%s2423 + $0x30] sm:$0xff] %v2417
        %2431 = vst [vmem:[%s2423 + $0x38] sm:$0xff] %v2418
        %v2432 = vmul.f32 %v760, %v967
        %v2433 = vmul.f32 %v762, %v968
        %v2434 = vmul.f32 %v764, %v969
        %v2435 = vmul.f32 %v766, %v970
        %v2436 = vmul.f32 %v768, %v971
        %v2437 = vmul.f32 %v770, %v972
        %v2438 = vmul.f32 %v772, %v973
        %v2439 = vmul.f32 %v774, %v974
        %2440 = vset.pattern.permute.xlu0 27
        %2441 = vperm.xlu0 %2440, %v319
        %v2442 = vpop.permute.xlu0 %2441
        %v2444 = vmul.f32 %v2442, %v307
        %v2445 = vmul.f32 %v2442, %v308
        %v2446 = vmul.f32 %v2442, %v309
        %v2447 = vmul.f32 %v2442, %v310
        %v2448 = vmul.f32 %v2442, %v311
        %v2449 = vmul.f32 %v2442, %v312
        %v2450 = vmul.f32 %v2442, %v313
        %v2451 = vmul.f32 %v2442, %v314
        %2452 = vset.pattern.permute.xlu0 28
        %2453 = vperm.xlu0 %2452, %v319
        %v2454 = vpop.permute.xlu0 %2453
        %v2456 = vmul.f32 %v2454, %v307
        %v2457 = vmul.f32 %v2454, %v308
        %v2458 = vmul.f32 %v2454, %v309
        %v2459 = vmul.f32 %v2454, %v310
        %v2460 = vmul.f32 %v2454, %v311
        %v2461 = vmul.f32 %v2454, %v312
        %v2462 = vmul.f32 %v2454, %v313
        %v2463 = vmul.f32 %v2454, %v314
        %v2464 = vmul.f32 %v2454, %v315
        %2474 = vrot.lane.b32.xlu0 %v2456, 127
        %v2475 = vpop.permute.xlu0 %2474
        %2476 = vrot.lane.b32.xlu0 %v2457, 127
        %v2477 = vpop.permute.xlu0 %2476
        %2478 = vrot.lane.b32.xlu0 %v2458, 127
        %v2479 = vpop.permute.xlu0 %2478
        %2480 = vrot.lane.b32.xlu0 %v2459, 127
        %v2481 = vpop.permute.xlu0 %2480
        %2482 = vrot.lane.b32.xlu0 %v2460, 127
        %v2483 = vpop.permute.xlu0 %2482
        %2484 = vrot.lane.b32.xlu0 %v2461, 127
        %v2485 = vpop.permute.xlu0 %2484
        %2486 = vrot.lane.b32.xlu0 %v2462, 127
        %v2487 = vpop.permute.xlu0 %2486
        %2488 = vrot.lane.b32.xlu0 %v2463, 127
        %v2489 = vpop.permute.xlu0 %2488
        %2490 = vrot.lane.b32.xlu0 %v2464, 127
        %v2491 = vpop.permute.xlu0 %2490
        %v2492 = vsel %vm348, %v2475, %v2477
        %v2493 = vsel %vm348, %v2477, %v2479
        %v2494 = vsel %vm348, %v2479, %v2481
        %v2495 = vsel %vm348, %v2481, %v2483
        %v2496 = vsel %vm348, %v2483, %v2485
        %v2497 = vsel %vm348, %v2485, %v2487
        %v2498 = vsel %vm348, %v2487, %v2489
        %v2499 = vsel %vm348, %v2489, %v2491
        %v2508 = vadd.f32 %v2444, %v2492
        %v2509 = vadd.f32 %v2445, %v2493
        %v2510 = vadd.f32 %v2446, %v2494
        %v2511 = vadd.f32 %v2447, %v2495
        %v2512 = vadd.f32 %v2448, %v2496
        %v2513 = vadd.f32 %v2449, %v2497
        %v2514 = vadd.f32 %v2450, %v2498
        %v2515 = vadd.f32 %v2451, %v2499
        %2516 = vset.pattern.permute.xlu0 29
        %2517 = vperm.xlu0 %2516, %v319
        %v2518 = vpop.permute.xlu0 %2517
        %v2520 = vmul.f32 %v2518, %v307
        %v2521 = vmul.f32 %v2518, %v308
        %v2522 = vmul.f32 %v2518, %v309
        %v2523 = vmul.f32 %v2518, %v310
        %v2524 = vmul.f32 %v2518, %v311
        %v2525 = vmul.f32 %v2518, %v312
        %v2526 = vmul.f32 %v2518, %v313
        %v2527 = vmul.f32 %v2518, %v314
        %v2528 = vmul.f32 %v2518, %v315
        %2538 = vrot.lane.b32.xlu0 %v2520, 126
        %v2539 = vpop.permute.xlu0 %2538
        %2540 = vrot.lane.b32.xlu0 %v2521, 126
        %v2541 = vpop.permute.xlu0 %2540
        %2542 = vrot.lane.b32.xlu0 %v2522, 126
        %v2543 = vpop.permute.xlu0 %2542
        %2544 = vrot.lane.b32.xlu0 %v2523, 126
        %v2545 = vpop.permute.xlu0 %2544
        %2546 = vrot.lane.b32.xlu0 %v2524, 126
        %v2547 = vpop.permute.xlu0 %2546
        %2548 = vrot.lane.b32.xlu0 %v2525, 126
        %v2549 = vpop.permute.xlu0 %2548
        %2550 = vrot.lane.b32.xlu0 %v2526, 126
        %v2551 = vpop.permute.xlu0 %2550
        %2552 = vrot.lane.b32.xlu0 %v2527, 126
        %v2553 = vpop.permute.xlu0 %2552
        %2554 = vrot.lane.b32.xlu0 %v2528, 126
        %v2555 = vpop.permute.xlu0 %2554
        %v2556 = vsel %vm391, %v2539, %v2541
        %v2557 = vsel %vm391, %v2541, %v2543
        %v2558 = vsel %vm391, %v2543, %v2545
        %v2559 = vsel %vm391, %v2545, %v2547
        %v2560 = vsel %vm391, %v2547, %v2549
        %v2561 = vsel %vm391, %v2549, %v2551
        %v2562 = vsel %vm391, %v2551, %v2553
        %v2563 = vsel %vm391, %v2553, %v2555
        %v2572 = vadd.f32 %v2508, %v2556
        %v2573 = vadd.f32 %v2509, %v2557
        %v2574 = vadd.f32 %v2510, %v2558
        %v2575 = vadd.f32 %v2511, %v2559
        %v2576 = vadd.f32 %v2512, %v2560
        %v2577 = vadd.f32 %v2513, %v2561
        %v2578 = vadd.f32 %v2514, %v2562
        %v2579 = vadd.f32 %v2515, %v2563
        %2580 = vset.pattern.permute.xlu0 30
        %2581 = vperm.xlu0 %2580, %v319
        %v2582 = vpop.permute.xlu0 %2581
        %v2584 = vmul.f32 %v2582, %v308
        %v2585 = vmul.f32 %v2582, %v309
        %v2586 = vmul.f32 %v2582, %v310
        %v2587 = vmul.f32 %v2582, %v311
        %v2588 = vmul.f32 %v2582, %v312
        %v2589 = vmul.f32 %v2582, %v313
        %v2590 = vmul.f32 %v2582, %v314
        %v2591 = vmul.f32 %v2582, %v315
        %v2592 = vadd.f32 %v2572, %v2584
        %v2593 = vadd.f32 %v2573, %v2585
        %v2594 = vadd.f32 %v2574, %v2586
        %v2595 = vadd.f32 %v2575, %v2587
        %v2596 = vadd.f32 %v2576, %v2588
        %v2597 = vadd.f32 %v2577, %v2589
        %v2598 = vadd.f32 %v2578, %v2590
        %v2599 = vadd.f32 %v2579, %v2591
        %2600 = vset.pattern.permute.xlu0 31
        %2601 = vperm.xlu0 %2600, %v319
        %v2602 = vpop.permute.xlu0 %2601
        %v2604 = vmul.f32 %v2602, %v308
        %v2605 = vmul.f32 %v2602, %v309
        %v2606 = vmul.f32 %v2602, %v310
        %v2607 = vmul.f32 %v2602, %v311
        %v2608 = vmul.f32 %v2602, %v312
        %v2609 = vmul.f32 %v2602, %v313
        %v2610 = vmul.f32 %v2602, %v314
        %v2611 = vmul.f32 %v2602, %v315
        %v2612 = vmul.f32 %v2602, %v316
        %2622 = vrot.lane.b32.xlu0 %v2604, 127
        %v2623 = vpop.permute.xlu0 %2622
        %2624 = vrot.lane.b32.xlu0 %v2605, 127
        %v2625 = vpop.permute.xlu0 %2624
        %2626 = vrot.lane.b32.xlu0 %v2606, 127
        %v2627 = vpop.permute.xlu0 %2626
        %2628 = vrot.lane.b32.xlu0 %v2607, 127
        %v2629 = vpop.permute.xlu0 %2628
        %2630 = vrot.lane.b32.xlu0 %v2608, 127
        %v2631 = vpop.permute.xlu0 %2630
        %2632 = vrot.lane.b32.xlu0 %v2609, 127
        %v2633 = vpop.permute.xlu0 %2632
        %2634 = vrot.lane.b32.xlu0 %v2610, 127
        %v2635 = vpop.permute.xlu0 %2634
        %2636 = vrot.lane.b32.xlu0 %v2611, 127
        %v2637 = vpop.permute.xlu0 %2636
        %2638 = vrot.lane.b32.xlu0 %v2612, 127
        %v2639 = vpop.permute.xlu0 %2638
        %v2640 = vsel %vm348, %v2623, %v2625
        %v2641 = vsel %vm348, %v2625, %v2627
        %v2642 = vsel %vm348, %v2627, %v2629
        %v2643 = vsel %vm348, %v2629, %v2631
        %v2644 = vsel %vm348, %v2631, %v2633
        %v2645 = vsel %vm348, %v2633, %v2635
        %v2646 = vsel %vm348, %v2635, %v2637
        %v2647 = vsel %vm348, %v2637, %v2639
        %v2656 = vadd.f32 %v2592, %v2640
        %v2657 = vadd.f32 %v2593, %v2641
        %v2658 = vadd.f32 %v2594, %v2642
        %v2659 = vadd.f32 %v2595, %v2643
        %v2660 = vadd.f32 %v2596, %v2644
        %v2661 = vadd.f32 %v2597, %v2645
        %v2662 = vadd.f32 %v2598, %v2646
        %v2663 = vadd.f32 %v2599, %v2647
        %2664 = vset.pattern.permute.xlu0 32
        %2665 = vperm.xlu0 %2664, %v319
        %v2666 = vpop.permute.xlu0 %2665
        %v2668 = vmul.f32 %v2666, %v308
        %v2669 = vmul.f32 %v2666, %v309
        %v2670 = vmul.f32 %v2666, %v310
        %v2671 = vmul.f32 %v2666, %v311
        %v2672 = vmul.f32 %v2666, %v312
        %v2673 = vmul.f32 %v2666, %v313
        %v2674 = vmul.f32 %v2666, %v314
        %v2675 = vmul.f32 %v2666, %v315
        %v2676 = vmul.f32 %v2666, %v316
        %2686 = vrot.lane.b32.xlu0 %v2668, 126
        %v2687 = vpop.permute.xlu0 %2686
        %2688 = vrot.lane.b32.xlu0 %v2669, 126
        %v2689 = vpop.permute.xlu0 %2688
        %2690 = vrot.lane.b32.xlu0 %v2670, 126
        %v2691 = vpop.permute.xlu0 %2690
        %2692 = vrot.lane.b32.xlu0 %v2671, 126
        %v2693 = vpop.permute.xlu0 %2692
        %2694 = vrot.lane.b32.xlu0 %v2672, 126
        %v2695 = vpop.permute.xlu0 %2694
        %2696 = vrot.lane.b32.xlu0 %v2673, 126
        %v2697 = vpop.permute.xlu0 %2696
        %2698 = vrot.lane.b32.xlu0 %v2674, 126
        %v2699 = vpop.permute.xlu0 %2698
        %2700 = vrot.lane.b32.xlu0 %v2675, 126
        %v2701 = vpop.permute.xlu0 %2700
        %2702 = vrot.lane.b32.xlu0 %v2676, 126
        %v2703 = vpop.permute.xlu0 %2702
        %v2704 = vsel %vm391, %v2687, %v2689
        %v2705 = vsel %vm391, %v2689, %v2691
        %v2706 = vsel %vm391, %v2691, %v2693
        %v2707 = vsel %vm391, %v2693, %v2695
        %v2708 = vsel %vm391, %v2695, %v2697
        %v2709 = vsel %vm391, %v2697, %v2699
        %v2710 = vsel %vm391, %v2699, %v2701
        %v2711 = vsel %vm391, %v2701, %v2703
        %v2720 = vadd.f32 %v2656, %v2704
        %v2721 = vadd.f32 %v2657, %v2705
        %v2722 = vadd.f32 %v2658, %v2706
        %v2723 = vadd.f32 %v2659, %v2707
        %v2724 = vadd.f32 %v2660, %v2708
        %v2725 = vadd.f32 %v2661, %v2709
        %v2726 = vadd.f32 %v2662, %v2710
        %v2727 = vadd.f32 %v2663, %v2711
        %2728 = vset.pattern.permute.xlu0 33
        %2729 = vperm.xlu0 %2728, %v319
        %v2730 = vpop.permute.xlu0 %2729
        %v2732 = vmul.f32 %v2730, %v309
        %v2733 = vmul.f32 %v2730, %v310
        %v2734 = vmul.f32 %v2730, %v311
        %v2735 = vmul.f32 %v2730, %v312
        %v2736 = vmul.f32 %v2730, %v313
        %v2737 = vmul.f32 %v2730, %v314
        %v2738 = vmul.f32 %v2730, %v315
        %v2739 = vmul.f32 %v2730, %v316
        %v2740 = vadd.f32 %v2720, %v2732
        %v2741 = vadd.f32 %v2721, %v2733
        %v2742 = vadd.f32 %v2722, %v2734
        %v2743 = vadd.f32 %v2723, %v2735
        %v2744 = vadd.f32 %v2724, %v2736
        %v2745 = vadd.f32 %v2725, %v2737
        %v2746 = vadd.f32 %v2726, %v2738
        %v2747 = vadd.f32 %v2727, %v2739
        %2748 = vset.pattern.permute.xlu0 34
        %2749 = vperm.xlu0 %2748, %v319
        %v2750 = vpop.permute.xlu0 %2749
        %v2752 = vmul.f32 %v2750, %v309
        %v2753 = vmul.f32 %v2750, %v310
        %v2754 = vmul.f32 %v2750, %v311
        %v2755 = vmul.f32 %v2750, %v312
        %v2756 = vmul.f32 %v2750, %v313
        %v2757 = vmul.f32 %v2750, %v314
        %v2758 = vmul.f32 %v2750, %v315
        %v2759 = vmul.f32 %v2750, %v316
        %v2760 = vmul.f32 %v2750, %v317
        %2770 = vrot.lane.b32.xlu0 %v2752, 127
        %v2771 = vpop.permute.xlu0 %2770
        %2772 = vrot.lane.b32.xlu0 %v2753, 127
        %v2773 = vpop.permute.xlu0 %2772
        %2774 = vrot.lane.b32.xlu0 %v2754, 127
        %v2775 = vpop.permute.xlu0 %2774
        %2776 = vrot.lane.b32.xlu0 %v2755, 127
        %v2777 = vpop.permute.xlu0 %2776
        %2778 = vrot.lane.b32.xlu0 %v2756, 127
        %v2779 = vpop.permute.xlu0 %2778
        %2780 = vrot.lane.b32.xlu0 %v2757, 127
        %v2781 = vpop.permute.xlu0 %2780
        %2782 = vrot.lane.b32.xlu0 %v2758, 127
        %v2783 = vpop.permute.xlu0 %2782
        %2784 = vrot.lane.b32.xlu0 %v2759, 127
        %v2785 = vpop.permute.xlu0 %2784
        %2786 = vrot.lane.b32.xlu0 %v2760, 127
        %v2787 = vpop.permute.xlu0 %2786
        %v2788 = vsel %vm348, %v2771, %v2773
        %v2789 = vsel %vm348, %v2773, %v2775
        %v2790 = vsel %vm348, %v2775, %v2777
        %v2791 = vsel %vm348, %v2777, %v2779
        %v2792 = vsel %vm348, %v2779, %v2781
        %v2793 = vsel %vm348, %v2781, %v2783
        %v2794 = vsel %vm348, %v2783, %v2785
        %v2795 = vsel %vm348, %v2785, %v2787
        %v2804 = vadd.f32 %v2740, %v2788
        %v2805 = vadd.f32 %v2741, %v2789
        %v2806 = vadd.f32 %v2742, %v2790
        %v2807 = vadd.f32 %v2743, %v2791
        %v2808 = vadd.f32 %v2744, %v2792
        %v2809 = vadd.f32 %v2745, %v2793
        %v2810 = vadd.f32 %v2746, %v2794
        %v2811 = vadd.f32 %v2747, %v2795
        %2812 = vset.pattern.permute.xlu0 35
        %2813 = vperm.xlu0 %2812, %v319
        %v2814 = vpop.permute.xlu0 %2813
        %v2816 = vmul.f32 %v2814, %v309
        %v2817 = vmul.f32 %v2814, %v310
        %v2818 = vmul.f32 %v2814, %v311
        %v2819 = vmul.f32 %v2814, %v312
        %v2820 = vmul.f32 %v2814, %v313
        %v2821 = vmul.f32 %v2814, %v314
        %v2822 = vmul.f32 %v2814, %v315
        %v2823 = vmul.f32 %v2814, %v316
        %v2824 = vmul.f32 %v2814, %v317
        %2834 = vrot.lane.b32.xlu0 %v2816, 126
        %v2835 = vpop.permute.xlu0 %2834
        %2836 = vrot.lane.b32.xlu0 %v2817, 126
        %v2837 = vpop.permute.xlu0 %2836
        %2838 = vrot.lane.b32.xlu0 %v2818, 126
        %v2839 = vpop.permute.xlu0 %2838
        %2840 = vrot.lane.b32.xlu0 %v2819, 126
        %v2841 = vpop.permute.xlu0 %2840
        %2842 = vrot.lane.b32.xlu0 %v2820, 126
        %v2843 = vpop.permute.xlu0 %2842
        %2844 = vrot.lane.b32.xlu0 %v2821, 126
        %v2845 = vpop.permute.xlu0 %2844
        %2846 = vrot.lane.b32.xlu0 %v2822, 126
        %v2847 = vpop.permute.xlu0 %2846
        %2848 = vrot.lane.b32.xlu0 %v2823, 126
        %v2849 = vpop.permute.xlu0 %2848
        %2850 = vrot.lane.b32.xlu0 %v2824, 126
        %v2851 = vpop.permute.xlu0 %2850
        %v2852 = vsel %vm391, %v2835, %v2837
        %v2853 = vsel %vm391, %v2837, %v2839
        %v2854 = vsel %vm391, %v2839, %v2841
        %v2855 = vsel %vm391, %v2841, %v2843
        %v2856 = vsel %vm391, %v2843, %v2845
        %v2857 = vsel %vm391, %v2845, %v2847
        %v2858 = vsel %vm391, %v2847, %v2849
        %v2859 = vsel %vm391, %v2849, %v2851
        %v2868 = vadd.f32 %v2804, %v2852
        %v2869 = vadd.f32 %v2805, %v2853
        %v2870 = vadd.f32 %v2806, %v2854
        %v2871 = vadd.f32 %v2807, %v2855
        %v2872 = vadd.f32 %v2808, %v2856
        %v2873 = vadd.f32 %v2809, %v2857
        %v2874 = vadd.f32 %v2810, %v2858
        %v2875 = vadd.f32 %v2811, %v2859
        %2876 = vset.pattern.permute.xlu0 3
        %2877 = vperm.xlu0 %2876, %v320
        %v2878 = vpop.permute.xlu0 %2877
        %v2880 = vadd.f32 %v2868, %v2878
        %v2881 = vadd.f32 %v2869, %v2878
        %v2882 = vadd.f32 %v2870, %v2878
        %v2883 = vadd.f32 %v2871, %v2878
        %v2884 = vadd.f32 %v2872, %v2878
        %v2885 = vadd.f32 %v2873, %v2878
        %v2886 = vadd.f32 %v2874, %v2878
        %v2887 = vadd.f32 %v2875, %v2878
        %v2888 = vmax.f32 %v2880, 0.0
        %v2889 = vmax.f32 %v2881, 0.0
        %v2890 = vmax.f32 %v2882, 0.0
        %v2891 = vmax.f32 %v2883, 0.0
        %v2892 = vmax.f32 %v2884, 0.0
        %v2893 = vmax.f32 %v2885, 0.0
        %v2894 = vmax.f32 %v2886, 0.0
        %v2895 = vmax.f32 %v2887, 0.0
        %s2896 = sadd.s32 0, 24
        %v2897 = vmul.f32 %v2888, %v2432
        %v2898 = vmul.f32 %v2889, %v2433
        %v2899 = vmul.f32 %v2890, %v2434
        %v2900 = vmul.f32 %v2891, %v2435
        %v2901 = vmul.f32 %v2892, %v2436
        %v2902 = vmul.f32 %v2893, %v2437
        %v2903 = vmul.f32 %v2894, %v2438
        %v2904 = vmul.f32 %v2895, %v2439
        %s2905 = sshra.s32 %s2896, 3
        %s2906 = sand.u32 %s2896, 7
        %s2907 = smul.u32 %s2905, 8
        %s2908 = smul.addr %s2907, 8
        %s2909 = scalar_lea.vmem [#allocation4], %s2908
        %2910 = vst [vmem:[%s2909] sm:$0xff] %v2897
        %2911 = vst [vmem:[%s2909 + $0x8] sm:$0xff] %v2898
        %2912 = vst [vmem:[%s2909 + $0x10] sm:$0xff] %v2899
        %2913 = vst [vmem:[%s2909 + $0x18] sm:$0xff] %v2900
        %2914 = vst [vmem:[%s2909 + $0x20] sm:$0xff] %v2901
        %2915 = vst [vmem:[%s2909 + $0x28] sm:$0xff] %v2902
        %2916 = vst [vmem:[%s2909 + $0x30] sm:$0xff] %v2903
        %2917 = vst [vmem:[%s2909 + $0x38] sm:$0xff] %v2904
        %v2918 = vmul.f32 %v792, %v967
        %v2919 = vmul.f32 %v794, %v968
        %v2920 = vmul.f32 %v796, %v969
        %v2921 = vmul.f32 %v798, %v970
        %v2922 = vmul.f32 %v800, %v971
        %v2923 = vmul.f32 %v802, %v972
        %v2924 = vmul.f32 %v804, %v973
        %v2925 = vmul.f32 %v806, %v974
        %2926 = vset.pattern.permute.xlu0 36
        %2927 = vperm.xlu0 %2926, %v319
        %v2928 = vpop.permute.xlu0 %2927
        %v2930 = vmul.f32 %v2928, %v307
        %v2931 = vmul.f32 %v2928, %v308
        %v2932 = vmul.f32 %v2928, %v309
        %v2933 = vmul.f32 %v2928, %v310
        %v2934 = vmul.f32 %v2928, %v311
        %v2935 = vmul.f32 %v2928, %v312
        %v2936 = vmul.f32 %v2928, %v313
        %v2937 = vmul.f32 %v2928, %v314
        %2938 = vset.pattern.permute.xlu0 37
        %2939 = vperm.xlu0 %2938, %v319
        %v2940 = vpop.permute.xlu0 %2939
        %v2942 = vmul.f32 %v2940, %v307
        %v2943 = vmul.f32 %v2940, %v308
        %v2944 = vmul.f32 %v2940, %v309
        %v2945 = vmul.f32 %v2940, %v310
        %v2946 = vmul.f32 %v2940, %v311
        %v2947 = vmul.f32 %v2940, %v312
        %v2948 = vmul.f32 %v2940, %v313
        %v2949 = vmul.f32 %v2940, %v314
        %v2950 = vmul.f32 %v2940, %v315
        %2960 = vrot.lane.b32.xlu0 %v2942, 127
        %v2961 = vpop.permute.xlu0 %2960
        %2962 = vrot.lane.b32.xlu0 %v2943, 127
        %v2963 = vpop.permute.xlu0 %2962
        %2964 = vrot.lane.b32.xlu0 %v2944, 127
        %v2965 = vpop.permute.xlu0 %2964
        %2966 = vrot.lane.b32.xlu0 %v2945, 127
        %v2967 = vpop.permute.xlu0 %2966
        %2968 = vrot.lane.b32.xlu0 %v2946, 127
        %v2969 = vpop.permute.xlu0 %2968
        %2970 = vrot.lane.b32.xlu0 %v2947, 127
        %v2971 = vpop.permute.xlu0 %2970
        %2972 = vrot.lane.b32.xlu0 %v2948, 127
        %v2973 = vpop.permute.xlu0 %2972
        %2974 = vrot.lane.b32.xlu0 %v2949, 127
        %v2975 = vpop.permute.xlu0 %2974
        %2976 = vrot.lane.b32.xlu0 %v2950, 127
        %v2977 = vpop.permute.xlu0 %2976
        %v2978 = vsel %vm348, %v2961, %v2963
        %v2979 = vsel %vm348, %v2963, %v2965
        %v2980 = vsel %vm348, %v2965, %v2967
        %v2981 = vsel %vm348, %v2967, %v2969
        %v2982 = vsel %vm348, %v2969, %v2971
        %v2983 = vsel %vm348, %v2971, %v2973
        %v2984 = vsel %vm348, %v2973, %v2975
        %v2985 = vsel %vm348, %v2975, %v2977
        %v2994 = vadd.f32 %v2930, %v2978
        %v2995 = vadd.f32 %v2931, %v2979
        %v2996 = vadd.f32 %v2932, %v2980
        %v2997 = vadd.f32 %v2933, %v2981
        %v2998 = vadd.f32 %v2934, %v2982
        %v2999 = vadd.f32 %v2935, %v2983
        %v3000 = vadd.f32 %v2936, %v2984
        %v3001 = vadd.f32 %v2937, %v2985
        %3002 = vset.pattern.permute.xlu0 38
        %3003 = vperm.xlu0 %3002, %v319
        %v3004 = vpop.permute.xlu0 %3003
        %v3006 = vmul.f32 %v3004, %v307
        %v3007 = vmul.f32 %v3004, %v308
        %v3008 = vmul.f32 %v3004, %v309
        %v3009 = vmul.f32 %v3004, %v310
        %v3010 = vmul.f32 %v3004, %v311
        %v3011 = vmul.f32 %v3004, %v312
        %v3012 = vmul.f32 %v3004, %v313
        %v3013 = vmul.f32 %v3004, %v314
        %v3014 = vmul.f32 %v3004, %v315
        %3024 = vrot.lane.b32.xlu0 %v3006, 126
        %v3025 = vpop.permute.xlu0 %3024
        %3026 = vrot.lane.b32.xlu0 %v3007, 126
        %v3027 = vpop.permute.xlu0 %3026
        %3028 = vrot.lane.b32.xlu0 %v3008, 126
        %v3029 = vpop.permute.xlu0 %3028
        %3030 = vrot.lane.b32.xlu0 %v3009, 126
        %v3031 = vpop.permute.xlu0 %3030
        %3032 = vrot.lane.b32.xlu0 %v3010, 126
        %v3033 = vpop.permute.xlu0 %3032
        %3034 = vrot.lane.b32.xlu0 %v3011, 126
        %v3035 = vpop.permute.xlu0 %3034
        %3036 = vrot.lane.b32.xlu0 %v3012, 126
        %v3037 = vpop.permute.xlu0 %3036
        %3038 = vrot.lane.b32.xlu0 %v3013, 126
        %v3039 = vpop.permute.xlu0 %3038
        %3040 = vrot.lane.b32.xlu0 %v3014, 126
        %v3041 = vpop.permute.xlu0 %3040
        %v3042 = vsel %vm391, %v3025, %v3027
        %v3043 = vsel %vm391, %v3027, %v3029
        %v3044 = vsel %vm391, %v3029, %v3031
        %v3045 = vsel %vm391, %v3031, %v3033
        %v3046 = vsel %vm391, %v3033, %v3035
        %v3047 = vsel %vm391, %v3035, %v3037
        %v3048 = vsel %vm391, %v3037, %v3039
        %v3049 = vsel %vm391, %v3039, %v3041
        %v3058 = vadd.f32 %v2994, %v3042
        %v3059 = vadd.f32 %v2995, %v3043
        %v3060 = vadd.f32 %v2996, %v3044
        %v3061 = vadd.f32 %v2997, %v3045
        %v3062 = vadd.f32 %v2998, %v3046
        %v3063 = vadd.f32 %v2999, %v3047
        %v3064 = vadd.f32 %v3000, %v3048
        %v3065 = vadd.f32 %v3001, %v3049
        %3066 = vset.pattern.permute.xlu0 39
        %3067 = vperm.xlu0 %3066, %v319
        %v3068 = vpop.permute.xlu0 %3067
        %v3070 = vmul.f32 %v3068, %v308
        %v3071 = vmul.f32 %v3068, %v309
        %v3072 = vmul.f32 %v3068, %v310
        %v3073 = vmul.f32 %v3068, %v311
        %v3074 = vmul.f32 %v3068, %v312
        %v3075 = vmul.f32 %v3068, %v313
        %v3076 = vmul.f32 %v3068, %v314
        %v3077 = vmul.f32 %v3068, %v315
        %v3078 = vadd.f32 %v3058, %v3070
        %v3079 = vadd.f32 %v3059, %v3071
        %v3080 = vadd.f32 %v3060, %v3072
        %v3081 = vadd.f32 %v3061, %v3073
        %v3082 = vadd.f32 %v3062, %v3074
        %v3083 = vadd.f32 %v3063, %v3075
        %v3084 = vadd.f32 %v3064, %v3076
        %v3085 = vadd.f32 %v3065, %v3077
        %3086 = vset.pattern.permute.xlu0 40
        %3087 = vperm.xlu0 %3086, %v319
        %v3088 = vpop.permute.xlu0 %3087
        %v3090 = vmul.f32 %v3088, %v308
        %v3091 = vmul.f32 %v3088, %v309
        %v3092 = vmul.f32 %v3088, %v310
        %v3093 = vmul.f32 %v3088, %v311
        %v3094 = vmul.f32 %v3088, %v312
        %v3095 = vmul.f32 %v3088, %v313
        %v3096 = vmul.f32 %v3088, %v314
        %v3097 = vmul.f32 %v3088, %v315
        %v3098 = vmul.f32 %v3088, %v316
        %3108 = vrot.lane.b32.xlu0 %v3090, 127
        %v3109 = vpop.permute.xlu0 %3108
        %3110 = vrot.lane.b32.xlu0 %v3091, 127
        %v3111 = vpop.permute.xlu0 %3110
        %3112 = vrot.lane.b32.xlu0 %v3092, 127
        %v3113 = vpop.permute.xlu0 %3112
        %3114 = vrot.lane.b32.xlu0 %v3093, 127
        %v3115 = vpop.permute.xlu0 %3114
        %3116 = vrot.lane.b32.xlu0 %v3094, 127
        %v3117 = vpop.permute.xlu0 %3116
        %3118 = vrot.lane.b32.xlu0 %v3095, 127
        %v3119 = vpop.permute.xlu0 %3118
        %3120 = vrot.lane.b32.xlu0 %v3096, 127
        %v3121 = vpop.permute.xlu0 %3120
        %3122 = vrot.lane.b32.xlu0 %v3097, 127
        %v3123 = vpop.permute.xlu0 %3122
        %3124 = vrot.lane.b32.xlu0 %v3098, 127
        %v3125 = vpop.permute.xlu0 %3124
        %v3126 = vsel %vm348, %v3109, %v3111
        %v3127 = vsel %vm348, %v3111, %v3113
        %v3128 = vsel %vm348, %v3113, %v3115
        %v3129 = vsel %vm348, %v3115, %v3117
        %v3130 = vsel %vm348, %v3117, %v3119
        %v3131 = vsel %vm348, %v3119, %v3121
        %v3132 = vsel %vm348, %v3121, %v3123
        %v3133 = vsel %vm348, %v3123, %v3125
        %v3142 = vadd.f32 %v3078, %v3126
        %v3143 = vadd.f32 %v3079, %v3127
        %v3144 = vadd.f32 %v3080, %v3128
        %v3145 = vadd.f32 %v3081, %v3129
        %v3146 = vadd.f32 %v3082, %v3130
        %v3147 = vadd.f32 %v3083, %v3131
        %v3148 = vadd.f32 %v3084, %v3132
        %v3149 = vadd.f32 %v3085, %v3133
        %3150 = vset.pattern.permute.xlu0 41
        %3151 = vperm.xlu0 %3150, %v319
        %v3152 = vpop.permute.xlu0 %3151
        %v3154 = vmul.f32 %v3152, %v308
        %v3155 = vmul.f32 %v3152, %v309
        %v3156 = vmul.f32 %v3152, %v310
        %v3157 = vmul.f32 %v3152, %v311
        %v3158 = vmul.f32 %v3152, %v312
        %v3159 = vmul.f32 %v3152, %v313
        %v3160 = vmul.f32 %v3152, %v314
        %v3161 = vmul.f32 %v3152, %v315
        %v3162 = vmul.f32 %v3152, %v316
        %3172 = vrot.lane.b32.xlu0 %v3154, 126
        %v3173 = vpop.permute.xlu0 %3172
        %3174 = vrot.lane.b32.xlu0 %v3155, 126
        %v3175 = vpop.permute.xlu0 %3174
        %3176 = vrot.lane.b32.xlu0 %v3156, 126
        %v3177 = vpop.permute.xlu0 %3176
        %3178 = vrot.lane.b32.xlu0 %v3157, 126
        %v3179 = vpop.permute.xlu0 %3178
        %3180 = vrot.lane.b32.xlu0 %v3158, 126
        %v3181 = vpop.permute.xlu0 %3180
        %3182 = vrot.lane.b32.xlu0 %v3159, 126
        %v3183 = vpop.permute.xlu0 %3182
        %3184 = vrot.lane.b32.xlu0 %v3160, 126
        %v3185 = vpop.permute.xlu0 %3184
        %3186 = vrot.lane.b32.xlu0 %v3161, 126
        %v3187 = vpop.permute.xlu0 %3186
        %3188 = vrot.lane.b32.xlu0 %v3162, 126
        %v3189 = vpop.permute.xlu0 %3188
        %v3190 = vsel %vm391, %v3173, %v3175
        %v3191 = vsel %vm391, %v3175, %v3177
        %v3192 = vsel %vm391, %v3177, %v3179
        %v3193 = vsel %vm391, %v3179, %v3181
        %v3194 = vsel %vm391, %v3181, %v3183
        %v3195 = vsel %vm391, %v3183, %v3185
        %v3196 = vsel %vm391, %v3185, %v3187
        %v3197 = vsel %vm391, %v3187, %v3189
        %v3206 = vadd.f32 %v3142, %v3190
        %v3207 = vadd.f32 %v3143, %v3191
        %v3208 = vadd.f32 %v3144, %v3192
        %v3209 = vadd.f32 %v3145, %v3193
        %v3210 = vadd.f32 %v3146, %v3194
        %v3211 = vadd.f32 %v3147, %v3195
        %v3212 = vadd.f32 %v3148, %v3196
        %v3213 = vadd.f32 %v3149, %v3197
        %3214 = vset.pattern.permute.xlu0 42
        %3215 = vperm.xlu0 %3214, %v319
        %v3216 = vpop.permute.xlu0 %3215
        %v3218 = vmul.f32 %v3216, %v309
        %v3219 = vmul.f32 %v3216, %v310
        %v3220 = vmul.f32 %v3216, %v311
        %v3221 = vmul.f32 %v3216, %v312
        %v3222 = vmul.f32 %v3216, %v313
        %v3223 = vmul.f32 %v3216, %v314
        %v3224 = vmul.f32 %v3216, %v315
        %v3225 = vmul.f32 %v3216, %v316
        %v3226 = vadd.f32 %v3206, %v3218
        %v3227 = vadd.f32 %v3207, %v3219
        %v3228 = vadd.f32 %v3208, %v3220
        %v3229 = vadd.f32 %v3209, %v3221
        %v3230 = vadd.f32 %v3210, %v3222
        %v3231 = vadd.f32 %v3211, %v3223
        %v3232 = vadd.f32 %v3212, %v3224
        %v3233 = vadd.f32 %v3213, %v3225
        %3234 = vset.pattern.permute.xlu0 43
        %3235 = vperm.xlu0 %3234, %v319
        %v3236 = vpop.permute.xlu0 %3235
        %v3238 = vmul.f32 %v3236, %v309
        %v3239 = vmul.f32 %v3236, %v310
        %v3240 = vmul.f32 %v3236, %v311
        %v3241 = vmul.f32 %v3236, %v312
        %v3242 = vmul.f32 %v3236, %v313
        %v3243 = vmul.f32 %v3236, %v314
        %v3244 = vmul.f32 %v3236, %v315
        %v3245 = vmul.f32 %v3236, %v316
        %v3246 = vmul.f32 %v3236, %v317
        %3256 = vrot.lane.b32.xlu0 %v3238, 127
        %v3257 = vpop.permute.xlu0 %3256
        %3258 = vrot.lane.b32.xlu0 %v3239, 127
        %v3259 = vpop.permute.xlu0 %3258
        %3260 = vrot.lane.b32.xlu0 %v3240, 127
        %v3261 = vpop.permute.xlu0 %3260
        %3262 = vrot.lane.b32.xlu0 %v3241, 127
        %v3263 = vpop.permute.xlu0 %3262
        %3264 = vrot.lane.b32.xlu0 %v3242, 127
        %v3265 = vpop.permute.xlu0 %3264
        %3266 = vrot.lane.b32.xlu0 %v3243, 127
        %v3267 = vpop.permute.xlu0 %3266
        %3268 = vrot.lane.b32.xlu0 %v3244, 127
        %v3269 = vpop.permute.xlu0 %3268
        %3270 = vrot.lane.b32.xlu0 %v3245, 127
        %v3271 = vpop.permute.xlu0 %3270
        %3272 = vrot.lane.b32.xlu0 %v3246, 127
        %v3273 = vpop.permute.xlu0 %3272
        %v3274 = vsel %vm348, %v3257, %v3259
        %v3275 = vsel %vm348, %v3259, %v3261
        %v3276 = vsel %vm348, %v3261, %v3263
        %v3277 = vsel %vm348, %v3263, %v3265
        %v3278 = vsel %vm348, %v3265, %v3267
        %v3279 = vsel %vm348, %v3267, %v3269
        %v3280 = vsel %vm348, %v3269, %v3271
        %v3281 = vsel %vm348, %v3271, %v3273
        %v3290 = vadd.f32 %v3226, %v3274
        %v3291 = vadd.f32 %v3227, %v3275
        %v3292 = vadd.f32 %v3228, %v3276
        %v3293 = vadd.f32 %v3229, %v3277
        %v3294 = vadd.f32 %v3230, %v3278
        %v3295 = vadd.f32 %v3231, %v3279
        %v3296 = vadd.f32 %v3232, %v3280
        %v3297 = vadd.f32 %v3233, %v3281
        %3298 = vset.pattern.permute.xlu0 44
        %3299 = vperm.xlu0 %3298, %v319
        %v3300 = vpop.permute.xlu0 %3299
        %v3302 = vmul.f32 %v3300, %v309
        %v3303 = vmul.f32 %v3300, %v310
        %v3304 = vmul.f32 %v3300, %v311
        %v3305 = vmul.f32 %v3300, %v312
        %v3306 = vmul.f32 %v3300, %v313
        %v3307 = vmul.f32 %v3300, %v314
        %v3308 = vmul.f32 %v3300, %v315
        %v3309 = vmul.f32 %v3300, %v316
        %v3310 = vmul.f32 %v3300, %v317
        %3320 = vrot.lane.b32.xlu0 %v3302, 126
        %v3321 = vpop.permute.xlu0 %3320
        %3322 = vrot.lane.b32.xlu0 %v3303, 126
        %v3323 = vpop.permute.xlu0 %3322
        %3324 = vrot.lane.b32.xlu0 %v3304, 126
        %v3325 = vpop.permute.xlu0 %3324
        %3326 = vrot.lane.b32.xlu0 %v3305, 126
        %v3327 = vpop.permute.xlu0 %3326
        %3328 = vrot.lane.b32.xlu0 %v3306, 126
        %v3329 = vpop.permute.xlu0 %3328
        %3330 = vrot.lane.b32.xlu0 %v3307, 126
        %v3331 = vpop.permute.xlu0 %3330
        %3332 = vrot.lane.b32.xlu0 %v3308, 126
        %v3333 = vpop.permute.xlu0 %3332
        %3334 = vrot.lane.b32.xlu0 %v3309, 126
        %v3335 = vpop.permute.xlu0 %3334
        %3336 = vrot.lane.b32.xlu0 %v3310, 126
        %v3337 = vpop.permute.xlu0 %3336
        %v3338 = vsel %vm391, %v3321, %v3323
        %v3339 = vsel %vm391, %v3323, %v3325
        %v3340 = vsel %vm391, %v3325, %v3327
        %v3341 = vsel %vm391, %v3327, %v3329
        %v3342 = vsel %vm391, %v3329, %v3331
        %v3343 = vsel %vm391, %v3331, %v3333
        %v3344 = vsel %vm391, %v3333, %v3335
        %v3345 = vsel %vm391, %v3335, %v3337
        %v3354 = vadd.f32 %v3290, %v3338
        %v3355 = vadd.f32 %v3291, %v3339
        %v3356 = vadd.f32 %v3292, %v3340
        %v3357 = vadd.f32 %v3293, %v3341
        %v3358 = vadd.f32 %v3294, %v3342
        %v3359 = vadd.f32 %v3295, %v3343
        %v3360 = vadd.f32 %v3296, %v3344
        %v3361 = vadd.f32 %v3297, %v3345
        %3362 = vset.pattern.permute.xlu0 4
        %3363 = vperm.xlu0 %3362, %v320
        %v3364 = vpop.permute.xlu0 %3363
        %v3366 = vadd.f32 %v3354, %v3364
        %v3367 = vadd.f32 %v3355, %v3364
        %v3368 = vadd.f32 %v3356, %v3364
        %v3369 = vadd.f32 %v3357, %v3364
        %v3370 = vadd.f32 %v3358, %v3364
        %v3371 = vadd.f32 %v3359, %v3364
        %v3372 = vadd.f32 %v3360, %v3364
        %v3373 = vadd.f32 %v3361, %v3364
        %v3374 = vmax.f32 %v3366, 0.0
        %v3375 = vmax.f32 %v3367, 0.0
        %v3376 = vmax.f32 %v3368, 0.0
        %v3377 = vmax.f32 %v3369, 0.0
        %v3378 = vmax.f32 %v3370, 0.0
        %v3379 = vmax.f32 %v3371, 0.0
        %v3380 = vmax.f32 %v3372, 0.0
        %v3381 = vmax.f32 %v3373, 0.0
        %s3382 = sadd.s32 0, 32
        %v3383 = vmul.f32 %v3374, %v2918
        %v3384 = vmul.f32 %v3375, %v2919
        %v3385 = vmul.f32 %v3376, %v2920
        %v3386 = vmul.f32 %v3377, %v2921
        %v3387 = vmul.f32 %v3378, %v2922
        %v3388 = vmul.f32 %v3379, %v2923
        %v3389 = vmul.f32 %v3380, %v2924
        %v3390 = vmul.f32 %v3381, %v2925
        %s3391 = sshra.s32 %s3382, 3
        %s3392 = sand.u32 %s3382, 7
        %s3393 = smul.u32 %s3391, 8
        %s3394 = smul.addr %s3393, 8
        %s3395 = scalar_lea.vmem [#allocation4], %s3394
        %3396 = vst [vmem:[%s3395] sm:$0xff] %v3383
        %3397 = vst [vmem:[%s3395 + $0x8] sm:$0xff] %v3384
        %3398 = vst [vmem:[%s3395 + $0x10] sm:$0xff] %v3385
        %3399 = vst [vmem:[%s3395 + $0x18] sm:$0xff] %v3386
        %3400 = vst [vmem:[%s3395 + $0x20] sm:$0xff] %v3387
        %3401 = vst [vmem:[%s3395 + $0x28] sm:$0xff] %v3388
        %3402 = vst [vmem:[%s3395 + $0x30] sm:$0xff] %v3389
        %3403 = vst [vmem:[%s3395 + $0x38] sm:$0xff] %v3390
        %v3404 = vmul.f32 %v824, %v967
        %v3405 = vmul.f32 %v826, %v968
        %v3406 = vmul.f32 %v828, %v969
        %v3407 = vmul.f32 %v830, %v970
        %v3408 = vmul.f32 %v832, %v971
        %v3409 = vmul.f32 %v834, %v972
        %v3410 = vmul.f32 %v836, %v973
        %v3411 = vmul.f32 %v838, %v974
        %3412 = vset.pattern.permute.xlu0 45
        %3413 = vperm.xlu0 %3412, %v319
        %v3414 = vpop.permute.xlu0 %3413
        %v3416 = vmul.f32 %v3414, %v307
        %v3417 = vmul.f32 %v3414, %v308
        %v3418 = vmul.f32 %v3414, %v309
        %v3419 = vmul.f32 %v3414, %v310
        %v3420 = vmul.f32 %v3414, %v311
        %v3421 = vmul.f32 %v3414, %v312
        %v3422 = vmul.f32 %v3414, %v313
        %v3423 = vmul.f32 %v3414, %v314
        %3424 = vset.pattern.permute.xlu0 46
        %3425 = vperm.xlu0 %3424, %v319
        %v3426 = vpop.permute.xlu0 %3425
        %v3428 = vmul.f32 %v3426, %v307
        %v3429 = vmul.f32 %v3426, %v308
        %v3430 = vmul.f32 %v3426, %v309
        %v3431 = vmul.f32 %v3426, %v310
        %v3432 = vmul.f32 %v3426, %v311
        %v3433 = vmul.f32 %v3426, %v312
        %v3434 = vmul.f32 %v3426, %v313
        %v3435 = vmul.f32 %v3426, %v314
        %v3436 = vmul.f32 %v3426, %v315
        %3446 = vrot.lane.b32.xlu0 %v3428, 127
        %v3447 = vpop.permute.xlu0 %3446
        %3448 = vrot.lane.b32.xlu0 %v3429, 127
        %v3449 = vpop.permute.xlu0 %3448
        %3450 = vrot.lane.b32.xlu0 %v3430, 127
        %v3451 = vpop.permute.xlu0 %3450
        %3452 = vrot.lane.b32.xlu0 %v3431, 127
        %v3453 = vpop.permute.xlu0 %3452
        %3454 = vrot.lane.b32.xlu0 %v3432, 127
        %v3455 = vpop.permute.xlu0 %3454
        %3456 = vrot.lane.b32.xlu0 %v3433, 127
        %v3457 = vpop.permute.xlu0 %3456
        %3458 = vrot.lane.b32.xlu0 %v3434, 127
        %v3459 = vpop.permute.xlu0 %3458
        %3460 = vrot.lane.b32.xlu0 %v3435, 127
        %v3461 = vpop.permute.xlu0 %3460
        %3462 = vrot.lane.b32.xlu0 %v3436, 127
        %v3463 = vpop.permute.xlu0 %3462
        %v3464 = vsel %vm348, %v3447, %v3449
        %v3465 = vsel %vm348, %v3449, %v3451
        %v3466 = vsel %vm348, %v3451, %v3453
        %v3467 = vsel %vm348, %v3453, %v3455
        %v3468 = vsel %vm348, %v3455, %v3457
        %v3469 = vsel %vm348, %v3457, %v3459
        %v3470 = vsel %vm348, %v3459, %v3461
        %v3471 = vsel %vm348, %v3461, %v3463
        %v3480 = vadd.f32 %v3416, %v3464
        %v3481 = vadd.f32 %v3417, %v3465
        %v3482 = vadd.f32 %v3418, %v3466
        %v3483 = vadd.f32 %v3419, %v3467
        %v3484 = vadd.f32 %v3420, %v3468
        %v3485 = vadd.f32 %v3421, %v3469
        %v3486 = vadd.f32 %v3422, %v3470
        %v3487 = vadd.f32 %v3423, %v3471
        %3488 = vset.pattern.permute.xlu0 47
        %3489 = vperm.xlu0 %3488, %v319
        %v3490 = vpop.permute.xlu0 %3489
        %v3492 = vmul.f32 %v3490, %v307
        %v3493 = vmul.f32 %v3490, %v308
        %v3494 = vmul.f32 %v3490, %v309
        %v3495 = vmul.f32 %v3490, %v310
        %v3496 = vmul.f32 %v3490, %v311
        %v3497 = vmul.f32 %v3490, %v312
        %v3498 = vmul.f32 %v3490, %v313
        %v3499 = vmul.f32 %v3490, %v314
        %v3500 = vmul.f32 %v3490, %v315
        %3510 = vrot.lane.b32.xlu0 %v3492, 126
        %v3511 = vpop.permute.xlu0 %3510
        %3512 = vrot.lane.b32.xlu0 %v3493, 126
        %v3513 = vpop.permute.xlu0 %3512
        %3514 = vrot.lane.b32.xlu0 %v3494, 126
        %v3515 = vpop.permute.xlu0 %3514
        %3516 = vrot.lane.b32.xlu0 %v3495, 126
        %v3517 = vpop.permute.xlu0 %3516
        %3518 = vrot.lane.b32.xlu0 %v3496, 126
        %v3519 = vpop.permute.xlu0 %3518
        %3520 = vrot.lane.b32.xlu0 %v3497, 126
        %v3521 = vpop.permute.xlu0 %3520
        %3522 = vrot.lane.b32.xlu0 %v3498, 126
        %v3523 = vpop.permute.xlu0 %3522
        %3524 = vrot.lane.b32.xlu0 %v3499, 126
        %v3525 = vpop.permute.xlu0 %3524
        %3526 = vrot.lane.b32.xlu0 %v3500, 126
        %v3527 = vpop.permute.xlu0 %3526
        %v3528 = vsel %vm391, %v3511, %v3513
        %v3529 = vsel %vm391, %v3513, %v3515
        %v3530 = vsel %vm391, %v3515, %v3517
        %v3531 = vsel %vm391, %v3517, %v3519
        %v3532 = vsel %vm391, %v3519, %v3521
        %v3533 = vsel %vm391, %v3521, %v3523
        %v3534 = vsel %vm391, %v3523, %v3525
        %v3535 = vsel %vm391, %v3525, %v3527
        %v3544 = vadd.f32 %v3480, %v3528
        %v3545 = vadd.f32 %v3481, %v3529
        %v3546 = vadd.f32 %v3482, %v3530
        %v3547 = vadd.f32 %v3483, %v3531
        %v3548 = vadd.f32 %v3484, %v3532
        %v3549 = vadd.f32 %v3485, %v3533
        %v3550 = vadd.f32 %v3486, %v3534
        %v3551 = vadd.f32 %v3487, %v3535
        %3552 = vset.pattern.permute.xlu0 48
        %3553 = vperm.xlu0 %3552, %v319
        %v3554 = vpop.permute.xlu0 %3553
        %v3556 = vmul.f32 %v3554, %v308
        %v3557 = vmul.f32 %v3554, %v309
        %v3558 = vmul.f32 %v3554, %v310
        %v3559 = vmul.f32 %v3554, %v311
        %v3560 = vmul.f32 %v3554, %v312
        %v3561 = vmul.f32 %v3554, %v313
        %v3562 = vmul.f32 %v3554, %v314
        %v3563 = vmul.f32 %v3554, %v315
        %v3564 = vadd.f32 %v3544, %v3556
        %v3565 = vadd.f32 %v3545, %v3557
        %v3566 = vadd.f32 %v3546, %v3558
        %v3567 = vadd.f32 %v3547, %v3559
        %v3568 = vadd.f32 %v3548, %v3560
        %v3569 = vadd.f32 %v3549, %v3561
        %v3570 = vadd.f32 %v3550, %v3562
        %v3571 = vadd.f32 %v3551, %v3563
        %3572 = vset.pattern.permute.xlu0 49
        %3573 = vperm.xlu0 %3572, %v319
        %v3574 = vpop.permute.xlu0 %3573
        %v3576 = vmul.f32 %v3574, %v308
        %v3577 = vmul.f32 %v3574, %v309
        %v3578 = vmul.f32 %v3574, %v310
        %v3579 = vmul.f32 %v3574, %v311
        %v3580 = vmul.f32 %v3574, %v312
        %v3581 = vmul.f32 %v3574, %v313
        %v3582 = vmul.f32 %v3574, %v314
        %v3583 = vmul.f32 %v3574, %v315
        %v3584 = vmul.f32 %v3574, %v316
        %3594 = vrot.lane.b32.xlu0 %v3576, 127
        %v3595 = vpop.permute.xlu0 %3594
        %3596 = vrot.lane.b32.xlu0 %v3577, 127
        %v3597 = vpop.permute.xlu0 %3596
        %3598 = vrot.lane.b32.xlu0 %v3578, 127
        %v3599 = vpop.permute.xlu0 %3598
        %3600 = vrot.lane.b32.xlu0 %v3579, 127
        %v3601 = vpop.permute.xlu0 %3600
        %3602 = vrot.lane.b32.xlu0 %v3580, 127
        %v3603 = vpop.permute.xlu0 %3602
        %3604 = vrot.lane.b32.xlu0 %v3581, 127
        %v3605 = vpop.permute.xlu0 %3604
        %3606 = vrot.lane.b32.xlu0 %v3582, 127
        %v3607 = vpop.permute.xlu0 %3606
        %3608 = vrot.lane.b32.xlu0 %v3583, 127
        %v3609 = vpop.permute.xlu0 %3608
        %3610 = vrot.lane.b32.xlu0 %v3584, 127
        %v3611 = vpop.permute.xlu0 %3610
        %v3612 = vsel %vm348, %v3595, %v3597
        %v3613 = vsel %vm348, %v3597, %v3599
        %v3614 = vsel %vm348, %v3599, %v3601
        %v3615 = vsel %vm348, %v3601, %v3603
        %v3616 = vsel %vm348, %v3603, %v3605
        %v3617 = vsel %vm348, %v3605, %v3607
        %v3618 = vsel %vm348, %v3607, %v3609
        %v3619 = vsel %vm348, %v3609, %v3611
        %v3628 = vadd.f32 %v3564, %v3612
        %v3629 = vadd.f32 %v3565, %v3613
        %v3630 = vadd.f32 %v3566, %v3614
        %v3631 = vadd.f32 %v3567, %v3615
        %v3632 = vadd.f32 %v3568, %v3616
        %v3633 = vadd.f32 %v3569, %v3617
        %v3634 = vadd.f32 %v3570, %v3618
        %v3635 = vadd.f32 %v3571, %v3619
        %3636 = vset.pattern.permute.xlu0 50
        %3637 = vperm.xlu0 %3636, %v319
        %v3638 = vpop.permute.xlu0 %3637
        %v3640 = vmul.f32 %v3638, %v308
        %v3641 = vmul.f32 %v3638, %v309
        %v3642 = vmul.f32 %v3638, %v310
        %v3643 = vmul.f32 %v3638, %v311
        %v3644 = vmul.f32 %v3638, %v312
        %v3645 = vmul.f32 %v3638, %v313
        %v3646 = vmul.f32 %v3638, %v314
        %v3647 = vmul.f32 %v3638, %v315
        %v3648 = vmul.f32 %v3638, %v316
        %3658 = vrot.lane.b32.xlu0 %v3640, 126
        %v3659 = vpop.permute.xlu0 %3658
        %3660 = vrot.lane.b32.xlu0 %v3641, 126
        %v3661 = vpop.permute.xlu0 %3660
        %3662 = vrot.lane.b32.xlu0 %v3642, 126
        %v3663 = vpop.permute.xlu0 %3662
        %3664 = vrot.lane.b32.xlu0 %v3643, 126
        %v3665 = vpop.permute.xlu0 %3664
        %3666 = vrot.lane.b32.xlu0 %v3644, 126
        %v3667 = vpop.permute.xlu0 %3666
        %3668 = vrot.lane.b32.xlu0 %v3645, 126
        %v3669 = vpop.permute.xlu0 %3668
        %3670 = vrot.lane.b32.xlu0 %v3646, 126
        %v3671 = vpop.permute.xlu0 %3670
        %3672 = vrot.lane.b32.xlu0 %v3647, 126
        %v3673 = vpop.permute.xlu0 %3672
        %3674 = vrot.lane.b32.xlu0 %v3648, 126
        %v3675 = vpop.permute.xlu0 %3674
        %v3676 = vsel %vm391, %v3659, %v3661
        %v3677 = vsel %vm391, %v3661, %v3663
        %v3678 = vsel %vm391, %v3663, %v3665
        %v3679 = vsel %vm391, %v3665, %v3667
        %v3680 = vsel %vm391, %v3667, %v3669
        %v3681 = vsel %vm391, %v3669, %v3671
        %v3682 = vsel %vm391, %v3671, %v3673
        %v3683 = vsel %vm391, %v3673, %v3675
        %v3692 = vadd.f32 %v3628, %v3676
        %v3693 = vadd.f32 %v3629, %v3677
        %v3694 = vadd.f32 %v3630, %v3678
        %v3695 = vadd.f32 %v3631, %v3679
        %v3696 = vadd.f32 %v3632, %v3680
        %v3697 = vadd.f32 %v3633, %v3681
        %v3698 = vadd.f32 %v3634, %v3682
        %v3699 = vadd.f32 %v3635, %v3683
        %3700 = vset.pattern.permute.xlu0 51
        %3701 = vperm.xlu0 %3700, %v319
        %v3702 = vpop.permute.xlu0 %3701
        %v3704 = vmul.f32 %v3702, %v309
        %v3705 = vmul.f32 %v3702, %v310
        %v3706 = vmul.f32 %v3702, %v311
        %v3707 = vmul.f32 %v3702, %v312
        %v3708 = vmul.f32 %v3702, %v313
        %v3709 = vmul.f32 %v3702, %v314
        %v3710 = vmul.f32 %v3702, %v315
        %v3711 = vmul.f32 %v3702, %v316
        %v3712 = vadd.f32 %v3692, %v3704
        %v3713 = vadd.f32 %v3693, %v3705
        %v3714 = vadd.f32 %v3694, %v3706
        %v3715 = vadd.f32 %v3695, %v3707
        %v3716 = vadd.f32 %v3696, %v3708
        %v3717 = vadd.f32 %v3697, %v3709
        %v3718 = vadd.f32 %v3698, %v3710
        %v3719 = vadd.f32 %v3699, %v3711
        %3720 = vset.pattern.permute.xlu0 52
        %3721 = vperm.xlu0 %3720, %v319
        %v3722 = vpop.permute.xlu0 %3721
        %v3724 = vmul.f32 %v3722, %v309
        %v3725 = vmul.f32 %v3722, %v310
        %v3726 = vmul.f32 %v3722, %v311
        %v3727 = vmul.f32 %v3722, %v312
        %v3728 = vmul.f32 %v3722, %v313
        %v3729 = vmul.f32 %v3722, %v314
        %v3730 = vmul.f32 %v3722, %v315
        %v3731 = vmul.f32 %v3722, %v316
        %v3732 = vmul.f32 %v3722, %v317
        %3742 = vrot.lane.b32.xlu0 %v3724, 127
        %v3743 = vpop.permute.xlu0 %3742
        %3744 = vrot.lane.b32.xlu0 %v3725, 127
        %v3745 = vpop.permute.xlu0 %3744
        %3746 = vrot.lane.b32.xlu0 %v3726, 127
        %v3747 = vpop.permute.xlu0 %3746
        %3748 = vrot.lane.b32.xlu0 %v3727, 127
        %v3749 = vpop.permute.xlu0 %3748
        %3750 = vrot.lane.b32.xlu0 %v3728, 127
        %v3751 = vpop.permute.xlu0 %3750
        %3752 = vrot.lane.b32.xlu0 %v3729, 127
        %v3753 = vpop.permute.xlu0 %3752
        %3754 = vrot.lane.b32.xlu0 %v3730, 127
        %v3755 = vpop.permute.xlu0 %3754
        %3756 = vrot.lane.b32.xlu0 %v3731, 127
        %v3757 = vpop.permute.xlu0 %3756
        %3758 = vrot.lane.b32.xlu0 %v3732, 127
        %v3759 = vpop.permute.xlu0 %3758
        %v3760 = vsel %vm348, %v3743, %v3745
        %v3761 = vsel %vm348, %v3745, %v3747
        %v3762 = vsel %vm348, %v3747, %v3749
        %v3763 = vsel %vm348, %v3749, %v3751
        %v3764 = vsel %vm348, %v3751, %v3753
        %v3765 = vsel %vm348, %v3753, %v3755
        %v3766 = vsel %vm348, %v3755, %v3757
        %v3767 = vsel %vm348, %v3757, %v3759
        %v3776 = vadd.f32 %v3712, %v3760
        %v3777 = vadd.f32 %v3713, %v3761
        %v3778 = vadd.f32 %v3714, %v3762
        %v3779 = vadd.f32 %v3715, %v3763
        %v3780 = vadd.f32 %v3716, %v3764
        %v3781 = vadd.f32 %v3717, %v3765
        %v3782 = vadd.f32 %v3718, %v3766
        %v3783 = vadd.f32 %v3719, %v3767
        %3784 = vset.pattern.permute.xlu0 53
        %3785 = vperm.xlu0 %3784, %v319
        %v3786 = vpop.permute.xlu0 %3785
        %v3788 = vmul.f32 %v3786, %v309
        %v3789 = vmul.f32 %v3786, %v310
        %v3790 = vmul.f32 %v3786, %v311
        %v3791 = vmul.f32 %v3786, %v312
        %v3792 = vmul.f32 %v3786, %v313
        %v3793 = vmul.f32 %v3786, %v314
        %v3794 = vmul.f32 %v3786, %v315
        %v3795 = vmul.f32 %v3786, %v316
        %v3796 = vmul.f32 %v3786, %v317
        %3806 = vrot.lane.b32.xlu0 %v3788, 126
        %v3807 = vpop.permute.xlu0 %3806
        %3808 = vrot.lane.b32.xlu0 %v3789, 126
        %v3809 = vpop.permute.xlu0 %3808
        %3810 = vrot.lane.b32.xlu0 %v3790, 126
        %v3811 = vpop.permute.xlu0 %3810
        %3812 = vrot.lane.b32.xlu0 %v3791, 126
        %v3813 = vpop.permute.xlu0 %3812
        %3814 = vrot.lane.b32.xlu0 %v3792, 126
        %v3815 = vpop.permute.xlu0 %3814
        %3816 = vrot.lane.b32.xlu0 %v3793, 126
        %v3817 = vpop.permute.xlu0 %3816
        %3818 = vrot.lane.b32.xlu0 %v3794, 126
        %v3819 = vpop.permute.xlu0 %3818
        %3820 = vrot.lane.b32.xlu0 %v3795, 126
        %v3821 = vpop.permute.xlu0 %3820
        %3822 = vrot.lane.b32.xlu0 %v3796, 126
        %v3823 = vpop.permute.xlu0 %3822
        %v3824 = vsel %vm391, %v3807, %v3809
        %v3825 = vsel %vm391, %v3809, %v3811
        %v3826 = vsel %vm391, %v3811, %v3813
        %v3827 = vsel %vm391, %v3813, %v3815
        %v3828 = vsel %vm391, %v3815, %v3817
        %v3829 = vsel %vm391, %v3817, %v3819
        %v3830 = vsel %vm391, %v3819, %v3821
        %v3831 = vsel %vm391, %v3821, %v3823
        %v3840 = vadd.f32 %v3776, %v3824
        %v3841 = vadd.f32 %v3777, %v3825
        %v3842 = vadd.f32 %v3778, %v3826
        %v3843 = vadd.f32 %v3779, %v3827
        %v3844 = vadd.f32 %v3780, %v3828
        %v3845 = vadd.f32 %v3781, %v3829
        %v3846 = vadd.f32 %v3782, %v3830
        %v3847 = vadd.f32 %v3783, %v3831
        %3848 = vset.pattern.permute.xlu0 5
        %3849 = vperm.xlu0 %3848, %v320
        %v3850 = vpop.permute.xlu0 %3849
        %v3852 = vadd.f32 %v3840, %v3850
        %v3853 = vadd.f32 %v3841, %v3850
        %v3854 = vadd.f32 %v3842, %v3850
        %v3855 = vadd.f32 %v3843, %v3850
        %v3856 = vadd.f32 %v3844, %v3850
        %v3857 = vadd.f32 %v3845, %v3850
        %v3858 = vadd.f32 %v3846, %v3850
        %v3859 = vadd.f32 %v3847, %v3850
        %v3860 = vmax.f32 %v3852, 0.0
        %v3861 = vmax.f32 %v3853, 0.0
        %v3862 = vmax.f32 %v3854, 0.0
        %v3863 = vmax.f32 %v3855, 0.0
        %v3864 = vmax.f32 %v3856, 0.0
        %v3865 = vmax.f32 %v3857, 0.0
        %v3866 = vmax.f32 %v3858, 0.0
        %v3867 = vmax.f32 %v3859, 0.0
        %s3868 = sadd.s32 0, 40
        %v3869 = vmul.f32 %v3860, %v3404
        %v3870 = vmul.f32 %v3861, %v3405
        %v3871 = vmul.f32 %v3862, %v3406
        %v3872 = vmul.f32 %v3863, %v3407
        %v3873 = vmul.f32 %v3864, %v3408
        %v3874 = vmul.f32 %v3865, %v3409
        %v3875 = vmul.f32 %v3866, %v3410
        %v3876 = vmul.f32 %v3867, %v3411
        %s3877 = sshra.s32 %s3868, 3
        %s3878 = sand.u32 %s3868, 7
        %s3879 = smul.u32 %s3877, 8
        %s3880 = smul.addr %s3879, 8
        %s3881 = scalar_lea.vmem [#allocation4], %s3880
        %3882 = vst [vmem:[%s3881] sm:$0xff] %v3869
        %3883 = vst [vmem:[%s3881 + $0x8] sm:$0xff] %v3870
        %3884 = vst [vmem:[%s3881 + $0x10] sm:$0xff] %v3871
        %3885 = vst [vmem:[%s3881 + $0x18] sm:$0xff] %v3872
        %3886 = vst [vmem:[%s3881 + $0x20] sm:$0xff] %v3873
        %3887 = vst [vmem:[%s3881 + $0x28] sm:$0xff] %v3874
        %3888 = vst [vmem:[%s3881 + $0x30] sm:$0xff] %v3875
        %3889 = vst [vmem:[%s3881 + $0x38] sm:$0xff] %v3876
        %v3890 = vmul.f32 %v856, %v967
        %v3891 = vmul.f32 %v858, %v968
        %v3892 = vmul.f32 %v860, %v969
        %v3893 = vmul.f32 %v862, %v970
        %v3894 = vmul.f32 %v864, %v971
        %v3895 = vmul.f32 %v866, %v972
        %v3896 = vmul.f32 %v868, %v973
        %v3897 = vmul.f32 %v870, %v974
        %3898 = vset.pattern.permute.xlu0 54
        %3899 = vperm.xlu0 %3898, %v319
        %v3900 = vpop.permute.xlu0 %3899
        %v3902 = vmul.f32 %v3900, %v307
        %v3903 = vmul.f32 %v3900, %v308
        %v3904 = vmul.f32 %v3900, %v309
        %v3905 = vmul.f32 %v3900, %v310
        %v3906 = vmul.f32 %v3900, %v311
        %v3907 = vmul.f32 %v3900, %v312
        %v3908 = vmul.f32 %v3900, %v313
        %v3909 = vmul.f32 %v3900, %v314
        %3910 = vset.pattern.permute.xlu0 55
        %3911 = vperm.xlu0 %3910, %v319
        %v3912 = vpop.permute.xlu0 %3911
        %v3914 = vmul.f32 %v3912, %v307
        %v3915 = vmul.f32 %v3912, %v308
        %v3916 = vmul.f32 %v3912, %v309
        %v3917 = vmul.f32 %v3912, %v310
        %v3918 = vmul.f32 %v3912, %v311
        %v3919 = vmul.f32 %v3912, %v312
        %v3920 = vmul.f32 %v3912, %v313
        %v3921 = vmul.f32 %v3912, %v314
        %v3922 = vmul.f32 %v3912, %v315
        %3932 = vrot.lane.b32.xlu0 %v3914, 127
        %v3933 = vpop.permute.xlu0 %3932
        %3934 = vrot.lane.b32.xlu0 %v3915, 127
        %v3935 = vpop.permute.xlu0 %3934
        %3936 = vrot.lane.b32.xlu0 %v3916, 127
        %v3937 = vpop.permute.xlu0 %3936
        %3938 = vrot.lane.b32.xlu0 %v3917, 127
        %v3939 = vpop.permute.xlu0 %3938
        %3940 = vrot.lane.b32.xlu0 %v3918, 127
        %v3941 = vpop.permute.xlu0 %3940
        %3942 = vrot.lane.b32.xlu0 %v3919, 127
        %v3943 = vpop.permute.xlu0 %3942
        %3944 = vrot.lane.b32.xlu0 %v3920, 127
        %v3945 = vpop.permute.xlu0 %3944
        %3946 = vrot.lane.b32.xlu0 %v3921, 127
        %v3947 = vpop.permute.xlu0 %3946
        %3948 = vrot.lane.b32.xlu0 %v3922, 127
        %v3949 = vpop.permute.xlu0 %3948
        %v3950 = vsel %vm348, %v3933, %v3935
        %v3951 = vsel %vm348, %v3935, %v3937
        %v3952 = vsel %vm348, %v3937, %v3939
        %v3953 = vsel %vm348, %v3939, %v3941
        %v3954 = vsel %vm348, %v3941, %v3943
        %v3955 = vsel %vm348, %v3943, %v3945
        %v3956 = vsel %vm348, %v3945, %v3947
        %v3957 = vsel %vm348, %v3947, %v3949
        %v3966 = vadd.f32 %v3902, %v3950
        %v3967 = vadd.f32 %v3903, %v3951
        %v3968 = vadd.f32 %v3904, %v3952
        %v3969 = vadd.f32 %v3905, %v3953
        %v3970 = vadd.f32 %v3906, %v3954
        %v3971 = vadd.f32 %v3907, %v3955
        %v3972 = vadd.f32 %v3908, %v3956
        %v3973 = vadd.f32 %v3909, %v3957
        %3974 = vset.pattern.permute.xlu0 56
        %3975 = vperm.xlu0 %3974, %v319
        %v3976 = vpop.permute.xlu0 %3975
        %v3978 = vmul.f32 %v3976, %v307
        %v3979 = vmul.f32 %v3976, %v308
        %v3980 = vmul.f32 %v3976, %v309
        %v3981 = vmul.f32 %v3976, %v310
        %v3982 = vmul.f32 %v3976, %v311
        %v3983 = vmul.f32 %v3976, %v312
        %v3984 = vmul.f32 %v3976, %v313
        %v3985 = vmul.f32 %v3976, %v314
        %v3986 = vmul.f32 %v3976, %v315
        %3996 = vrot.lane.b32.xlu0 %v3978, 126
        %v3997 = vpop.permute.xlu0 %3996
        %3998 = vrot.lane.b32.xlu0 %v3979, 126
        %v3999 = vpop.permute.xlu0 %3998
        %4000 = vrot.lane.b32.xlu0 %v3980, 126
        %v4001 = vpop.permute.xlu0 %4000
        %4002 = vrot.lane.b32.xlu0 %v3981, 126
        %v4003 = vpop.permute.xlu0 %4002
        %4004 = vrot.lane.b32.xlu0 %v3982, 126
        %v4005 = vpop.permute.xlu0 %4004
        %4006 = vrot.lane.b32.xlu0 %v3983, 126
        %v4007 = vpop.permute.xlu0 %4006
        %4008 = vrot.lane.b32.xlu0 %v3984, 126
        %v4009 = vpop.permute.xlu0 %4008
        %4010 = vrot.lane.b32.xlu0 %v3985, 126
        %v4011 = vpop.permute.xlu0 %4010
        %4012 = vrot.lane.b32.xlu0 %v3986, 126
        %v4013 = vpop.permute.xlu0 %4012
        %v4014 = vsel %vm391, %v3997, %v3999
        %v4015 = vsel %vm391, %v3999, %v4001
        %v4016 = vsel %vm391, %v4001, %v4003
        %v4017 = vsel %vm391, %v4003, %v4005
        %v4018 = vsel %vm391, %v4005, %v4007
        %v4019 = vsel %vm391, %v4007, %v4009
        %v4020 = vsel %vm391, %v4009, %v4011
        %v4021 = vsel %vm391, %v4011, %v4013
        %v4030 = vadd.f32 %v3966, %v4014
        %v4031 = vadd.f32 %v3967, %v4015
        %v4032 = vadd.f32 %v3968, %v4016
        %v4033 = vadd.f32 %v3969, %v4017
        %v4034 = vadd.f32 %v3970, %v4018
        %v4035 = vadd.f32 %v3971, %v4019
        %v4036 = vadd.f32 %v3972, %v4020
        %v4037 = vadd.f32 %v3973, %v4021
        %4038 = vset.pattern.permute.xlu0 57
        %4039 = vperm.xlu0 %4038, %v319
        %v4040 = vpop.permute.xlu0 %4039
        %v4042 = vmul.f32 %v4040, %v308
        %v4043 = vmul.f32 %v4040, %v309
        %v4044 = vmul.f32 %v4040, %v310
        %v4045 = vmul.f32 %v4040, %v311
        %v4046 = vmul.f32 %v4040, %v312
        %v4047 = vmul.f32 %v4040, %v313
        %v4048 = vmul.f32 %v4040, %v314
        %v4049 = vmul.f32 %v4040, %v315
        %v4050 = vadd.f32 %v4030, %v4042
        %v4051 = vadd.f32 %v4031, %v4043
        %v4052 = vadd.f32 %v4032, %v4044
        %v4053 = vadd.f32 %v4033, %v4045
        %v4054 = vadd.f32 %v4034, %v4046
        %v4055 = vadd.f32 %v4035, %v4047
        %v4056 = vadd.f32 %v4036, %v4048
        %v4057 = vadd.f32 %v4037, %v4049
        %4058 = vset.pattern.permute.xlu0 58
        %4059 = vperm.xlu0 %4058, %v319
        %v4060 = vpop.permute.xlu0 %4059
        %v4062 = vmul.f32 %v4060, %v308
        %v4063 = vmul.f32 %v4060, %v309
        %v4064 = vmul.f32 %v4060, %v310
        %v4065 = vmul.f32 %v4060, %v311
        %v4066 = vmul.f32 %v4060, %v312
        %v4067 = vmul.f32 %v4060, %v313
        %v4068 = vmul.f32 %v4060, %v314
        %v4069 = vmul.f32 %v4060, %v315
        %v4070 = vmul.f32 %v4060, %v316
        %4080 = vrot.lane.b32.xlu0 %v4062, 127
        %v4081 = vpop.permute.xlu0 %4080
        %4082 = vrot.lane.b32.xlu0 %v4063, 127
        %v4083 = vpop.permute.xlu0 %4082
        %4084 = vrot.lane.b32.xlu0 %v4064, 127
        %v4085 = vpop.permute.xlu0 %4084
        %4086 = vrot.lane.b32.xlu0 %v4065, 127
        %v4087 = vpop.permute.xlu0 %4086
        %4088 = vrot.lane.b32.xlu0 %v4066, 127
        %v4089 = vpop.permute.xlu0 %4088
        %4090 = vrot.lane.b32.xlu0 %v4067, 127
        %v4091 = vpop.permute.xlu0 %4090
        %4092 = vrot.lane.b32.xlu0 %v4068, 127
        %v4093 = vpop.permute.xlu0 %4092
        %4094 = vrot.lane.b32.xlu0 %v4069, 127
        %v4095 = vpop.permute.xlu0 %4094
        %4096 = vrot.lane.b32.xlu0 %v4070, 127
        %v4097 = vpop.permute.xlu0 %4096
        %v4098 = vsel %vm348, %v4081, %v4083
        %v4099 = vsel %vm348, %v4083, %v4085
        %v4100 = vsel %vm348, %v4085, %v4087
        %v4101 = vsel %vm348, %v4087, %v4089
        %v4102 = vsel %vm348, %v4089, %v4091
        %v4103 = vsel %vm348, %v4091, %v4093
        %v4104 = vsel %vm348, %v4093, %v4095
        %v4105 = vsel %vm348, %v4095, %v4097
        %v4114 = vadd.f32 %v4050, %v4098
        %v4115 = vadd.f32 %v4051, %v4099
        %v4116 = vadd.f32 %v4052, %v4100
        %v4117 = vadd.f32 %v4053, %v4101
        %v4118 = vadd.f32 %v4054, %v4102
        %v4119 = vadd.f32 %v4055, %v4103
        %v4120 = vadd.f32 %v4056, %v4104
        %v4121 = vadd.f32 %v4057, %v4105
        %4122 = vset.pattern.permute.xlu0 59
        %4123 = vperm.xlu0 %4122, %v319
        %v4124 = vpop.permute.xlu0 %4123
        %v4126 = vmul.f32 %v4124, %v308
        %v4127 = vmul.f32 %v4124, %v309
        %v4128 = vmul.f32 %v4124, %v310
        %v4129 = vmul.f32 %v4124, %v311
        %v4130 = vmul.f32 %v4124, %v312
        %v4131 = vmul.f32 %v4124, %v313
        %v4132 = vmul.f32 %v4124, %v314
        %v4133 = vmul.f32 %v4124, %v315
        %v4134 = vmul.f32 %v4124, %v316
        %4144 = vrot.lane.b32.xlu0 %v4126, 126
        %v4145 = vpop.permute.xlu0 %4144
        %4146 = vrot.lane.b32.xlu0 %v4127, 126
        %v4147 = vpop.permute.xlu0 %4146
        %4148 = vrot.lane.b32.xlu0 %v4128, 126
        %v4149 = vpop.permute.xlu0 %4148
        %4150 = vrot.lane.b32.xlu0 %v4129, 126
        %v4151 = vpop.permute.xlu0 %4150
        %4152 = vrot.lane.b32.xlu0 %v4130, 126
        %v4153 = vpop.permute.xlu0 %4152
        %4154 = vrot.lane.b32.xlu0 %v4131, 126
        %v4155 = vpop.permute.xlu0 %4154
        %4156 = vrot.lane.b32.xlu0 %v4132, 126
        %v4157 = vpop.permute.xlu0 %4156
        %4158 = vrot.lane.b32.xlu0 %v4133, 126
        %v4159 = vpop.permute.xlu0 %4158
        %4160 = vrot.lane.b32.xlu0 %v4134, 126
        %v4161 = vpop.permute.xlu0 %4160
        %v4162 = vsel %vm391, %v4145, %v4147
        %v4163 = vsel %vm391, %v4147, %v4149
        %v4164 = vsel %vm391, %v4149, %v4151
        %v4165 = vsel %vm391, %v4151, %v4153
        %v4166 = vsel %vm391, %v4153, %v4155
        %v4167 = vsel %vm391, %v4155, %v4157
        %v4168 = vsel %vm391, %v4157, %v4159
        %v4169 = vsel %vm391, %v4159, %v4161
        %v4178 = vadd.f32 %v4114, %v4162
        %v4179 = vadd.f32 %v4115, %v4163
        %v4180 = vadd.f32 %v4116, %v4164
        %v4181 = vadd.f32 %v4117, %v4165
        %v4182 = vadd.f32 %v4118, %v4166
        %v4183 = vadd.f32 %v4119, %v4167
        %v4184 = vadd.f32 %v4120, %v4168
        %v4185 = vadd.f32 %v4121, %v4169
        %4186 = vset.pattern.permute.xlu0 60
        %4187 = vperm.xlu0 %4186, %v319
        %v4188 = vpop.permute.xlu0 %4187
        %v4190 = vmul.f32 %v4188, %v309
        %v4191 = vmul.f32 %v4188, %v310
        %v4192 = vmul.f32 %v4188, %v311
        %v4193 = vmul.f32 %v4188, %v312
        %v4194 = vmul.f32 %v4188, %v313
        %v4195 = vmul.f32 %v4188, %v314
        %v4196 = vmul.f32 %v4188, %v315
        %v4197 = vmul.f32 %v4188, %v316
        %v4198 = vadd.f32 %v4178, %v4190
        %v4199 = vadd.f32 %v4179, %v4191
        %v4200 = vadd.f32 %v4180, %v4192
        %v4201 = vadd.f32 %v4181, %v4193
        %v4202 = vadd.f32 %v4182, %v4194
        %v4203 = vadd.f32 %v4183, %v4195
        %v4204 = vadd.f32 %v4184, %v4196
        %v4205 = vadd.f32 %v4185, %v4197
        %4206 = vset.pattern.permute.xlu0 61
        %4207 = vperm.xlu0 %4206, %v319
        %v4208 = vpop.permute.xlu0 %4207
        %v4210 = vmul.f32 %v4208, %v309
        %v4211 = vmul.f32 %v4208, %v310
        %v4212 = vmul.f32 %v4208, %v311
        %v4213 = vmul.f32 %v4208, %v312
        %v4214 = vmul.f32 %v4208, %v313
        %v4215 = vmul.f32 %v4208, %v314
        %v4216 = vmul.f32 %v4208, %v315
        %v4217 = vmul.f32 %v4208, %v316
        %v4218 = vmul.f32 %v4208, %v317
        %4228 = vrot.lane.b32.xlu0 %v4210, 127
        %v4229 = vpop.permute.xlu0 %4228
        %4230 = vrot.lane.b32.xlu0 %v4211, 127
        %v4231 = vpop.permute.xlu0 %4230
        %4232 = vrot.lane.b32.xlu0 %v4212, 127
        %v4233 = vpop.permute.xlu0 %4232
        %4234 = vrot.lane.b32.xlu0 %v4213, 127
        %v4235 = vpop.permute.xlu0 %4234
        %4236 = vrot.lane.b32.xlu0 %v4214, 127
        %v4237 = vpop.permute.xlu0 %4236
        %4238 = vrot.lane.b32.xlu0 %v4215, 127
        %v4239 = vpop.permute.xlu0 %4238
        %4240 = vrot.lane.b32.xlu0 %v4216, 127
        %v4241 = vpop.permute.xlu0 %4240
        %4242 = vrot.lane.b32.xlu0 %v4217, 127
        %v4243 = vpop.permute.xlu0 %4242
        %4244 = vrot.lane.b32.xlu0 %v4218, 127
        %v4245 = vpop.permute.xlu0 %4244
        %v4246 = vsel %vm348, %v4229, %v4231
        %v4247 = vsel %vm348, %v4231, %v4233
        %v4248 = vsel %vm348, %v4233, %v4235
        %v4249 = vsel %vm348, %v4235, %v4237
        %v4250 = vsel %vm348, %v4237, %v4239
        %v4251 = vsel %vm348, %v4239, %v4241
        %v4252 = vsel %vm348, %v4241, %v4243
        %v4253 = vsel %vm348, %v4243, %v4245
        %v4262 = vadd.f32 %v4198, %v4246
        %v4263 = vadd.f32 %v4199, %v4247
        %v4264 = vadd.f32 %v4200, %v4248
        %v4265 = vadd.f32 %v4201, %v4249
        %v4266 = vadd.f32 %v4202, %v4250
        %v4267 = vadd.f32 %v4203, %v4251
        %v4268 = vadd.f32 %v4204, %v4252
        %v4269 = vadd.f32 %v4205, %v4253
        %4270 = vset.pattern.permute.xlu0 62
        %4271 = vperm.xlu0 %4270, %v319
        %v4272 = vpop.permute.xlu0 %4271
        %v4274 = vmul.f32 %v4272, %v309
        %v4275 = vmul.f32 %v4272, %v310
        %v4276 = vmul.f32 %v4272, %v311
        %v4277 = vmul.f32 %v4272, %v312
        %v4278 = vmul.f32 %v4272, %v313
        %v4279 = vmul.f32 %v4272, %v314
        %v4280 = vmul.f32 %v4272, %v315
        %v4281 = vmul.f32 %v4272, %v316
        %v4282 = vmul.f32 %v4272, %v317
        %4292 = vrot.lane.b32.xlu0 %v4274, 126
        %v4293 = vpop.permute.xlu0 %4292
        %4294 = vrot.lane.b32.xlu0 %v4275, 126
        %v4295 = vpop.permute.xlu0 %4294
        %4296 = vrot.lane.b32.xlu0 %v4276, 126
        %v4297 = vpop.permute.xlu0 %4296
        %4298 = vrot.lane.b32.xlu0 %v4277, 126
        %v4299 = vpop.permute.xlu0 %4298
        %4300 = vrot.lane.b32.xlu0 %v4278, 126
        %v4301 = vpop.permute.xlu0 %4300
        %4302 = vrot.lane.b32.xlu0 %v4279, 126
        %v4303 = vpop.permute.xlu0 %4302
        %4304 = vrot.lane.b32.xlu0 %v4280, 126
        %v4305 = vpop.permute.xlu0 %4304
        %4306 = vrot.lane.b32.xlu0 %v4281, 126
        %v4307 = vpop.permute.xlu0 %4306
        %4308 = vrot.lane.b32.xlu0 %v4282, 126
        %v4309 = vpop.permute.xlu0 %4308
        %v4310 = vsel %vm391, %v4293, %v4295
        %v4311 = vsel %vm391, %v4295, %v4297
        %v4312 = vsel %vm391, %v4297, %v4299
        %v4313 = vsel %vm391, %v4299, %v4301
        %v4314 = vsel %vm391, %v4301, %v4303
        %v4315 = vsel %vm391, %v4303, %v4305
        %v4316 = vsel %vm391, %v4305, %v4307
        %v4317 = vsel %vm391, %v4307, %v4309
        %v4326 = vadd.f32 %v4262, %v4310
        %v4327 = vadd.f32 %v4263, %v4311
        %v4328 = vadd.f32 %v4264, %v4312
        %v4329 = vadd.f32 %v4265, %v4313
        %v4330 = vadd.f32 %v4266, %v4314
        %v4331 = vadd.f32 %v4267, %v4315
        %v4332 = vadd.f32 %v4268, %v4316
        %v4333 = vadd.f32 %v4269, %v4317
        %4334 = vset.pattern.permute.xlu0 6
        %4335 = vperm.xlu0 %4334, %v320
        %v4336 = vpop.permute.xlu0 %4335
        %v4338 = vadd.f32 %v4326, %v4336
        %v4339 = vadd.f32 %v4327, %v4336
        %v4340 = vadd.f32 %v4328, %v4336
        %v4341 = vadd.f32 %v4329, %v4336
        %v4342 = vadd.f32 %v4330, %v4336
        %v4343 = vadd.f32 %v4331, %v4336
        %v4344 = vadd.f32 %v4332, %v4336
        %v4345 = vadd.f32 %v4333, %v4336
        %v4346 = vmax.f32 %v4338, 0.0
        %v4347 = vmax.f32 %v4339, 0.0
        %v4348 = vmax.f32 %v4340, 0.0
        %v4349 = vmax.f32 %v4341, 0.0
        %v4350 = vmax.f32 %v4342, 0.0
        %v4351 = vmax.f32 %v4343, 0.0
        %v4352 = vmax.f32 %v4344, 0.0
        %v4353 = vmax.f32 %v4345, 0.0
        %s4354 = sadd.s32 0, 48
        %v4355 = vmul.f32 %v4346, %v3890
        %v4356 = vmul.f32 %v4347, %v3891
        %v4357 = vmul.f32 %v4348, %v3892
        %v4358 = vmul.f32 %v4349, %v3893
        %v4359 = vmul.f32 %v4350, %v3894
        %v4360 = vmul.f32 %v4351, %v3895
        %v4361 = vmul.f32 %v4352, %v3896
        %v4362 = vmul.f32 %v4353, %v3897
        %s4363 = sshra.s32 %s4354, 3
        %s4364 = sand.u32 %s4354, 7
        %s4365 = smul.u32 %s4363, 8
        %s4366 = smul.addr %s4365, 8
        %s4367 = scalar_lea.vmem [#allocation4], %s4366
        %4368 = vst [vmem:[%s4367] sm:$0xff] %v4355
        %4369 = vst [vmem:[%s4367 + $0x8] sm:$0xff] %v4356
        %4370 = vst [vmem:[%s4367 + $0x10] sm:$0xff] %v4357
        %4371 = vst [vmem:[%s4367 + $0x18] sm:$0xff] %v4358
        %4372 = vst [vmem:[%s4367 + $0x20] sm:$0xff] %v4359
        %4373 = vst [vmem:[%s4367 + $0x28] sm:$0xff] %v4360
        %4374 = vst [vmem:[%s4367 + $0x30] sm:$0xff] %v4361
        %4375 = vst [vmem:[%s4367 + $0x38] sm:$0xff] %v4362
        %v4376 = vmul.f32 %v888, %v967
        %v4377 = vmul.f32 %v890, %v968
        %v4378 = vmul.f32 %v892, %v969
        %v4379 = vmul.f32 %v894, %v970
        %v4380 = vmul.f32 %v896, %v971
        %v4381 = vmul.f32 %v898, %v972
        %v4382 = vmul.f32 %v900, %v973
        %v4383 = vmul.f32 %v902, %v974
        %4384 = vset.pattern.permute.xlu0 63
        %4385 = vperm.xlu0 %4384, %v319
        %v4386 = vpop.permute.xlu0 %4385
        %v4388 = vmul.f32 %v4386, %v307
        %v4389 = vmul.f32 %v4386, %v308
        %v4390 = vmul.f32 %v4386, %v309
        %v4391 = vmul.f32 %v4386, %v310
        %v4392 = vmul.f32 %v4386, %v311
        %v4393 = vmul.f32 %v4386, %v312
        %v4394 = vmul.f32 %v4386, %v313
        %v4395 = vmul.f32 %v4386, %v314
        %4396 = vset.pattern.permute.xlu0 64
        %4397 = vperm.xlu0 %4396, %v319
        %v4398 = vpop.permute.xlu0 %4397
        %v4400 = vmul.f32 %v4398, %v307
        %v4401 = vmul.f32 %v4398, %v308
        %v4402 = vmul.f32 %v4398, %v309
        %v4403 = vmul.f32 %v4398, %v310
        %v4404 = vmul.f32 %v4398, %v311
        %v4405 = vmul.f32 %v4398, %v312
        %v4406 = vmul.f32 %v4398, %v313
        %v4407 = vmul.f32 %v4398, %v314
        %v4408 = vmul.f32 %v4398, %v315
        %4418 = vrot.lane.b32.xlu0 %v4400, 127
        %v4419 = vpop.permute.xlu0 %4418
        %4420 = vrot.lane.b32.xlu0 %v4401, 127
        %v4421 = vpop.permute.xlu0 %4420
        %4422 = vrot.lane.b32.xlu0 %v4402, 127
        %v4423 = vpop.permute.xlu0 %4422
        %4424 = vrot.lane.b32.xlu0 %v4403, 127
        %v4425 = vpop.permute.xlu0 %4424
        %4426 = vrot.lane.b32.xlu0 %v4404, 127
        %v4427 = vpop.permute.xlu0 %4426
        %4428 = vrot.lane.b32.xlu0 %v4405, 127
        %v4429 = vpop.permute.xlu0 %4428
        %4430 = vrot.lane.b32.xlu0 %v4406, 127
        %v4431 = vpop.permute.xlu0 %4430
        %4432 = vrot.lane.b32.xlu0 %v4407, 127
        %v4433 = vpop.permute.xlu0 %4432
        %4434 = vrot.lane.b32.xlu0 %v4408, 127
        %v4435 = vpop.permute.xlu0 %4434
        %v4436 = vsel %vm348, %v4419, %v4421
        %v4437 = vsel %vm348, %v4421, %v4423
        %v4438 = vsel %vm348, %v4423, %v4425
        %v4439 = vsel %vm348, %v4425, %v4427
        %v4440 = vsel %vm348, %v4427, %v4429
        %v4441 = vsel %vm348, %v4429, %v4431
        %v4442 = vsel %vm348, %v4431, %v4433
        %v4443 = vsel %vm348, %v4433, %v4435
        %v4452 = vadd.f32 %v4388, %v4436
        %v4453 = vadd.f32 %v4389, %v4437
        %v4454 = vadd.f32 %v4390, %v4438
        %v4455 = vadd.f32 %v4391, %v4439
        %v4456 = vadd.f32 %v4392, %v4440
        %v4457 = vadd.f32 %v4393, %v4441
        %v4458 = vadd.f32 %v4394, %v4442
        %v4459 = vadd.f32 %v4395, %v4443
        %4460 = vset.pattern.permute.xlu0 65
        %4461 = vperm.xlu0 %4460, %v319
        %v4462 = vpop.permute.xlu0 %4461
        %v4464 = vmul.f32 %v4462, %v307
        %v4465 = vmul.f32 %v4462, %v308
        %v4466 = vmul.f32 %v4462, %v309
        %v4467 = vmul.f32 %v4462, %v310
        %v4468 = vmul.f32 %v4462, %v311
        %v4469 = vmul.f32 %v4462, %v312
        %v4470 = vmul.f32 %v4462, %v313
        %v4471 = vmul.f32 %v4462, %v314
        %v4472 = vmul.f32 %v4462, %v315
        %4482 = vrot.lane.b32.xlu0 %v4464, 126
        %v4483 = vpop.permute.xlu0 %4482
        %4484 = vrot.lane.b32.xlu0 %v4465, 126
        %v4485 = vpop.permute.xlu0 %4484
        %4486 = vrot.lane.b32.xlu0 %v4466, 126
        %v4487 = vpop.permute.xlu0 %4486
        %4488 = vrot.lane.b32.xlu0 %v4467, 126
        %v4489 = vpop.permute.xlu0 %4488
        %4490 = vrot.lane.b32.xlu0 %v4468, 126
        %v4491 = vpop.permute.xlu0 %4490
        %4492 = vrot.lane.b32.xlu0 %v4469, 126
        %v4493 = vpop.permute.xlu0 %4492
        %4494 = vrot.lane.b32.xlu0 %v4470, 126
        %v4495 = vpop.permute.xlu0 %4494
        %4496 = vrot.lane.b32.xlu0 %v4471, 126
        %v4497 = vpop.permute.xlu0 %4496
        %4498 = vrot.lane.b32.xlu0 %v4472, 126
        %v4499 = vpop.permute.xlu0 %4498
        %v4500 = vsel %vm391, %v4483, %v4485
        %v4501 = vsel %vm391, %v4485, %v4487
        %v4502 = vsel %vm391, %v4487, %v4489
        %v4503 = vsel %vm391, %v4489, %v4491
        %v4504 = vsel %vm391, %v4491, %v4493
        %v4505 = vsel %vm391, %v4493, %v4495
        %v4506 = vsel %vm391, %v4495, %v4497
        %v4507 = vsel %vm391, %v4497, %v4499
        %v4516 = vadd.f32 %v4452, %v4500
        %v4517 = vadd.f32 %v4453, %v4501
        %v4518 = vadd.f32 %v4454, %v4502
        %v4519 = vadd.f32 %v4455, %v4503
        %v4520 = vadd.f32 %v4456, %v4504
        %v4521 = vadd.f32 %v4457, %v4505
        %v4522 = vadd.f32 %v4458, %v4506
        %v4523 = vadd.f32 %v4459, %v4507
        %4524 = vset.pattern.permute.xlu0 66
        %4525 = vperm.xlu0 %4524, %v319
        %v4526 = vpop.permute.xlu0 %4525
        %v4528 = vmul.f32 %v4526, %v308
        %v4529 = vmul.f32 %v4526, %v309
        %v4530 = vmul.f32 %v4526, %v310
        %v4531 = vmul.f32 %v4526, %v311
        %v4532 = vmul.f32 %v4526, %v312
        %v4533 = vmul.f32 %v4526, %v313
        %v4534 = vmul.f32 %v4526, %v314
        %v4535 = vmul.f32 %v4526, %v315
        %v4536 = vadd.f32 %v4516, %v4528
        %v4537 = vadd.f32 %v4517, %v4529
        %v4538 = vadd.f32 %v4518, %v4530
        %v4539 = vadd.f32 %v4519, %v4531
        %v4540 = vadd.f32 %v4520, %v4532
        %v4541 = vadd.f32 %v4521, %v4533
        %v4542 = vadd.f32 %v4522, %v4534
        %v4543 = vadd.f32 %v4523, %v4535
        %4544 = vset.pattern.permute.xlu0 67
        %4545 = vperm.xlu0 %4544, %v319
        %v4546 = vpop.permute.xlu0 %4545
        %v4548 = vmul.f32 %v4546, %v308
        %v4549 = vmul.f32 %v4546, %v309
        %v4550 = vmul.f32 %v4546, %v310
        %v4551 = vmul.f32 %v4546, %v311
        %v4552 = vmul.f32 %v4546, %v312
        %v4553 = vmul.f32 %v4546, %v313
        %v4554 = vmul.f32 %v4546, %v314
        %v4555 = vmul.f32 %v4546, %v315
        %v4556 = vmul.f32 %v4546, %v316
        %4566 = vrot.lane.b32.xlu0 %v4548, 127
        %v4567 = vpop.permute.xlu0 %4566
        %4568 = vrot.lane.b32.xlu0 %v4549, 127
        %v4569 = vpop.permute.xlu0 %4568
        %4570 = vrot.lane.b32.xlu0 %v4550, 127
        %v4571 = vpop.permute.xlu0 %4570
        %4572 = vrot.lane.b32.xlu0 %v4551, 127
        %v4573 = vpop.permute.xlu0 %4572
        %4574 = vrot.lane.b32.xlu0 %v4552, 127
        %v4575 = vpop.permute.xlu0 %4574
        %4576 = vrot.lane.b32.xlu0 %v4553, 127
        %v4577 = vpop.permute.xlu0 %4576
        %4578 = vrot.lane.b32.xlu0 %v4554, 127
        %v4579 = vpop.permute.xlu0 %4578
        %4580 = vrot.lane.b32.xlu0 %v4555, 127
        %v4581 = vpop.permute.xlu0 %4580
        %4582 = vrot.lane.b32.xlu0 %v4556, 127
        %v4583 = vpop.permute.xlu0 %4582
        %v4584 = vsel %vm348, %v4567, %v4569
        %v4585 = vsel %vm348, %v4569, %v4571
        %v4586 = vsel %vm348, %v4571, %v4573
        %v4587 = vsel %vm348, %v4573, %v4575
        %v4588 = vsel %vm348, %v4575, %v4577
        %v4589 = vsel %vm348, %v4577, %v4579
        %v4590 = vsel %vm348, %v4579, %v4581
        %v4591 = vsel %vm348, %v4581, %v4583
        %v4600 = vadd.f32 %v4536, %v4584
        %v4601 = vadd.f32 %v4537, %v4585
        %v4602 = vadd.f32 %v4538, %v4586
        %v4603 = vadd.f32 %v4539, %v4587
        %v4604 = vadd.f32 %v4540, %v4588
        %v4605 = vadd.f32 %v4541, %v4589
        %v4606 = vadd.f32 %v4542, %v4590
        %v4607 = vadd.f32 %v4543, %v4591
        %4608 = vset.pattern.permute.xlu0 68
        %4609 = vperm.xlu0 %4608, %v319
        %v4610 = vpop.permute.xlu0 %4609
        %v4612 = vmul.f32 %v4610, %v308
        %v4613 = vmul.f32 %v4610, %v309
        %v4614 = vmul.f32 %v4610, %v310
        %v4615 = vmul.f32 %v4610, %v311
        %v4616 = vmul.f32 %v4610, %v312
        %v4617 = vmul.f32 %v4610, %v313
        %v4618 = vmul.f32 %v4610, %v314
        %v4619 = vmul.f32 %v4610, %v315
        %v4620 = vmul.f32 %v4610, %v316
        %4630 = vrot.lane.b32.xlu0 %v4612, 126
        %v4631 = vpop.permute.xlu0 %4630
        %4632 = vrot.lane.b32.xlu0 %v4613, 126
        %v4633 = vpop.permute.xlu0 %4632
        %4634 = vrot.lane.b32.xlu0 %v4614, 126
        %v4635 = vpop.permute.xlu0 %4634
        %4636 = vrot.lane.b32.xlu0 %v4615, 126
        %v4637 = vpop.permute.xlu0 %4636
        %4638 = vrot.lane.b32.xlu0 %v4616, 126
        %v4639 = vpop.permute.xlu0 %4638
        %4640 = vrot.lane.b32.xlu0 %v4617, 126
        %v4641 = vpop.permute.xlu0 %4640
        %4642 = vrot.lane.b32.xlu0 %v4618, 126
        %v4643 = vpop.permute.xlu0 %4642
        %4644 = vrot.lane.b32.xlu0 %v4619, 126
        %v4645 = vpop.permute.xlu0 %4644
        %4646 = vrot.lane.b32.xlu0 %v4620, 126
        %v4647 = vpop.permute.xlu0 %4646
        %v4648 = vsel %vm391, %v4631, %v4633
        %v4649 = vsel %vm391, %v4633, %v4635
        %v4650 = vsel %vm391, %v4635, %v4637
        %v4651 = vsel %vm391, %v4637, %v4639
        %v4652 = vsel %vm391, %v4639, %v4641
        %v4653 = vsel %vm391, %v4641, %v4643
        %v4654 = vsel %vm391, %v4643, %v4645
        %v4655 = vsel %vm391, %v4645, %v4647
        %v4664 = vadd.f32 %v4600, %v4648
        %v4665 = vadd.f32 %v4601, %v4649
        %v4666 = vadd.f32 %v4602, %v4650
        %v4667 = vadd.f32 %v4603, %v4651
        %v4668 = vadd.f32 %v4604, %v4652
        %v4669 = vadd.f32 %v4605, %v4653
        %v4670 = vadd.f32 %v4606, %v4654
        %v4671 = vadd.f32 %v4607, %v4655
        %4672 = vset.pattern.permute.xlu0 69
        %4673 = vperm.xlu0 %4672, %v319
        %v4674 = vpop.permute.xlu0 %4673
        %v4676 = vmul.f32 %v4674, %v309
        %v4677 = vmul.f32 %v4674, %v310
        %v4678 = vmul.f32 %v4674, %v311
        %v4679 = vmul.f32 %v4674, %v312
        %v4680 = vmul.f32 %v4674, %v313
        %v4681 = vmul.f32 %v4674, %v314
        %v4682 = vmul.f32 %v4674, %v315
        %v4683 = vmul.f32 %v4674, %v316
        %v4684 = vadd.f32 %v4664, %v4676
        %v4685 = vadd.f32 %v4665, %v4677
        %v4686 = vadd.f32 %v4666, %v4678
        %v4687 = vadd.f32 %v4667, %v4679
        %v4688 = vadd.f32 %v4668, %v4680
        %v4689 = vadd.f32 %v4669, %v4681
        %v4690 = vadd.f32 %v4670, %v4682
        %v4691 = vadd.f32 %v4671, %v4683
        %4692 = vset.pattern.permute.xlu0 70
        %4693 = vperm.xlu0 %4692, %v319
        %v4694 = vpop.permute.xlu0 %4693
        %v4696 = vmul.f32 %v4694, %v309
        %v4697 = vmul.f32 %v4694, %v310
        %v4698 = vmul.f32 %v4694, %v311
        %v4699 = vmul.f32 %v4694, %v312
        %v4700 = vmul.f32 %v4694, %v313
        %v4701 = vmul.f32 %v4694, %v314
        %v4702 = vmul.f32 %v4694, %v315
        %v4703 = vmul.f32 %v4694, %v316
        %v4704 = vmul.f32 %v4694, %v317
        %4714 = vrot.lane.b32.xlu0 %v4696, 127
        %v4715 = vpop.permute.xlu0 %4714
        %4716 = vrot.lane.b32.xlu0 %v4697, 127
        %v4717 = vpop.permute.xlu0 %4716
        %4718 = vrot.lane.b32.xlu0 %v4698, 127
        %v4719 = vpop.permute.xlu0 %4718
        %4720 = vrot.lane.b32.xlu0 %v4699, 127
        %v4721 = vpop.permute.xlu0 %4720
        %4722 = vrot.lane.b32.xlu0 %v4700, 127
        %v4723 = vpop.permute.xlu0 %4722
        %4724 = vrot.lane.b32.xlu0 %v4701, 127
        %v4725 = vpop.permute.xlu0 %4724
        %4726 = vrot.lane.b32.xlu0 %v4702, 127
        %v4727 = vpop.permute.xlu0 %4726
        %4728 = vrot.lane.b32.xlu0 %v4703, 127
        %v4729 = vpop.permute.xlu0 %4728
        %4730 = vrot.lane.b32.xlu0 %v4704, 127
        %v4731 = vpop.permute.xlu0 %4730
        %v4732 = vsel %vm348, %v4715, %v4717
        %v4733 = vsel %vm348, %v4717, %v4719
        %v4734 = vsel %vm348, %v4719, %v4721
        %v4735 = vsel %vm348, %v4721, %v4723
        %v4736 = vsel %vm348, %v4723, %v4725
        %v4737 = vsel %vm348, %v4725, %v4727
        %v4738 = vsel %vm348, %v4727, %v4729
        %v4739 = vsel %vm348, %v4729, %v4731
        %v4748 = vadd.f32 %v4684, %v4732
        %v4749 = vadd.f32 %v4685, %v4733
        %v4750 = vadd.f32 %v4686, %v4734
        %v4751 = vadd.f32 %v4687, %v4735
        %v4752 = vadd.f32 %v4688, %v4736
        %v4753 = vadd.f32 %v4689, %v4737
        %v4754 = vadd.f32 %v4690, %v4738
        %v4755 = vadd.f32 %v4691, %v4739
        %4756 = vset.pattern.permute.xlu0 71
        %4757 = vperm.xlu0 %4756, %v319
        %v4758 = vpop.permute.xlu0 %4757
        %v4760 = vmul.f32 %v4758, %v309
        %v4761 = vmul.f32 %v4758, %v310
        %v4762 = vmul.f32 %v4758, %v311
        %v4763 = vmul.f32 %v4758, %v312
        %v4764 = vmul.f32 %v4758, %v313
        %v4765 = vmul.f32 %v4758, %v314
        %v4766 = vmul.f32 %v4758, %v315
        %v4767 = vmul.f32 %v4758, %v316
        %v4768 = vmul.f32 %v4758, %v317
        %4778 = vrot.lane.b32.xlu0 %v4760, 126
        %v4779 = vpop.permute.xlu0 %4778
        %4780 = vrot.lane.b32.xlu0 %v4761, 126
        %v4781 = vpop.permute.xlu0 %4780
        %4782 = vrot.lane.b32.xlu0 %v4762, 126
        %v4783 = vpop.permute.xlu0 %4782
        %4784 = vrot.lane.b32.xlu0 %v4763, 126
        %v4785 = vpop.permute.xlu0 %4784
        %4786 = vrot.lane.b32.xlu0 %v4764, 126
        %v4787 = vpop.permute.xlu0 %4786
        %4788 = vrot.lane.b32.xlu0 %v4765, 126
        %v4789 = vpop.permute.xlu0 %4788
        %4790 = vrot.lane.b32.xlu0 %v4766, 126
        %v4791 = vpop.permute.xlu0 %4790
        %4792 = vrot.lane.b32.xlu0 %v4767, 126
        %v4793 = vpop.permute.xlu0 %4792
        %4794 = vrot.lane.b32.xlu0 %v4768, 126
        %v4795 = vpop.permute.xlu0 %4794
        %v4796 = vsel %vm391, %v4779, %v4781
        %v4797 = vsel %vm391, %v4781, %v4783
        %v4798 = vsel %vm391, %v4783, %v4785
        %v4799 = vsel %vm391, %v4785, %v4787
        %v4800 = vsel %vm391, %v4787, %v4789
        %v4801 = vsel %vm391, %v4789, %v4791
        %v4802 = vsel %vm391, %v4791, %v4793
        %v4803 = vsel %vm391, %v4793, %v4795
        %v4812 = vadd.f32 %v4748, %v4796
        %v4813 = vadd.f32 %v4749, %v4797
        %v4814 = vadd.f32 %v4750, %v4798
        %v4815 = vadd.f32 %v4751, %v4799
        %v4816 = vadd.f32 %v4752, %v4800
        %v4817 = vadd.f32 %v4753, %v4801
        %v4818 = vadd.f32 %v4754, %v4802
        %v4819 = vadd.f32 %v4755, %v4803
        %4820 = vset.pattern.permute.xlu0 7
        %4821 = vperm.xlu0 %4820, %v320
        %v4822 = vpop.permute.xlu0 %4821
        %v4824 = vadd.f32 %v4812, %v4822
        %v4825 = vadd.f32 %v4813, %v4822
        %v4826 = vadd.f32 %v4814, %v4822
        %v4827 = vadd.f32 %v4815, %v4822
        %v4828 = vadd.f32 %v4816, %v4822
        %v4829 = vadd.f32 %v4817, %v4822
        %v4830 = vadd.f32 %v4818, %v4822
        %v4831 = vadd.f32 %v4819, %v4822
        %v4832 = vmax.f32 %v4824, 0.0
        %v4833 = vmax.f32 %v4825, 0.0
        %v4834 = vmax.f32 %v4826, 0.0
        %v4835 = vmax.f32 %v4827, 0.0
        %v4836 = vmax.f32 %v4828, 0.0
        %v4837 = vmax.f32 %v4829, 0.0
        %v4838 = vmax.f32 %v4830, 0.0
        %v4839 = vmax.f32 %v4831, 0.0
        %s4840 = sadd.s32 0, 56
        %v4841 = vmul.f32 %v4832, %v4376
        %v4842 = vmul.f32 %v4833, %v4377
        %v4843 = vmul.f32 %v4834, %v4378
        %v4844 = vmul.f32 %v4835, %v4379
        %v4845 = vmul.f32 %v4836, %v4380
        %v4846 = vmul.f32 %v4837, %v4381
        %v4847 = vmul.f32 %v4838, %v4382
        %v4848 = vmul.f32 %v4839, %v4383
        %s4849 = sshra.s32 %s4840, 3
        %s4850 = sand.u32 %s4840, 7
        %s4851 = smul.u32 %s4849, 8
        %s4852 = smul.addr %s4851, 8
        %s4853 = scalar_lea.vmem [#allocation4], %s4852
        %4854 = vst [vmem:[%s4853] sm:$0xff] %v4841
        %4855 = vst [vmem:[%s4853 + $0x8] sm:$0xff] %v4842
        %4856 = vst [vmem:[%s4853 + $0x10] sm:$0xff] %v4843
        %4857 = vst [vmem:[%s4853 + $0x18] sm:$0xff] %v4844
        %4858 = vst [vmem:[%s4853 + $0x20] sm:$0xff] %v4845
        %4859 = vst [vmem:[%s4853 + $0x28] sm:$0xff] %v4846
        %4860 = vst [vmem:[%s4853 + $0x30] sm:$0xff] %v4847
        %4861 = vst [vmem:[%s4853 + $0x38] sm:$0xff] %v4848
        %v4862 = vmul.f32 %v920, %v967
        %v4863 = vmul.f32 %v922, %v968
        %v4864 = vmul.f32 %v924, %v969
        %v4865 = vmul.f32 %v926, %v970
        %v4866 = vmul.f32 %v928, %v971
        %v4867 = vmul.f32 %v930, %v972
        %v4868 = vmul.f32 %v932, %v973
        %v4869 = vmul.f32 %v934, %v974
        %4870 = vset.pattern.permute.xlu0 72
        %4871 = vperm.xlu0 %4870, %v319
        %v4872 = vpop.permute.xlu0 %4871
        %v4874 = vmul.f32 %v4872, %v307
        %v4875 = vmul.f32 %v4872, %v308
        %v4876 = vmul.f32 %v4872, %v309
        %v4877 = vmul.f32 %v4872, %v310
        %v4878 = vmul.f32 %v4872, %v311
        %v4879 = vmul.f32 %v4872, %v312
        %v4880 = vmul.f32 %v4872, %v313
        %v4881 = vmul.f32 %v4872, %v314
        %4882 = vset.pattern.permute.xlu0 73
        %4883 = vperm.xlu0 %4882, %v319
        %v4884 = vpop.permute.xlu0 %4883
        %v4886 = vmul.f32 %v4884, %v307
        %v4887 = vmul.f32 %v4884, %v308
        %v4888 = vmul.f32 %v4884, %v309
        %v4889 = vmul.f32 %v4884, %v310
        %v4890 = vmul.f32 %v4884, %v311
        %v4891 = vmul.f32 %v4884, %v312
        %v4892 = vmul.f32 %v4884, %v313
        %v4893 = vmul.f32 %v4884, %v314
        %v4894 = vmul.f32 %v4884, %v315
        %4904 = vrot.lane.b32.xlu0 %v4886, 127
        %v4905 = vpop.permute.xlu0 %4904
        %4906 = vrot.lane.b32.xlu0 %v4887, 127
        %v4907 = vpop.permute.xlu0 %4906
        %4908 = vrot.lane.b32.xlu0 %v4888, 127
        %v4909 = vpop.permute.xlu0 %4908
        %4910 = vrot.lane.b32.xlu0 %v4889, 127
        %v4911 = vpop.permute.xlu0 %4910
        %4912 = vrot.lane.b32.xlu0 %v4890, 127
        %v4913 = vpop.permute.xlu0 %4912
        %4914 = vrot.lane.b32.xlu0 %v4891, 127
        %v4915 = vpop.permute.xlu0 %4914
        %4916 = vrot.lane.b32.xlu0 %v4892, 127
        %v4917 = vpop.permute.xlu0 %4916
        %4918 = vrot.lane.b32.xlu0 %v4893, 127
        %v4919 = vpop.permute.xlu0 %4918
        %4920 = vrot.lane.b32.xlu0 %v4894, 127
        %v4921 = vpop.permute.xlu0 %4920
        %v4922 = vsel %vm348, %v4905, %v4907
        %v4923 = vsel %vm348, %v4907, %v4909
        %v4924 = vsel %vm348, %v4909, %v4911
        %v4925 = vsel %vm348, %v4911, %v4913
        %v4926 = vsel %vm348, %v4913, %v4915
        %v4927 = vsel %vm348, %v4915, %v4917
        %v4928 = vsel %vm348, %v4917, %v4919
        %v4929 = vsel %vm348, %v4919, %v4921
        %v4938 = vadd.f32 %v4874, %v4922
        %v4939 = vadd.f32 %v4875, %v4923
        %v4940 = vadd.f32 %v4876, %v4924
        %v4941 = vadd.f32 %v4877, %v4925
        %v4942 = vadd.f32 %v4878, %v4926
        %v4943 = vadd.f32 %v4879, %v4927
        %v4944 = vadd.f32 %v4880, %v4928
        %v4945 = vadd.f32 %v4881, %v4929
        %4946 = vset.pattern.permute.xlu0 74
        %4947 = vperm.xlu0 %4946, %v319
        %v4948 = vpop.permute.xlu0 %4947
        %v4950 = vmul.f32 %v4948, %v307
        %v4951 = vmul.f32 %v4948, %v308
        %v4952 = vmul.f32 %v4948, %v309
        %v4953 = vmul.f32 %v4948, %v310
        %v4954 = vmul.f32 %v4948, %v311
        %v4955 = vmul.f32 %v4948, %v312
        %v4956 = vmul.f32 %v4948, %v313
        %v4957 = vmul.f32 %v4948, %v314
        %v4958 = vmul.f32 %v4948, %v315
        %4968 = vrot.lane.b32.xlu0 %v4950, 126
        %v4969 = vpop.permute.xlu0 %4968
        %4970 = vrot.lane.b32.xlu0 %v4951, 126
        %v4971 = vpop.permute.xlu0 %4970
        %4972 = vrot.lane.b32.xlu0 %v4952, 126
        %v4973 = vpop.permute.xlu0 %4972
        %4974 = vrot.lane.b32.xlu0 %v4953, 126
        %v4975 = vpop.permute.xlu0 %4974
        %4976 = vrot.lane.b32.xlu0 %v4954, 126
        %v4977 = vpop.permute.xlu0 %4976
        %4978 = vrot.lane.b32.xlu0 %v4955, 126
        %v4979 = vpop.permute.xlu0 %4978
        %4980 = vrot.lane.b32.xlu0 %v4956, 126
        %v4981 = vpop.permute.xlu0 %4980
        %4982 = vrot.lane.b32.xlu0 %v4957, 126
        %v4983 = vpop.permute.xlu0 %4982
        %4984 = vrot.lane.b32.xlu0 %v4958, 126
        %v4985 = vpop.permute.xlu0 %4984
        %v4986 = vsel %vm391, %v4969, %v4971
        %v4987 = vsel %vm391, %v4971, %v4973
        %v4988 = vsel %vm391, %v4973, %v4975
        %v4989 = vsel %vm391, %v4975, %v4977
        %v4990 = vsel %vm391, %v4977, %v4979
        %v4991 = vsel %vm391, %v4979, %v4981
        %v4992 = vsel %vm391, %v4981, %v4983
        %v4993 = vsel %vm391, %v4983, %v4985
        %v5002 = vadd.f32 %v4938, %v4986
        %v5003 = vadd.f32 %v4939, %v4987
        %v5004 = vadd.f32 %v4940, %v4988
        %v5005 = vadd.f32 %v4941, %v4989
        %v5006 = vadd.f32 %v4942, %v4990
        %v5007 = vadd.f32 %v4943, %v4991
        %v5008 = vadd.f32 %v4944, %v4992
        %v5009 = vadd.f32 %v4945, %v4993
        %5010 = vset.pattern.permute.xlu0 75
        %5011 = vperm.xlu0 %5010, %v319
        %v5012 = vpop.permute.xlu0 %5011
        %v5014 = vmul.f32 %v5012, %v308
        %v5015 = vmul.f32 %v5012, %v309
        %v5016 = vmul.f32 %v5012, %v310
        %v5017 = vmul.f32 %v5012, %v311
        %v5018 = vmul.f32 %v5012, %v312
        %v5019 = vmul.f32 %v5012, %v313
        %v5020 = vmul.f32 %v5012, %v314
        %v5021 = vmul.f32 %v5012, %v315
        %v5022 = vadd.f32 %v5002, %v5014
        %v5023 = vadd.f32 %v5003, %v5015
        %v5024 = vadd.f32 %v5004, %v5016
        %v5025 = vadd.f32 %v5005, %v5017
        %v5026 = vadd.f32 %v5006, %v5018
        %v5027 = vadd.f32 %v5007, %v5019
        %v5028 = vadd.f32 %v5008, %v5020
        %v5029 = vadd.f32 %v5009, %v5021
        %5030 = vset.pattern.permute.xlu0 76
        %5031 = vperm.xlu0 %5030, %v319
        %v5032 = vpop.permute.xlu0 %5031
        %v5034 = vmul.f32 %v5032, %v308
        %v5035 = vmul.f32 %v5032, %v309
        %v5036 = vmul.f32 %v5032, %v310
        %v5037 = vmul.f32 %v5032, %v311
        %v5038 = vmul.f32 %v5032, %v312
        %v5039 = vmul.f32 %v5032, %v313
        %v5040 = vmul.f32 %v5032, %v314
        %v5041 = vmul.f32 %v5032, %v315
        %v5042 = vmul.f32 %v5032, %v316
        %5052 = vrot.lane.b32.xlu0 %v5034, 127
        %v5053 = vpop.permute.xlu0 %5052
        %5054 = vrot.lane.b32.xlu0 %v5035, 127
        %v5055 = vpop.permute.xlu0 %5054
        %5056 = vrot.lane.b32.xlu0 %v5036, 127
        %v5057 = vpop.permute.xlu0 %5056
        %5058 = vrot.lane.b32.xlu0 %v5037, 127
        %v5059 = vpop.permute.xlu0 %5058
        %5060 = vrot.lane.b32.xlu0 %v5038, 127
        %v5061 = vpop.permute.xlu0 %5060
        %5062 = vrot.lane.b32.xlu0 %v5039, 127
        %v5063 = vpop.permute.xlu0 %5062
        %5064 = vrot.lane.b32.xlu0 %v5040, 127
        %v5065 = vpop.permute.xlu0 %5064
        %5066 = vrot.lane.b32.xlu0 %v5041, 127
        %v5067 = vpop.permute.xlu0 %5066
        %5068 = vrot.lane.b32.xlu0 %v5042, 127
        %v5069 = vpop.permute.xlu0 %5068
        %v5070 = vsel %vm348, %v5053, %v5055
        %v5071 = vsel %vm348, %v5055, %v5057
        %v5072 = vsel %vm348, %v5057, %v5059
        %v5073 = vsel %vm348, %v5059, %v5061
        %v5074 = vsel %vm348, %v5061, %v5063
        %v5075 = vsel %vm348, %v5063, %v5065
        %v5076 = vsel %vm348, %v5065, %v5067
        %v5077 = vsel %vm348, %v5067, %v5069
        %v5086 = vadd.f32 %v5022, %v5070
        %v5087 = vadd.f32 %v5023, %v5071
        %v5088 = vadd.f32 %v5024, %v5072
        %v5089 = vadd.f32 %v5025, %v5073
        %v5090 = vadd.f32 %v5026, %v5074
        %v5091 = vadd.f32 %v5027, %v5075
        %v5092 = vadd.f32 %v5028, %v5076
        %v5093 = vadd.f32 %v5029, %v5077
        %5094 = vset.pattern.permute.xlu0 77
        %5095 = vperm.xlu0 %5094, %v319
        %v5096 = vpop.permute.xlu0 %5095
        %v5098 = vmul.f32 %v5096, %v308
        %v5099 = vmul.f32 %v5096, %v309
        %v5100 = vmul.f32 %v5096, %v310
        %v5101 = vmul.f32 %v5096, %v311
        %v5102 = vmul.f32 %v5096, %v312
        %v5103 = vmul.f32 %v5096, %v313
        %v5104 = vmul.f32 %v5096, %v314
        %v5105 = vmul.f32 %v5096, %v315
        %v5106 = vmul.f32 %v5096, %v316
        %5116 = vrot.lane.b32.xlu0 %v5098, 126
        %v5117 = vpop.permute.xlu0 %5116
        %5118 = vrot.lane.b32.xlu0 %v5099, 126
        %v5119 = vpop.permute.xlu0 %5118
        %5120 = vrot.lane.b32.xlu0 %v5100, 126
        %v5121 = vpop.permute.xlu0 %5120
        %5122 = vrot.lane.b32.xlu0 %v5101, 126
        %v5123 = vpop.permute.xlu0 %5122
        %5124 = vrot.lane.b32.xlu0 %v5102, 126
        %v5125 = vpop.permute.xlu0 %5124
        %5126 = vrot.lane.b32.xlu0 %v5103, 126
        %v5127 = vpop.permute.xlu0 %5126
        %5128 = vrot.lane.b32.xlu0 %v5104, 126
        %v5129 = vpop.permute.xlu0 %5128
        %5130 = vrot.lane.b32.xlu0 %v5105, 126
        %v5131 = vpop.permute.xlu0 %5130
        %5132 = vrot.lane.b32.xlu0 %v5106, 126
        %v5133 = vpop.permute.xlu0 %5132
        %v5134 = vsel %vm391, %v5117, %v5119
        %v5135 = vsel %vm391, %v5119, %v5121
        %v5136 = vsel %vm391, %v5121, %v5123
        %v5137 = vsel %vm391, %v5123, %v5125
        %v5138 = vsel %vm391, %v5125, %v5127
        %v5139 = vsel %vm391, %v5127, %v5129
        %v5140 = vsel %vm391, %v5129, %v5131
        %v5141 = vsel %vm391, %v5131, %v5133
        %v5150 = vadd.f32 %v5086, %v5134
        %v5151 = vadd.f32 %v5087, %v5135
        %v5152 = vadd.f32 %v5088, %v5136
        %v5153 = vadd.f32 %v5089, %v5137
        %v5154 = vadd.f32 %v5090, %v5138
        %v5155 = vadd.f32 %v5091, %v5139
        %v5156 = vadd.f32 %v5092, %v5140
        %v5157 = vadd.f32 %v5093, %v5141
        %5158 = vset.pattern.permute.xlu0 78
        %5159 = vperm.xlu0 %5158, %v319
        %v5160 = vpop.permute.xlu0 %5159
        %v5162 = vmul.f32 %v5160, %v309
        %v5163 = vmul.f32 %v5160, %v310
        %v5164 = vmul.f32 %v5160, %v311
        %v5165 = vmul.f32 %v5160, %v312
        %v5166 = vmul.f32 %v5160, %v313
        %v5167 = vmul.f32 %v5160, %v314
        %v5168 = vmul.f32 %v5160, %v315
        %v5169 = vmul.f32 %v5160, %v316
        %v5170 = vadd.f32 %v5150, %v5162
        %v5171 = vadd.f32 %v5151, %v5163
        %v5172 = vadd.f32 %v5152, %v5164
        %v5173 = vadd.f32 %v5153, %v5165
        %v5174 = vadd.f32 %v5154, %v5166
        %v5175 = vadd.f32 %v5155, %v5167
        %v5176 = vadd.f32 %v5156, %v5168
        %v5177 = vadd.f32 %v5157, %v5169
        %5178 = vset.pattern.permute.xlu0 79
        %5179 = vperm.xlu0 %5178, %v319
        %v5180 = vpop.permute.xlu0 %5179
        %v5182 = vmul.f32 %v5180, %v309
        %v5183 = vmul.f32 %v5180, %v310
        %v5184 = vmul.f32 %v5180, %v311
        %v5185 = vmul.f32 %v5180, %v312
        %v5186 = vmul.f32 %v5180, %v313
        %v5187 = vmul.f32 %v5180, %v314
        %v5188 = vmul.f32 %v5180, %v315
        %v5189 = vmul.f32 %v5180, %v316
        %v5190 = vmul.f32 %v5180, %v317
        %5200 = vrot.lane.b32.xlu0 %v5182, 127
        %v5201 = vpop.permute.xlu0 %5200
        %5202 = vrot.lane.b32.xlu0 %v5183, 127
        %v5203 = vpop.permute.xlu0 %5202
        %5204 = vrot.lane.b32.xlu0 %v5184, 127
        %v5205 = vpop.permute.xlu0 %5204
        %5206 = vrot.lane.b32.xlu0 %v5185, 127
        %v5207 = vpop.permute.xlu0 %5206
        %5208 = vrot.lane.b32.xlu0 %v5186, 127
        %v5209 = vpop.permute.xlu0 %5208
        %5210 = vrot.lane.b32.xlu0 %v5187, 127
        %v5211 = vpop.permute.xlu0 %5210
        %5212 = vrot.lane.b32.xlu0 %v5188, 127
        %v5213 = vpop.permute.xlu0 %5212
        %5214 = vrot.lane.b32.xlu0 %v5189, 127
        %v5215 = vpop.permute.xlu0 %5214
        %5216 = vrot.lane.b32.xlu0 %v5190, 127
        %v5217 = vpop.permute.xlu0 %5216
        %v5218 = vsel %vm348, %v5201, %v5203
        %v5219 = vsel %vm348, %v5203, %v5205
        %v5220 = vsel %vm348, %v5205, %v5207
        %v5221 = vsel %vm348, %v5207, %v5209
        %v5222 = vsel %vm348, %v5209, %v5211
        %v5223 = vsel %vm348, %v5211, %v5213
        %v5224 = vsel %vm348, %v5213, %v5215
        %v5225 = vsel %vm348, %v5215, %v5217
        %v5234 = vadd.f32 %v5170, %v5218
        %v5235 = vadd.f32 %v5171, %v5219
        %v5236 = vadd.f32 %v5172, %v5220
        %v5237 = vadd.f32 %v5173, %v5221
        %v5238 = vadd.f32 %v5174, %v5222
        %v5239 = vadd.f32 %v5175, %v5223
        %v5240 = vadd.f32 %v5176, %v5224
        %v5241 = vadd.f32 %v5177, %v5225
        %5242 = vset.pattern.permute.xlu0 80
        %5243 = vperm.xlu0 %5242, %v319
        %v5244 = vpop.permute.xlu0 %5243
        %v5246 = vmul.f32 %v5244, %v309
        %v5247 = vmul.f32 %v5244, %v310
        %v5248 = vmul.f32 %v5244, %v311
        %v5249 = vmul.f32 %v5244, %v312
        %v5250 = vmul.f32 %v5244, %v313
        %v5251 = vmul.f32 %v5244, %v314
        %v5252 = vmul.f32 %v5244, %v315
        %v5253 = vmul.f32 %v5244, %v316
        %v5254 = vmul.f32 %v5244, %v317
        %5264 = vrot.lane.b32.xlu0 %v5246, 126
        %v5265 = vpop.permute.xlu0 %5264
        %5266 = vrot.lane.b32.xlu0 %v5247, 126
        %v5267 = vpop.permute.xlu0 %5266
        %5268 = vrot.lane.b32.xlu0 %v5248, 126
        %v5269 = vpop.permute.xlu0 %5268
        %5270 = vrot.lane.b32.xlu0 %v5249, 126
        %v5271 = vpop.permute.xlu0 %5270
        %5272 = vrot.lane.b32.xlu0 %v5250, 126
        %v5273 = vpop.permute.xlu0 %5272
        %5274 = vrot.lane.b32.xlu0 %v5251, 126
        %v5275 = vpop.permute.xlu0 %5274
        %5276 = vrot.lane.b32.xlu0 %v5252, 126
        %v5277 = vpop.permute.xlu0 %5276
        %5278 = vrot.lane.b32.xlu0 %v5253, 126
        %v5279 = vpop.permute.xlu0 %5278
        %5280 = vrot.lane.b32.xlu0 %v5254, 126
        %v5281 = vpop.permute.xlu0 %5280
        %v5282 = vsel %vm391, %v5265, %v5267
        %v5283 = vsel %vm391, %v5267, %v5269
        %v5284 = vsel %vm391, %v5269, %v5271
        %v5285 = vsel %vm391, %v5271, %v5273
        %v5286 = vsel %vm391, %v5273, %v5275
        %v5287 = vsel %vm391, %v5275, %v5277
        %v5288 = vsel %vm391, %v5277, %v5279
        %v5289 = vsel %vm391, %v5279, %v5281
        %v5298 = vadd.f32 %v5234, %v5282
        %v5299 = vadd.f32 %v5235, %v5283
        %v5300 = vadd.f32 %v5236, %v5284
        %v5301 = vadd.f32 %v5237, %v5285
        %v5302 = vadd.f32 %v5238, %v5286
        %v5303 = vadd.f32 %v5239, %v5287
        %v5304 = vadd.f32 %v5240, %v5288
        %v5305 = vadd.f32 %v5241, %v5289
        %5306 = vset.pattern.permute.xlu0 8
        %5307 = vperm.xlu0 %5306, %v320
        %v5308 = vpop.permute.xlu0 %5307
        %v5310 = vadd.f32 %v5298, %v5308
        %v5311 = vadd.f32 %v5299, %v5308
        %v5312 = vadd.f32 %v5300, %v5308
        %v5313 = vadd.f32 %v5301, %v5308
        %v5314 = vadd.f32 %v5302, %v5308
        %v5315 = vadd.f32 %v5303, %v5308
        %v5316 = vadd.f32 %v5304, %v5308
        %v5317 = vadd.f32 %v5305, %v5308
        %v5318 = vmax.f32 %v5310, 0.0
        %v5319 = vmax.f32 %v5311, 0.0
        %v5320 = vmax.f32 %v5312, 0.0
        %v5321 = vmax.f32 %v5313, 0.0
        %v5322 = vmax.f32 %v5314, 0.0
        %v5323 = vmax.f32 %v5315, 0.0
        %v5324 = vmax.f32 %v5316, 0.0
        %v5325 = vmax.f32 %v5317, 0.0
        %s5326 = sadd.s32 0, 64
        %v5327 = vmul.f32 %v5318, %v4862
        %v5328 = vmul.f32 %v5319, %v4863
        %v5329 = vmul.f32 %v5320, %v4864
        %v5330 = vmul.f32 %v5321, %v4865
        %v5331 = vmul.f32 %v5322, %v4866
        %v5332 = vmul.f32 %v5323, %v4867
        %v5333 = vmul.f32 %v5324, %v4868
        %v5334 = vmul.f32 %v5325, %v4869
        %s5335 = sshra.s32 %s5326, 3
        %s5336 = sand.u32 %s5326, 7
        %s5337 = smul.u32 %s5335, 8
        %s5338 = smul.addr %s5337, 8
        %s5339 = scalar_lea.vmem [#allocation4], %s5338
        %5340 = vst [vmem:[%s5339] sm:$0xff] %v5327
        %5341 = vst [vmem:[%s5339 + $0x8] sm:$0xff] %v5328
        %5342 = vst [vmem:[%s5339 + $0x10] sm:$0xff] %v5329
        %5343 = vst [vmem:[%s5339 + $0x18] sm:$0xff] %v5330
        %5344 = vst [vmem:[%s5339 + $0x20] sm:$0xff] %v5331
        %5345 = vst [vmem:[%s5339 + $0x28] sm:$0xff] %v5332
        %5346 = vst [vmem:[%s5339 + $0x30] sm:$0xff] %v5333
        %5347 = vst [vmem:[%s5339 + $0x38] sm:$0xff] %v5334
        %v5348 = vld [vmem:[#allocation11] sm:$0xff]
        %v5349 = vld [vmem:[#allocation4] sm:$0xff]
        %v5350 = vld [vmem:[#allocation4 + $0x8] sm:$0xff]
        %v5351 = vld [vmem:[#allocation4 + $0x10] sm:$0xff]
        %v5352 = vld [vmem:[#allocation4 + $0x18] sm:$0xff]
        %v5353 = vld [vmem:[#allocation4 + $0x20] sm:$0xff]
        %v5354 = vld [vmem:[#allocation4 + $0x28] sm:$0xff]
        %v5355 = vld [vmem:[#allocation4 + $0x30] sm:$0xff]
        %v5356 = vld [vmem:[#allocation4 + $0x38] sm:$0xff]
        %v5357 = vld [vmem:[#allocation4 + $0x40] sm:$0xff]
        %v5358 = vld [vmem:[#allocation4 + $0x48] sm:$0xff]
        %v5359 = vld [vmem:[#allocation4 + $0x50] sm:$0xff]
        %v5360 = vld [vmem:[#allocation4 + $0x58] sm:$0xff]
        %v5361 = vld [vmem:[#allocation4 + $0x60] sm:$0xff]
        %v5362 = vld [vmem:[#allocation4 + $0x68] sm:$0xff]
        %v5363 = vld [vmem:[#allocation4 + $0x70] sm:$0xff]
        %v5364 = vld [vmem:[#allocation4 + $0x78] sm:$0xff]
        %v5365 = vld [vmem:[#allocation4 + $0x80] sm:$0xff]
        %v5366 = vld [vmem:[#allocation4 + $0x88] sm:$0xff]
        %v5367 = vld [vmem:[#allocation4 + $0x90] sm:$0xff]
        %v5368 = vld [vmem:[#allocation4 + $0x98] sm:$0xff]
        %v5369 = vld [vmem:[#allocation4 + $0xa0] sm:$0xff]
        %v5370 = vld [vmem:[#allocation4 + $0xa8] sm:$0xff]
        %v5371 = vld [vmem:[#allocation4 + $0xb0] sm:$0xff]
        %v5372 = vld [vmem:[#allocation4 + $0xb8] sm:$0xff]
        %v5373 = vld [vmem:[#allocation4 + $0xc0] sm:$0xff]
        %v5374 = vld [vmem:[#allocation4 + $0xc8] sm:$0xff]
        %v5375 = vld [vmem:[#allocation4 + $0xd0] sm:$0xff]
        %v5376 = vld [vmem:[#allocation4 + $0xd8] sm:$0xff]
        %v5377 = vld [vmem:[#allocation4 + $0xe0] sm:$0xff]
        %v5378 = vld [vmem:[#allocation4 + $0xe8] sm:$0xff]
        %v5379 = vld [vmem:[#allocation4 + $0xf0] sm:$0xff]
        %v5380 = vld [vmem:[#allocation4 + $0xf8] sm:$0xff]
        %v5381 = vld [vmem:[#allocation4 + $0x100] sm:$0xff]
        %v5382 = vld [vmem:[#allocation4 + $0x108] sm:$0xff]
        %v5383 = vld [vmem:[#allocation4 + $0x110] sm:$0xff]
        %v5384 = vld [vmem:[#allocation4 + $0x118] sm:$0xff]
        %v5385 = vld [vmem:[#allocation4 + $0x120] sm:$0xff]
        %v5386 = vld [vmem:[#allocation4 + $0x128] sm:$0xff]
        %v5387 = vld [vmem:[#allocation4 + $0x130] sm:$0xff]
        %v5388 = vld [vmem:[#allocation4 + $0x138] sm:$0xff]
        %v5389 = vld [vmem:[#allocation4 + $0x140] sm:$0xff]
        %v5390 = vld [vmem:[#allocation4 + $0x148] sm:$0xff]
        %v5391 = vld [vmem:[#allocation4 + $0x150] sm:$0xff]
        %v5392 = vld [vmem:[#allocation4 + $0x158] sm:$0xff]
        %v5393 = vld [vmem:[#allocation4 + $0x160] sm:$0xff]
        %v5394 = vld [vmem:[#allocation4 + $0x168] sm:$0xff]
        %v5395 = vld [vmem:[#allocation4 + $0x170] sm:$0xff]
        %v5396 = vld [vmem:[#allocation4 + $0x178] sm:$0xff]
        %v5397 = vld [vmem:[#allocation4 + $0x180] sm:$0xff]
        %v5398 = vld [vmem:[#allocation4 + $0x188] sm:$0xff]
        %v5399 = vld [vmem:[#allocation4 + $0x190] sm:$0xff]
        %v5400 = vld [vmem:[#allocation4 + $0x198] sm:$0xff]
        %v5401 = vld [vmem:[#allocation4 + $0x1a0] sm:$0xff]
        %v5402 = vld [vmem:[#allocation4 + $0x1a8] sm:$0xff]
        %v5403 = vld [vmem:[#allocation4 + $0x1b0] sm:$0xff]
        %v5404 = vld [vmem:[#allocation4 + $0x1b8] sm:$0xff]
        %v5405 = vld [vmem:[#allocation4 + $0x1c0] sm:$0xff]
        %v5406 = vld [vmem:[#allocation4 + $0x1c8] sm:$0xff]
        %v5407 = vld [vmem:[#allocation4 + $0x1d0] sm:$0xff]
        %v5408 = vld [vmem:[#allocation4 + $0x1d8] sm:$0xff]
        %v5409 = vld [vmem:[#allocation4 + $0x1e0] sm:$0xff]
        %v5410 = vld [vmem:[#allocation4 + $0x1e8] sm:$0xff]
        %v5411 = vld [vmem:[#allocation4 + $0x1f0] sm:$0xff]
        %v5412 = vld [vmem:[#allocation4 + $0x1f8] sm:$0xff]
        %v5413 = vld [vmem:[#allocation4 + $0x200] sm:$0xff]
        %v5414 = vld [vmem:[#allocation4 + $0x208] sm:$0xff]
        %v5415 = vld [vmem:[#allocation4 + $0x210] sm:$0xff]
        %v5416 = vld [vmem:[#allocation4 + $0x218] sm:$0xff]
        %v5417 = vld [vmem:[#allocation4 + $0x220] sm:$0xff]
        %v5418 = vld [vmem:[#allocation4 + $0x228] sm:$0xff]
        %v5419 = vld [vmem:[#allocation4 + $0x230] sm:$0xff]
        %v5420 = vld [vmem:[#allocation4 + $0x238] sm:$0xff]
        %v5421 = vld [vmem:[#allocation13] sm:$0xff]
        %5423 = vset.pattern.permute.xlu0 0
        %5424 = vperm.xlu0 %5423, %v5421
        %v5425 = vpop.permute.xlu0 %5424
        %vm5427 = vcmask 588800
        %v5429 = vsel %vm5427, %v5348, 0
        %5431 = vmatprep.subr.mxu0 %v5350
        %5432 = vmatpush1.msra.mxu0 %v5349
        %5433 = vmatprep.subr.mxu0 %v5358
        %5434 = vmatpush1.msra.mxu0 %v5357
        %5435 = vmatprep.subr.mxu0 %v5366
        %5436 = vmatpush1.msra.mxu0 %v5365
        %5437 = vmatprep.subr.mxu0 %v5374
        %5438 = vmatpush1.msra.mxu0 %v5373
        %5439 = vmatprep.subr.mxu0 %v5382
        %5440 = vmatpush1.msra.mxu0 %v5381
        %5441 = vmatprep.subr.mxu0 %v5390
        %5442 = vmatpush1.msra.mxu0 %v5389
        %5443 = vmatprep.subr.mxu0 %v5398
        %5444 = vmatpush1.msra.mxu0 %v5397
        %5445 = vmatprep.subr.mxu0 %v5406
        %5446 = vmatpush1.msra.mxu0 %v5405
        %5447 = vmatprep.subr.mxu0 %v5414
        %5448 = vmatpush1.msra.mxu0 %v5413
        %5449 = vmatprep.subr.mxu0 0.0
        %5450 = vmatpush1.msra.mxu0 0.0
        %5451 = vmatprep.subr.mxu0 0.0
        %5452 = vmatpush1.msra.mxu0 0.0
        %5453 = vmatprep.subr.mxu0 0.0
        %5454 = vmatpush1.msra.mxu0 0.0
        %5455 = vmatprep.subr.mxu0 0.0
        %5456 = vmatpush1.msra.mxu0 0.0
        %5457 = vmatprep.subr.mxu0 0.0
        %5458 = vmatpush1.msra.mxu0 0.0
        %5459 = vmatprep.subr.mxu0 0.0
        %5460 = vmatpush1.msra.mxu0 0.0
        %5461 = vmatprep.subr.mxu0 0.0
        %5462 = vmatpush1.msra.mxu0 0.0
        %5463 = vmatprep.subr.mxu0 0.0
        %5464 = vmatpush1.msra.mxu0 0.0
        %5465 = vmatprep.subr.mxu0 0.0
        %5466 = vmatpush1.msra.mxu0 0.0
        %5467 = vmatprep.subr.mxu0 0.0
        %5468 = vmatpush1.msra.mxu0 0.0
        %5469 = vmatprep.subr.mxu0 0.0
        %5470 = vmatpush1.msra.mxu0 0.0
        %5471 = vmatprep.subr.mxu0 0.0
        %5472 = vmatpush1.msra.mxu0 0.0
        %5473 = vmatprep.subr.mxu0 0.0
        %5474 = vmatpush1.msra.mxu0 0.0
        %5475 = vmatprep.subr.mxu0 0.0
        %5476 = vmatpush1.msra.mxu0 0.0
        %5477 = vmatprep.subr.mxu0 0.0
        %5478 = vmatpush1.msra.mxu0 0.0
        %5479 = vmatprep.subr.mxu0 0.0
        %5480 = vmatpush1.msra.mxu0 0.0
        %5481 = vmatprep.subr.mxu0 0.0
        %5482 = vmatpush1.msra.mxu0 0.0
        %5483 = vmatprep.subr.mxu0 0.0
        %5484 = vmatpush1.msra.mxu0 0.0
        %5485 = vmatprep.subr.mxu0 0.0
        %5486 = vmatpush1.msra.mxu0 0.0
        %5487 = vmatprep.subr.mxu0 0.0
        %5488 = vmatpush1.msra.mxu0 0.0
        %5489 = vmatprep.subr.mxu0 0.0
        %5490 = vmatpush1.msra.mxu0 0.0
        %5491 = vmatprep.subr.mxu0 0.0
        %5492 = vmatpush1.msra.mxu0 0.0
        %5493 = vmatprep.subr.mxu0 0.0
        %5494 = vmatpush1.msra.mxu0 0.0
        %5495 = vmatprep.mubr.f32.mxu0 0.0
        %5496 = vmatmul.mubr.f32.gmra.mrb[0].mxu0 %v5429
        %v5497 = vpop.f32.mrb[0].mxu0
        %v5498 = vadd.f32 %v5425, %v5497
        %v5499 = vpop.f32.mrb[0].mxu0
        %v5500 = vadd.f32 %v5425, %v5499
        %5501 = vdwg.mxu0
        %5502 = vmatprep.subr.mxu0 %v5352
        %5503 = vmatpush1.msra.mxu0 %v5351
        %5504 = vmatprep.subr.mxu0 %v5360
        %5505 = vmatpush1.msra.mxu0 %v5359
        %5506 = vmatprep.subr.mxu0 %v5368
        %5507 = vmatpush1.msra.mxu0 %v5367
        %5508 = vmatprep.subr.mxu0 %v5376
        %5509 = vmatpush1.msra.mxu0 %v5375
        %5510 = vmatprep.subr.mxu0 %v5384
        %5511 = vmatpush1.msra.mxu0 %v5383
        %5512 = vmatprep.subr.mxu0 %v5392
        %5513 = vmatpush1.msra.mxu0 %v5391
        %5514 = vmatprep.subr.mxu0 %v5400
        %5515 = vmatpush1.msra.mxu0 %v5399
        %5516 = vmatprep.subr.mxu0 %v5408
        %5517 = vmatpush1.msra.mxu0 %v5407
        %5518 = vmatprep.subr.mxu0 %v5416
        %5519 = vmatpush1.msra.mxu0 %v5415
        %5520 = vmatprep.subr.mxu0 0.0
        %5521 = vmatpush1.msra.mxu0 0.0
        %5522 = vmatprep.subr.mxu0 0.0
        %5523 = vmatpush1.msra.mxu0 0.0
        %5524 = vmatprep.subr.mxu0 0.0
        %5525 = vmatpush1.msra.mxu0 0.0
        %5526 = vmatprep.subr.mxu0 0.0
        %5527 = vmatpush1.msra.mxu0 0.0
        %5528 = vmatprep.subr.mxu0 0.0
        %5529 = vmatpush1.msra.mxu0 0.0
        %5530 = vmatprep.subr.mxu0 0.0
        %5531 = vmatpush1.msra.mxu0 0.0
        %5532 = vmatprep.subr.mxu0 0.0
        %5533 = vmatpush1.msra.mxu0 0.0
        %5534 = vmatprep.subr.mxu0 0.0
        %5535 = vmatpush1.msra.mxu0 0.0
        %5536 = vmatprep.subr.mxu0 0.0
        %5537 = vmatpush1.msra.mxu0 0.0
        %5538 = vmatprep.subr.mxu0 0.0
        %5539 = vmatpush1.msra.mxu0 0.0
        %5540 = vmatprep.subr.mxu0 0.0
        %5541 = vmatpush1.msra.mxu0 0.0
        %5542 = vmatprep.subr.mxu0 0.0
        %5543 = vmatpush1.msra.mxu0 0.0
        %5544 = vmatprep.subr.mxu0 0.0
        %5545 = vmatpush1.msra.mxu0 0.0
        %5546 = vmatprep.subr.mxu0 0.0
        %5547 = vmatpush1.msra.mxu0 0.0
        %5548 = vmatprep.subr.mxu0 0.0
        %5549 = vmatpush1.msra.mxu0 0.0
        %5550 = vmatprep.subr.mxu0 0.0
        %5551 = vmatpush1.msra.mxu0 0.0
        %5552 = vmatprep.subr.mxu0 0.0
        %5553 = vmatpush1.msra.mxu0 0.0
        %5554 = vmatprep.subr.mxu0 0.0
        %5555 = vmatpush1.msra.mxu0 0.0
        %5556 = vmatprep.subr.mxu0 0.0
        %5557 = vmatpush1.msra.mxu0 0.0
        %5558 = vmatprep.subr.mxu0 0.0
        %5559 = vmatpush1.msra.mxu0 0.0
        %5560 = vmatprep.subr.mxu0 0.0
        %5561 = vmatpush1.msra.mxu0 0.0
        %5562 = vmatprep.subr.mxu0 0.0
        %5563 = vmatpush1.msra.mxu0 0.0
        %5564 = vmatprep.subr.mxu0 0.0
        %5565 = vmatpush1.msra.mxu0 0.0
        %5566 = vmatprep.mubr.f32.mxu0 0.0
        %5567 = vmatmul.mubr.f32.gmra.mrb[0].mxu0 %v5429
        %v5568 = vpop.f32.mrb[0].mxu0
        %v5569 = vadd.f32 %v5425, %v5568
        %v5570 = vpop.f32.mrb[0].mxu0
        %v5571 = vadd.f32 %v5425, %v5570
        %5572 = vdwg.mxu0
        %5573 = vmatprep.subr.mxu0 %v5354
        %5574 = vmatpush1.msra.mxu0 %v5353
        %5575 = vmatprep.subr.mxu0 %v5362
        %5576 = vmatpush1.msra.mxu0 %v5361
        %5577 = vmatprep.subr.mxu0 %v5370
        %5578 = vmatpush1.msra.mxu0 %v5369
        %5579 = vmatprep.subr.mxu0 %v5378
        %5580 = vmatpush1.msra.mxu0 %v5377
        %5581 = vmatprep.subr.mxu0 %v5386
        %5582 = vmatpush1.msra.mxu0 %v5385
        %5583 = vmatprep.subr.mxu0 %v5394
        %5584 = vmatpush1.msra.mxu0 %v5393
        %5585 = vmatprep.subr.mxu0 %v5402
        %5586 = vmatpush1.msra.mxu0 %v5401
        %5587 = vmatprep.subr.mxu0 %v5410
        %5588 = vmatpush1.msra.mxu0 %v5409
        %5589 = vmatprep.subr.mxu0 %v5418
        %5590 = vmatpush1.msra.mxu0 %v5417
        %5591 = vmatprep.subr.mxu0 0.0
        %5592 = vmatpush1.msra.mxu0 0.0
        %5593 = vmatprep.subr.mxu0 0.0
        %5594 = vmatpush1.msra.mxu0 0.0
        %5595 = vmatprep.subr.mxu0 0.0
        %5596 = vmatpush1.msra.mxu0 0.0
        %5597 = vmatprep.subr.mxu0 0.0
        %5598 = vmatpush1.msra.mxu0 0.0
        %5599 = vmatprep.subr.mxu0 0.0
        %5600 = vmatpush1.msra.mxu0 0.0
        %5601 = vmatprep.subr.mxu0 0.0
        %5602 = vmatpush1.msra.mxu0 0.0
        %5603 = vmatprep.subr.mxu0 0.0
        %5604 = vmatpush1.msra.mxu0 0.0
        %5605 = vmatprep.subr.mxu0 0.0
        %5606 = vmatpush1.msra.mxu0 0.0
        %5607 = vmatprep.subr.mxu0 0.0
        %5608 = vmatpush1.msra.mxu0 0.0
        %5609 = vmatprep.subr.mxu0 0.0
        %5610 = vmatpush1.msra.mxu0 0.0
        %5611 = vmatprep.subr.mxu0 0.0
        %5612 = vmatpush1.msra.mxu0 0.0
        %5613 = vmatprep.subr.mxu0 0.0
        %5614 = vmatpush1.msra.mxu0 0.0
        %5615 = vmatprep.subr.mxu0 0.0
        %5616 = vmatpush1.msra.mxu0 0.0
        %5617 = vmatprep.subr.mxu0 0.0
        %5618 = vmatpush1.msra.mxu0 0.0
        %5619 = vmatprep.subr.mxu0 0.0
        %5620 = vmatpush1.msra.mxu0 0.0
        %5621 = vmatprep.subr.mxu0 0.0
        %5622 = vmatpush1.msra.mxu0 0.0
        %5623 = vmatprep.subr.mxu0 0.0
        %5624 = vmatpush1.msra.mxu0 0.0
        %5625 = vmatprep.subr.mxu0 0.0
        %5626 = vmatpush1.msra.mxu0 0.0
        %5627 = vmatprep.subr.mxu0 0.0
        %5628 = vmatpush1.msra.mxu0 0.0
        %5629 = vmatprep.subr.mxu0 0.0
        %5630 = vmatpush1.msra.mxu0 0.0
        %5631 = vmatprep.subr.mxu0 0.0
        %5632 = vmatpush1.msra.mxu0 0.0
        %5633 = vmatprep.subr.mxu0 0.0
        %5634 = vmatpush1.msra.mxu0 0.0
        %5635 = vmatprep.subr.mxu0 0.0
        %5636 = vmatpush1.msra.mxu0 0.0
        %5637 = vmatprep.mubr.f32.mxu0 0.0
        %5638 = vmatmul.mubr.f32.gmra.mrb[0].mxu0 %v5429
        %v5639 = vpop.f32.mrb[0].mxu0
        %v5640 = vadd.f32 %v5425, %v5639
        %v5641 = vpop.f32.mrb[0].mxu0
        %v5642 = vadd.f32 %v5425, %v5641
        %5643 = vdwg.mxu0
        %5644 = vmatprep.subr.mxu0 %v5356
        %5645 = vmatpush1.msra.mxu0 %v5355
        %5646 = vmatprep.subr.mxu0 %v5364
        %5647 = vmatpush1.msra.mxu0 %v5363
        %5648 = vmatprep.subr.mxu0 %v5372
        %5649 = vmatpush1.msra.mxu0 %v5371
        %5650 = vmatprep.subr.mxu0 %v5380
        %5651 = vmatpush1.msra.mxu0 %v5379
        %5652 = vmatprep.subr.mxu0 %v5388
        %5653 = vmatpush1.msra.mxu0 %v5387
        %5654 = vmatprep.subr.mxu0 %v5396
        %5655 = vmatpush1.msra.mxu0 %v5395
        %5656 = vmatprep.subr.mxu0 %v5404
        %5657 = vmatpush1.msra.mxu0 %v5403
        %5658 = vmatprep.subr.mxu0 %v5412
        %5659 = vmatpush1.msra.mxu0 %v5411
        %5660 = vmatprep.subr.mxu0 %v5420
        %5661 = vmatpush1.msra.mxu0 %v5419
        %5662 = vmatprep.subr.mxu0 0.0
        %5663 = vmatpush1.msra.mxu0 0.0
        %5664 = vmatprep.subr.mxu0 0.0
        %5665 = vmatpush1.msra.mxu0 0.0
        %5666 = vmatprep.subr.mxu0 0.0
        %5667 = vmatpush1.msra.mxu0 0.0
        %5668 = vmatprep.subr.mxu0 0.0
        %5669 = vmatpush1.msra.mxu0 0.0
        %5670 = vmatprep.subr.mxu0 0.0
        %5671 = vmatpush1.msra.mxu0 0.0
        %5672 = vmatprep.subr.mxu0 0.0
        %5673 = vmatpush1.msra.mxu0 0.0
        %5674 = vmatprep.subr.mxu0 0.0
        %5675 = vmatpush1.msra.mxu0 0.0
        %5676 = vmatprep.subr.mxu0 0.0
        %5677 = vmatpush1.msra.mxu0 0.0
        %5678 = vmatprep.subr.mxu0 0.0
        %5679 = vmatpush1.msra.mxu0 0.0
        %5680 = vmatprep.subr.mxu0 0.0
        %5681 = vmatpush1.msra.mxu0 0.0
        %5682 = vmatprep.subr.mxu0 0.0
        %5683 = vmatpush1.msra.mxu0 0.0
        %5684 = vmatprep.subr.mxu0 0.0
        %5685 = vmatpush1.msra.mxu0 0.0
        %5686 = vmatprep.subr.mxu0 0.0
        %5687 = vmatpush1.msra.mxu0 0.0
        %5688 = vmatprep.subr.mxu0 0.0
        %5689 = vmatpush1.msra.mxu0 0.0
        %5690 = vmatprep.subr.mxu0 0.0
        %5691 = vmatpush1.msra.mxu0 0.0
        %5692 = vmatprep.subr.mxu0 0.0
        %5693 = vmatpush1.msra.mxu0 0.0
        %5694 = vmatprep.subr.mxu0 0.0
        %5695 = vmatpush1.msra.mxu0 0.0
        %5696 = vmatprep.subr.mxu0 0.0
        %5697 = vmatpush1.msra.mxu0 0.0
        %5698 = vmatprep.subr.mxu0 0.0
        %5699 = vmatpush1.msra.mxu0 0.0
        %5700 = vmatprep.subr.mxu0 0.0
        %5701 = vmatpush1.msra.mxu0 0.0
        %5702 = vmatprep.subr.mxu0 0.0
        %5703 = vmatpush1.msra.mxu0 0.0
        %5704 = vmatprep.subr.mxu0 0.0
        %5705 = vmatpush1.msra.mxu0 0.0
        %5706 = vmatprep.subr.mxu0 0.0
        %5707 = vmatpush1.msra.mxu0 0.0
        %5708 = vmatprep.mubr.f32.mxu0 0.0
        %5709 = vmatmul.mubr.f32.gmra.mrb[0].mxu0 %v5429
        %v5710 = vpop.f32.mrb[0].mxu0
        %v5711 = vadd.f32 %v5425, %v5710
        %v5712 = vpop.f32.mrb[0].mxu0
        %v5713 = vadd.f32 %v5425, %v5712
        %5714 = vdwg.mxu0
        %v5715 = vmax.f32 %v5498, 0.0
        %v5716 = vmax.f32 %v5500, 0.0
        %v5717 = vmax.f32 %v5569, 0.0
        %v5718 = vmax.f32 %v5571, 0.0
        %v5719 = vmax.f32 %v5640, 0.0
        %v5720 = vmax.f32 %v5642, 0.0
        %v5721 = vmax.f32 %v5711, 0.0
        %v5722 = vmax.f32 %v5713, 0.0
        %5723 = vst [vmem:[%s280] sm:$0xff] %v5715
        %5724 = vst [vmem:[%s280 + $0x8] sm:$0xff] %v5716
        %5725 = vst [vmem:[%s280 + $0x10] sm:$0xff] %v5717
        %5726 = vst [vmem:[%s280 + $0x18] sm:$0xff] %v5718
        %5727 = vst [vmem:[%s280 + $0x20] sm:$0xff] %v5719
        %5728 = vst [vmem:[%s280 + $0x28] sm:$0xff] %v5720
        %5729 = vst [vmem:[%s280 + $0x30] sm:$0xff] %v5721
        %5730 = vst [vmem:[%s280 + $0x38] sm:$0xff] %v5722
        %s5731 = sand.u32 %s150, 1
        %s5732 = scalar_lea.sflag [#allocation7], %s5731
        %s5733 = sand.u32 %s150, 1
        %s5734 = smul.addr %s5733, 64
        %s5735 = scalar_lea.vmem [#allocation14], %s5734
        // Predicated region
        $region65: #{rfaconv_pallas.1} parent=39 // pred_check
          %p5736 = pneg %p160
        $region66: #{rfaconv_pallas.1} parent=39 // pred_check_branch
          %5738 = sbr.rel (%p5736) target = $region68
        $region67: #{rfaconv_pallas.1} parent=39 // pred_region
          %s5739 = smul.u32 8, %s28
          %s5741 = ssub.s32 1024, 1024
          %5742 = vsyncadd %s5732, %s5741
          %s5743 = smul.addr %s27, 16
          %s5744 = sadd.s32 %s5739, %s5743
          %s5745 = smul.addr %s5744, 128
          %s5746 = scalar_lea.hbm %s6, %s5745
          %s5748 = sshll.u32 %s5735, 4
          %s5749 = int_to_ptr.vmem [resolvable:$true] %s5748
          %5751 = dma.vmem_to_hbm [thread:$0]  %s5749, 1024, %s5746, %s5732
        $region68: #{rfaconv_pallas.1} parent=39 // pred_fallthru
          _
      $region40: #{rfaconv_pallas.1} parent=5 // pred_fallthru
        _
      %p5752 = scmp.le.s32.totalorder 2, %s18
      // Predicated region
      $region69: #{rfaconv_pallas.1} parent=5 // pred_check
        %p5753 = pneg %p5752
      $region70: #{rfaconv_pallas.1} parent=5 // pred_check_branch
        %5755 = sbr.rel (%p5753) target = $region72
      $region71: #{rfaconv_pallas.1} parent=5 // pred_region
        %s5756 = ssub.s32 %s18, 2
        // Predicated region
        $region73: #{rfaconv_pallas.1} parent=71 // pred_check
          %p5757 = pneg %p166
        $region74: #{rfaconv_pallas.1} parent=71 // pred_check_branch
          %5759 = sbr.rel (%p5757) target = $region76
        $region75: #{rfaconv_pallas.1} parent=71 // pred_region
          %s5760 = sand.u32 %s151, 1
          %s5761 = scalar_lea.sflag [#allocation7], %s5760
          %s5762 = sand.u32 %s151, 1
          %s5763 = smul.addr %s5762, 64
          %s5764 = scalar_lea.vmem [#allocation14], %s5763
          %5765 = dma.done %s5761, 1024
        $region76: #{rfaconv_pallas.1} parent=71 // pred_fallthru
          _
      $region72: #{rfaconv_pallas.1} parent=5 // pred_fallthru
        _
    $region6: #{rfaconv_pallas.1} parent=1 // loop_footer
      %s22 = sadd.s32 1, %s18
    $region7: #{rfaconv_pallas.1} parent=1 // loop_footer_branch
      %17 = sbr.rel target = $region3
    $region8: #{rfaconv_pallas.1} parent=1 // loop_exit
      _
    %5766 = vsyncpa [#allocation6], 1
    %s5767 = scalar_lea.sflag [#allocation6], 1
    %5768 = vsyncpa %s5767, 1
    %5769 = vsyncpa [#allocation9], 1
    %5770 = vsyncpa [#allocation12], 1
    %5771 = vsyncpa [#allocation7], 1
    %s5772 = scalar_lea.sflag [#allocation7], 1
    %5773 = vsyncpa %s5772, 1
  %5774 = vsyncmov [#allocation3]
  %s5775 = vpop.sfrf %5774
  %p5776 = scmp.eq.s32.totalorder %s5775, 0
  %p5777 = pneg %p5776
  %5779 = shalt.err (%p5777)

</llo_original>
